<compile_context>
chip_gen: v7x
topology: tpu7x:2x2x1
jax: 0.10.0
libtpu: 0.0.40
codegen_flags: <defaults>
</compile_context>

<pallas_src>
import functools

import jax
import jax.numpy as jnp
from jax.experimental import pallas as pl
from jax.experimental.pallas import tpu as pltpu

EPS = 1e-6                      # HF SAM layer_norm_eps
VMEM_LIMIT = 48 * 1024 * 1024   # stays under v7x's 64 MiB physical VMEM


def _gelu_exact(x):
    # HF SAM hidden_act="gelu" (exact erf GELU)
    return 0.5 * x * (1.0 + jax.lax.erf(x * 0.7071067811865476))


def _layer_norm(v, w, b):
    # single-pass LN: one reduction pair instead of two passes (var = E[x^2] - mean^2)
    mu = jnp.mean(v, axis=-1, keepdims=True)
    ms = jnp.mean(v * v, axis=-1, keepdims=True)
    var = jnp.maximum(ms - mu * mu, 0.0)
    return (v - mu) * jax.lax.rsqrt(var + EPS) * w + b


# --------------------------------------------------------------------------- kernels
def patch_embed_kernel(p_ref, w_ref, b_ref, pos_ref, o_ref):
    """(tile_np, C*P*P) @ (C*P*P, D) + bias + pos_embed, bf16 MXU / f32 accumulate."""
    x = p_ref[0].astype(jnp.bfloat16)                               # (tp, Cpp)
    y = jnp.dot(x, w_ref[...], preferred_element_type=jnp.float32)  # w is bf16
    o_ref[0] = y + b_ref[...] + pos_ref[...]                        # (tp, D) f32


def ln_qkv_kernel(x_ref, lnw_ref, lnb_ref, w_ref, b_ref,
                  q_ref, k_ref, v_ref, *, num_heads, head_dim):
    """LayerNorm1 + fused QKV projection for one token tile; outputs head-major bf16."""
    x = x_ref[0]                                                    # (tq, D) f32
    xn = _layer_norm(x, lnw_ref[...], lnb_ref[...])
    qkv = jnp.dot(xn.astype(jnp.bfloat16), w_ref[...],
                  preferred_element_type=jnp.float32) + b_ref[...]  # (tq, 3D) f32
    tq = x.shape[0]
    D = num_heads * head_dim

    def to_heads(a):                                                # (tq, D) -> (nh, tq, hd)
        return jnp.transpose(a.reshape(tq, num_heads, head_dim), (1, 0, 2))

    q_ref[0] = to_heads(qkv[:, :D]).astype(jnp.bfloat16)
    k_ref[0] = to_heads(qkv[:, D:2 * D]).astype(jnp.bfloat16)
    v_ref[0] = to_heads(qkv[:, 2 * D:]).astype(jnp.bfloat16)


def flash_attn_kernel(q_ref, k_ref, v_ref, o_ref, m_sc, l_sc, acc_sc, *, scale):
    """Online-softmax attention over KV tiles; heads batched in one contraction."""
    j = pl.program_id(2)

    @pl.when(j == 0)
    def _():
        m_sc[...] = jnp.full_like(m_sc, -jnp.inf)
        l_sc[...] = jnp.zeros_like(l_sc)
        acc_sc[...] = jnp.zeros_like(acc_sc)

    q = q_ref[0]                                                    # (nh, tq, hd) bf16
    k = k_ref[0]                                                    # (nh, tkv, hd) bf16
    v = v_ref[0]                                                    # (nh, tkv, hd) bf16

    s = jnp.einsum("hqd,hkd->hqk", q, k,
                   preferred_element_type=jnp.float32) * scale      # (nh, tq, tkv) f32
    m_prev = m_sc[...]
    m_new = jnp.maximum(m_prev, jnp.max(s, axis=-1, keepdims=True))
    alpha = jnp.exp(m_prev - m_new)
    p = jnp.exp(s - m_new)
    l_sc[...] = alpha * l_sc[...] + jnp.sum(p, axis=-1, keepdims=True)
    acc_sc[...] = alpha * acc_sc[...] + jnp.einsum(
        "hqk,hkd->hqd", p.astype(jnp.bfloat16), v,
        preferred_element_type=jnp.float32)
    m_sc[...] = m_new

    @pl.when(j == pl.num_programs(2) - 1)
    def _():
        nh, tq, hd = acc_sc.shape
        ctx = acc_sc[...] * pl.reciprocal(l_sc[...], approx=True)   # (nh, tq, hd) f32
        ctx = jnp.transpose(ctx, (1, 0, 2)).reshape(tq, nh * hd)    # token-major (tq, D)
        o_ref[0] = ctx.astype(o_ref.dtype)                          # bf16


def proj_mlp_kernel(x_ref, a_ref, pw_ref, pb_ref, ln2w_ref, ln2b_ref,
                    f1w_ref, f1b_ref, f2w_ref, f2b_ref, o_ref):
    """attn-proj + residual + LayerNorm2 + MLP(gelu) + residual for one token tile."""
    x = x_ref[0]                                                    # (tq, D) f32 residual
    a = a_ref[0]                                                    # (tq, D) bf16 context
    y = x + jnp.dot(a, pw_ref[...], preferred_element_type=jnp.float32) + pb_ref[...]
    xn = _layer_norm(y, ln2w_ref[...], ln2b_ref[...])
    h1 = jnp.dot(xn.astype(jnp.bfloat16), f1w_ref[...],
                 preferred_element_type=jnp.float32) + f1b_ref[...]
    h1 = _gelu_exact(h1)
    h2 = jnp.dot(h1.astype(jnp.bfloat16), f2w_ref[...],
                 preferred_element_type=jnp.float32) + f2b_ref[...]
    o_ref[0] = y + h2


# --------------------------------------------------------------------------- wrappers
def patch_embed_call(patches, w, b, pos, *, tile_np):
    B, Np, Cpp = patches.shape
    D = w.shape[1]
    flops = 2 * B * Np * Cpp * D
    bytes_accessed = patches.size * 4 + w.size * 2 + pos.size * 4 + B * Np * D * 4
    return pl.pallas_call(
        patch_embed_kernel,
        out_shape=jax.ShapeDtypeStruct((B, Np, D), jnp.float32),
        grid=(B, Np // tile_np),
        in_specs=[
            pl.BlockSpec((1, tile_np, Cpp), lambda bi, i: (bi, i, 0)),
            pl.BlockSpec((Cpp, D), lambda bi, i: (0, 0)),
            pl.BlockSpec((1, D), lambda bi, i: (0, 0)),
            pl.BlockSpec((tile_np, D), lambda bi, i: (i, 0)),
        ],
        out_specs=pl.BlockSpec((1, tile_np, D), lambda bi, i: (bi, i, 0)),
        compiler_params=pltpu.CompilerParams(
            dimension_semantics=("parallel", "parallel"),
            vmem_limit_bytes=VMEM_LIMIT),
        cost_estimate=pl.CostEstimate(flops=flops, transcendentals=0,
                                      bytes_accessed=bytes_accessed),
    )(patches, w, b, pos)


def ln_qkv_call(x, lnw, lnb, qkv_w, qkv_b, *, num_heads, head_dim, tq):
    B, S, D = x.shape
    kernel = functools.partial(ln_qkv_kernel, num_heads=num_heads, head_dim=head_dim)
    hv = jax.ShapeDtypeStruct((B, num_heads, S, head_dim), jnp.bfloat16)
    qkv_out_spec = pl.BlockSpec((1, num_heads, tq, head_dim), lambda bi, i: (bi, 0, i, 0))
    flops = 2 * B * S * D * 3 * D
    bytes_accessed = x.size * 4 + qkv_w.size * 2 + 3 * B * S * D * 2
    return pl.pallas_call(
        kernel,
        out_shape=(hv, hv, hv),
        grid=(B, S // tq),
        in_specs=[
            pl.BlockSpec((1, tq, D), lambda bi, i: (bi, i, 0)),
            pl.BlockSpec((1, D), lambda bi, i: (0, 0)),
            pl.BlockSpec((1, D), lambda bi, i: (0, 0)),
            pl.BlockSpec((D, 3 * D), lambda bi, i: (0, 0)),
            pl.BlockSpec((1, 3 * D), lambda bi, i: (0, 0)),
        ],
        out_specs=(qkv_out_spec, qkv_out_spec, qkv_out_spec),
        compiler_params=pltpu.CompilerParams(
            dimension_semantics=("parallel", "parallel"),
            vmem_limit_bytes=VMEM_LIMIT),
        cost_estimate=pl.CostEstimate(flops=flops, transcendentals=0,
                                      bytes_accessed=bytes_accessed),
    )(x, lnw, lnb, qkv_w, qkv_b)


def flash_attn_call(q, k, v, *, tq, tkv, scale):
    B, nh, S, hd = q.shape
    D = nh * hd
    kernel = functools.partial(flash_attn_kernel, scale=scale)
    flops = 4 * B * nh * S * S * hd
    transc = B * nh * S * S
    bytes_accessed = (q.size + k.size + v.size) * 2 + B * S * D * 2
    return pl.pallas_call(
        kernel,
        out_shape=jax.ShapeDtypeStruct((B, S, D), jnp.bfloat16),
        grid=(B, S // tq, S // tkv),
        in_specs=[
            pl.BlockSpec((1, nh, tq, hd), lambda bi, i, j: (bi, 0, i, 0)),
            pl.BlockSpec((1, nh, tkv, hd), lambda bi, i, j: (bi, 0, j, 0)),
            pl.BlockSpec((1, nh, tkv, hd), lambda bi, i, j: (bi, 0, j, 0)),
        ],
        out_specs=pl.BlockSpec((1, tq, D), lambda bi, i, j: (bi, i, 0)),
        scratch_shapes=[
            pltpu.VMEM((nh, tq, 1), jnp.float32),   # running max
            pltpu.VMEM((nh, tq, 1), jnp.float32),   # running sum
            pltpu.VMEM((nh, tq, hd), jnp.float32),  # output accumulator
        ],
        compiler_params=pltpu.CompilerParams(
            dimension_semantics=("parallel", "parallel", "arbitrary"),
            vmem_limit_bytes=VMEM_LIMIT),
        cost_estimate=pl.CostEstimate(flops=flops, transcendentals=transc,
                                      bytes_accessed=bytes_accessed),
    )(q, k, v)


def proj_mlp_call(x, attn, lp, *, tq):
    B, S, D = x.shape
    M = lp["fc1_w"].shape[1]
    flops = 2 * B * S * (D * D + 2 * D * M)
    transc = B * S * M
    bytes_accessed = int(2 * x.size * 4 + attn.size * 2 +
                         (lp["proj_w"].size + lp["fc1_w"].size + lp["fc2_w"].size) * 2)
    vec = lambda n: pl.BlockSpec((1, n), lambda bi, i: (0, 0))
    mat = lambda r, c: pl.BlockSpec((r, c), lambda bi, i: (0, 0))
    return pl.pallas_call(
        proj_mlp_kernel,
        out_shape=jax.ShapeDtypeStruct((B, S, D), jnp.float32),
        grid=(B, S // tq),
        in_specs=[
            pl.BlockSpec((1, tq, D), lambda bi, i: (bi, i, 0)),   # residual stream x
            pl.BlockSpec((1, tq, D), lambda bi, i: (bi, i, 0)),   # attention context
            mat(D, D), vec(D),                                    # proj w, b
            vec(D), vec(D),                                       # ln2 w, b
            mat(D, M), vec(M),                                    # fc1 w, b
            mat(M, D), vec(D),                                    # fc2 w, b
        ],
        out_specs=pl.BlockSpec((1, tq, D), lambda bi, i: (bi, i, 0)),
        compiler_params=pltpu.CompilerParams(
            dimension_semantics=("parallel", "parallel"),
            vmem_limit_bytes=VMEM_LIMIT),
        cost_estimate=pl.CostEstimate(flops=flops, transcendentals=transc,
                                      bytes_accessed=bytes_accessed),
    )(x, attn, lp["proj_w"], lp["proj_b"], lp["ln2_w"], lp["ln2_b"],
      lp["fc1_w"], lp["fc1_b"], lp["fc2_w"], lp["fc2_b"])


def sam_vision_encoder_forward(x, params, cfg):
    """x: (B, C, H, W) NCHW float32  ->  features: (B, D, H/P, W/P)."""
    B, Cin, H, W = x.shape
    P = cfg["patch_size"]
    Hp, Wp = H // P, W // P
    Np = Hp * Wp
    D = cfg["hidden"]
    nh, hd = cfg["num_heads"], cfg["head_dim"]
    scale = float(hd) ** -0.5
    tq, tkv = cfg["tq"], cfg["tkv"]

    # unfold NCHW into per-patch rows (glue; the conv-as-matmul happens in the kernel)
    # TODO(synk): fold this transpose and the final permute into BlockSpec index maps.
    patches = (x.reshape(B, Cin, Hp, P, Wp, P)
                 .transpose(0, 2, 4, 1, 3, 5)
                 .reshape(B, Np, Cin * P * P))

    hidden = patch_embed_call(patches, params["pe_w"], params["pe_b"], params["pos"],
                              tile_np=tq)
    for lp in params["layers"]:
        q, k, v = ln_qkv_call(hidden, lp["ln1_w"], lp["ln1_b"],
                              lp["qkv_w"], lp["qkv_b"],
                              num_heads=nh, head_dim=hd, tq=tq)
        attn = flash_attn_call(q, k, v, tq=tq, tkv=tkv, scale=scale)
        hidden = proj_mlp_call(hidden, attn, lp, tq=tq)

    # features = hidden_states.permute(0, 3, 1, 2)
    return hidden.reshape(B, Hp, Wp, D).transpose(0, 3, 1, 2)


# --------------------------------------------------------------------------- reference
def _softmax_last(x):
    x = x - jnp.max(x, axis=-1, keepdims=True)
    e = jnp.exp(x)
    return e / jnp.sum(e, axis=-1, keepdims=True)


def reference_forward(x, params, cfg):
    """Pure-JAX f32 reference (bf16-stored weights upcast exactly)."""
    B, Cin, H, W = x.shape
    P = cfg["patch_size"]
    Hp, Wp = H // P, W // P
    Np = Hp * Wp
    D = cfg["hidden"]
    nh, hd = cfg["num_heads"], cfg["head_dim"]
    scale = float(hd) ** -0.5
    f32 = lambda a: a.astype(jnp.float32)

    patches = (x.reshape(B, Cin, Hp, P, Wp, P)
                 .transpose(0, 2, 4, 1, 3, 5)
                 .reshape(B, Np, Cin * P * P))
    h = patches @ f32(params["pe_w"]) + params["pe_b"][0] + params["pos"][None]

    def ln(v, w, b):
        mu = jnp.mean(v, axis=-1, keepdims=True)
        var = jnp.mean((v - mu) ** 2, axis=-1, keepdims=True)
        return (v - mu) * jax.lax.rsqrt(var + EPS) * w[0] + b[0]

    for lp in params["layers"]:
        xn = ln(h, lp["ln1_w"], lp["ln1_b"])
        qkv = xn @ f32(lp["qkv_w"]) + lp["qkv_b"][0]
        q, k, v = qkv[..., :D], qkv[..., D:2 * D], qkv[..., 2 * D:]
        q = q.reshape(B, Np, nh, hd).transpose(0, 2, 1, 3)
        k = k.reshape(B, Np, nh, hd).transpose(0, 2, 1, 3)
        v = v.reshape(B, Np, nh, hd).transpose(0, 2, 1, 3)
        probs = _softmax_last(jnp.einsum("bhqd,bhkd->bhqk", q * scale, k))
        attn = jnp.einsum("bhqk,bhkd->bhqd", probs, v)
        attn = attn.transpose(0, 2, 1, 3).reshape(B, Np, D)
        h = h + attn @ f32(lp["proj_w"]) + lp["proj_b"][0]
        xn2 = ln(h, lp["ln2_w"], lp["ln2_b"])
        m = _gelu_exact(xn2 @ f32(lp["fc1_w"]) + lp["fc1_b"][0])
        h = h + m @ f32(lp["fc2_w"]) + lp["fc2_b"][0]

    return h.reshape(B, Hp, Wp, D).transpose(0, 3, 1, 2)


# --------------------------------------------------------------------------- params
def init_params(key, cfg):
    Cin, P, D, M = cfg["in_channels"], cfg["patch_size"], cfg["hidden"], cfg["mlp"]
    Np = cfg["num_patches"]
    L = cfg["num_layers"]
    ks = iter(jax.random.split(key, 3 + 12 * L))
    nrm = lambda shape, s=0.02: (s * jax.random.normal(next(ks), shape)).astype(jnp.float32)
    bfw = lambda shape: nrm(shape).astype(jnp.bfloat16)   # MXU weights stored in bf16

    params = {
        # conv weight (D, Cin, P, P) pre-flattened/transposed to (Cin*P*P, D)
        "pe_w": bfw((Cin * P * P, D)),
        "pe_b": nrm((1, D)),
        "pos": nrm((Np, D)),     # absolute pos embed, flattened (Hp*Wp, D)
        "layers": [],
    }
    for _ in range(L):
        lp = {
            "ln1_w": 1.0 + nrm((1, D), 0.1),
            "ln1_b": nrm((1, D)),
            "qkv_w": bfw((D, 3 * D)),     # stored as (in, out) = torch W.T
            "qkv_b": nrm((1, 3 * D)),
            "proj_w": bfw((D, D)),
            "proj_b": nrm((1, D)),
            "ln2_w": 1.0 + nrm((1, D), 0.1),
            "ln2_b": nrm((1, D)),
            "fc1_w": bfw((D, M)),
            "fc1_b": nrm((1, M)),
            "fc2_w": bfw((M, D)),
            "fc2_b": nrm((1, D)),
        }
        params["layers"].append(lp)
    return params


# --------------------------------------------------------------------------- main
if __name__ == "__main__":
    cfg = dict(
        in_channels=3,
        img_size=32,
        patch_size=4,
        hidden=32,
        num_heads=2,
        head_dim=16,
        mlp=128,        # mlp_ratio = 4
        num_layers=2,
        tq=16,          # query/token tile (256-512 at real SAM shapes)
        tkv=16,         # kv tile for the online-softmax loop (512-1024 at real shapes)
    )
    cfg["num_patches"] = (cfg["img_size"] // cfg["patch_size"]) ** 2

    key = jax.random.PRNGKey(0)
    kx, kp = jax.random.split(key)
    x = jax.random.normal(kx, (2, cfg["in_channels"], cfg["img_size"], cfg["img_size"]),
                          dtype=jnp.float32)
    params = init_params(kp, cfg)

    fwd = jax.jit(functools.partial(sam_vision_encoder_forward, cfg=cfg))
    out = jax.block_until_ready(fwd(x, params))

    ref = reference_forward(x, params, cfg)
    Hp = cfg["img_size"] // cfg["patch_size"]
    assert out.shape == (2, cfg["hidden"], Hp, Hp)
    max_diff = float(jnp.max(jnp.abs(out - ref)))
    assert jnp.allclose(out, ref, atol=2e-2, rtol=2e-2), (
        f"mismatch vs pure-JAX reference; max abs diff = {max_diff}")
    print("KERNEL_OK")
</pallas_src>

<mosaic_0001>
module attributes {stable_mosaic.version = 11 : i64} {
  func.func @patch_embed_kernel(%arg0: i32, %arg1: i32, %arg2: memref<1x16x48xf32, #tpu.memory_space<vmem>>, %arg3: memref<48x32xbf16, #tpu.memory_space<vmem>>, %arg4: memref<1x32xf32, #tpu.memory_space<vmem>>, %arg5: memref<16x32xf32, #tpu.memory_space<vmem>>, %arg6: memref<1x16x32xf32, #tpu.memory_space<vmem>>) attributes {dimension_semantics = [#tpu.dimension_semantics<parallel>, #tpu.dimension_semantics<parallel>], iteration_bounds = array<i64: 2, 4>, scalar_prefetch = 0 : i64, scratch_operands = 0 : i64, tpu.core_type = #tpu.core_type<tc>, window_params = [{transform_indices = @transform_0, window_bounds = array<i64: 1, 16, 48>}, {pipeline_mode = #tpu.pipeline_mode<synchronous>, transform_indices = @transform_1, window_bounds = array<i64: 48, 32>}, {pipeline_mode = #tpu.pipeline_mode<synchronous>, transform_indices = @transform_2, window_bounds = array<i64: 1, 32>}, {transform_indices = @transform_3, window_bounds = array<i64: 16, 32>}, {transform_indices = @transform_4, window_bounds = array<i64: 1, 16, 32>}]} {
    %c0 = arith.constant 0 : index
    %c0_0 = arith.constant 0 : index
    %c0_1 = arith.constant 0 : index
    %0 = vector.load %arg2[%c0, %c0_0, %c0_1] : memref<1x16x48xf32, #tpu.memory_space<vmem>>, vector<1x16x48xf32>
    %1 = vector.shape_cast %0 : vector<1x16x48xf32> to vector<16x48xf32>
    %2 = arith.truncf %1 : vector<16x48xf32> to vector<16x48xbf16>
    %c0_2 = arith.constant 0 : index
    %c0_3 = arith.constant 0 : index
    %3 = vector.load %arg3[%c0_2, %c0_3] : memref<48x32xbf16, #tpu.memory_space<vmem>>, vector<48x32xbf16>
    %cst = arith.constant dense<0.000000e+00> : vector<16x32xf32>
    %4 = tpu.matmul %2, %3, %cst {dimension_numbers = #tpu.dot_dimension_numbers<[1], [0], [0], [1], [0, 0, 1, 1], [], []>} : vector<16x48xbf16>, vector<48x32xbf16>, vector<16x32xf32> -> vector<16x32xf32>
    %c0_4 = arith.constant 0 : index
    %c0_5 = arith.constant 0 : index
    %5 = vector.load %arg4[%c0_4, %c0_5] : memref<1x32xf32, #tpu.memory_space<vmem>>, vector<1x32xf32>
    %6 = vector.broadcast %5 : vector<1x32xf32> to vector<16x32xf32>
    %7 = arith.addf %4, %6 : vector<16x32xf32>
    %c0_6 = arith.constant 0 : index
    %c0_7 = arith.constant 0 : index
    %8 = vector.load %arg5[%c0_6, %c0_7] : memref<16x32xf32, #tpu.memory_space<vmem>>, vector<16x32xf32>
    %9 = arith.addf %7, %8 : vector<16x32xf32>
    %c0_8 = arith.constant 0 : index
    %c0_9 = arith.constant 0 : index
    %c0_10 = arith.constant 0 : index
    %10 = vector.load %arg6[%c0_8, %c0_9, %c0_10] : memref<1x16x32xf32, #tpu.memory_space<vmem>>, vector<1x16x32xf32>
    %11 = vector.shape_cast %10 : vector<1x16x32xf32> to vector<16x32xf32>
    %12 = vector.shape_cast %9 : vector<16x32xf32> to vector<1x16x32xf32>
    tpu.vector_store %arg6[%c0_8, %c0_9, %c0_10], %12 {strides = array<i32>} : memref<1x16x32xf32, #tpu.memory_space<vmem>>, vector<1x16x32xf32>,
    return
  }
  func.func @transform_0(%arg0: i32, %arg1: i32) -> (i32, i32, i32) {
    %c0_i32 = arith.constant 0 : i32
    %c0_i32_0 = arith.constant 0 : i32
    return %arg0, %arg1, %c0_i32 : i32, i32, i32
  }
  func.func @transform_1(%arg0: i32, %arg1: i32) -> (i32, i32) {
    %c0_i32 = arith.constant 0 : i32
    %c0_i32_0 = arith.constant 0 : i32
    %c0_i32_1 = arith.constant 0 : i32
    return %c0_i32, %c0_i32_0 : i32, i32
  }
  func.func @transform_2(%arg0: i32, %arg1: i32) -> (i32, i32) {
    %c0_i32 = arith.constant 0 : i32
    %c0_i32_0 = arith.constant 0 : i32
    %c0_i32_1 = arith.constant 0 : i32
    return %c0_i32, %c0_i32_0 : i32, i32
  }
  func.func @transform_3(%arg0: i32, %arg1: i32) -> (i32, i32) {
    %c0_i32 = arith.constant 0 : i32
    %c0_i32_0 = arith.constant 0 : i32
    return %arg1, %c0_i32 : i32, i32
  }
  func.func @transform_4(%arg0: i32, %arg1: i32) -> (i32, i32, i32) {
    %c0_i32 = arith.constant 0 : i32
    %c0_i32_0 = arith.constant 0 : i32
    return %arg0, %arg1, %c0_i32 : i32, i32, i32
  }
}

module attributes {stable_mosaic.version = 11 : i64} {
  func.func @flash_attn_kernel(%arg0: i32, %arg1: i32, %arg2: i32, %arg3: memref<1x2x16x16xbf16, #tpu.memory_space<vmem>>, %arg4: memref<1x2x16x16xbf16, #tpu.memory_space<vmem>>, %arg5: memref<1x2x16x16xbf16, #tpu.memory_space<vmem>>, %arg6: memref<1x16x32xbf16, #tpu.memory_space<vmem>>, %arg7: memref<2x16x1xf32, #tpu.memory_space<vmem>>, %arg8: memref<2x16x1xf32, #tpu.memory_space<vmem>>, %arg9: memref<2x16x16xf32, #tpu.memory_space<vmem>>) attributes {dimension_semantics = [#tpu.dimension_semantics<parallel>, #tpu.dimension_semantics<parallel>, #tpu.dimension_semantics<arbitrary>], iteration_bounds = array<i64: 2, 4, 4>, scalar_prefetch = 0 : i64, scratch_operands = 3 : i64, tpu.core_type = #tpu.core_type<tc>, window_params = [{transform_indices = @transform_0, window_bounds = array<i64: 1, 2, 16, 16>}, {transform_indices = @transform_1, window_bounds = array<i64: 1, 2, 16, 16>}, {transform_indices = @transform_2, window_bounds = array<i64: 1, 2, 16, 16>}, {transform_indices = @transform_3, window_bounds = array<i64: 1, 16, 32>}]} {
    %c0_i32 = arith.constant 0 : i32
    %0 = arith.cmpi eq, %arg2, %c0_i32 : i32
    %1 = arith.extui %0 : i1 to i32
    %c0_i32_0 = arith.constant 0 : i32
    %2 = arith.cmpi ne, %1, %c0_i32_0 : i32
    scf.if %2 {
      %cst_35 = arith.constant 0xFF800000 : f32
      %38 = vector.broadcast %cst_35 : f32 to vector<2x16x1xf32>
      %c0_36 = arith.constant 0 : index
      %c0_37 = arith.constant 0 : index
      %c0_38 = arith.constant 0 : index
      %39 = vector.load %arg7[%c0_36, %c0_37, %c0_38] : memref<2x16x1xf32, #tpu.memory_space<vmem>>, vector<2x16x1xf32>
      tpu.vector_store %arg7[%c0_36, %c0_37, %c0_38], %38 {strides = array<i32>} : memref<2x16x1xf32, #tpu.memory_space<vmem>>, vector<2x16x1xf32>,
      %cst_39 = arith.constant 0.000000e+00 : f32
      %40 = vector.broadcast %cst_39 : f32 to vector<2x16x1xf32>
      %c0_40 = arith.constant 0 : index
      %c0_41 = arith.constant 0 : index
      %c0_42 = arith.constant 0 : index
      %41 = vector.load %arg8[%c0_40, %c0_41, %c0_42] : memref<2x16x1xf32, #tpu.memory_space<vmem>>, vector<2x16x1xf32>
      tpu.vector_store %arg8[%c0_40, %c0_41, %c0_42], %40 {strides = array<i32>} : memref<2x16x1xf32, #tpu.memory_space<vmem>>, vector<2x16x1xf32>,
      %cst_43 = arith.constant 0.000000e+00 : f32
      %42 = vector.broadcast %cst_43 : f32 to vector<2x16x16xf32>
      %c0_44 = arith.constant 0 : index
      %c0_45 = arith.constant 0 : index
      %c0_46 = arith.constant 0 : index
      %43 = vector.load %arg9[%c0_44, %c0_45, %c0_46] : memref<2x16x16xf32, #tpu.memory_space<vmem>>, vector<2x16x16xf32>
      tpu.vector_store %arg9[%c0_44, %c0_45, %c0_46], %42 {strides = array<i32>} : memref<2x16x16xf32, #tpu.memory_space<vmem>>, vector<2x16x16xf32>,
    } else {
    }
    %c0 = arith.constant 0 : index
    %c0_1 = arith.constant 0 : index
    %c0_2 = arith.constant 0 : index
    %c0_3 = arith.constant 0 : index
    %3 = vector.load %arg3[%c0, %c0_1, %c0_2, %c0_3] : memref<1x2x16x16xbf16, #tpu.memory_space<vmem>>, vector<1x2x16x16xbf16>
    %4 = vector.shape_cast %3 : vector<1x2x16x16xbf16> to vector<2x16x16xbf16>
    %c0_4 = arith.constant 0 : index
    %c0_5 = arith.constant 0 : index
    %c0_6 = arith.constant 0 : index
    %c0_7 = arith.constant 0 : index
    %5 = vector.load %arg4[%c0_4, %c0_5, %c0_6, %c0_7] : memref<1x2x16x16xbf16, #tpu.memory_space<vmem>>, vector<1x2x16x16xbf16>
    %6 = vector.shape_cast %5 : vector<1x2x16x16xbf16> to vector<2x16x16xbf16>
    %c0_8 = arith.constant 0 : index
    %c0_9 = arith.constant 0 : index
    %c0_10 = arith.constant 0 : index
    %c0_11 = arith.constant 0 : index
    %7 = vector.load %arg5[%c0_8, %c0_9, %c0_10, %c0_11] : memref<1x2x16x16xbf16, #tpu.memory_space<vmem>>, vector<1x2x16x16xbf16>
    %8 = vector.shape_cast %7 : vector<1x2x16x16xbf16> to vector<2x16x16xbf16>
    "tpu.trace_start"() <{level = 10 : i32, message = "hqd,hkd->hqk"}> : () -> ()
    %cst = arith.constant dense<0.000000e+00> : vector<2x16x16xf32>
    %9 = tpu.matmul %4, %6, %cst {dimension_numbers = #tpu.dot_dimension_numbers<[2], [2], [1], [1], [0, 0, 0, 1, 1, 1], [0], [0]>} : vector<2x16x16xbf16>, vector<2x16x16xbf16>, vector<2x16x16xf32> -> vector<2x16x16xf32>
    "tpu.trace_stop"() : () -> ()
    %cst_12 = arith.constant 2.500000e-01 : f32
    %10 = vector.broadcast %cst_12 : f32 to vector<2x16x16xf32>
    %11 = arith.mulf %9, %10 : vector<2x16x16xf32>
    %c0_13 = arith.constant 0 : index
    %c0_14 = arith.constant 0 : index
    %c0_15 = arith.constant 0 : index
    %12 = vector.load %arg7[%c0_13, %c0_14, %c0_15] : memref<2x16x1xf32, #tpu.memory_space<vmem>>, vector<2x16x1xf32>
    %cst_16 = arith.constant dense<0xFF800000> : vector<2x16xf32>
    %13 = vector.multi_reduction <maximumf>, %11, %cst_16 [2] : vector<2x16x16xf32> to vector<2x16xf32>
    %14 = vector.shape_cast %13 : vector<2x16xf32> to vector<2x16x1xf32>
    %15 = arith.maximumf %12, %14 : vector<2x16x1xf32>
    %16 = arith.subf %12, %15 : vector<2x16x1xf32>
    %17 = math.exp %16 : vector<2x16x1xf32>
    %18 = vector.broadcast %15 : vector<2x16x1xf32> to vector<2x16x16xf32>
    %19 = arith.subf %11, %18 : vector<2x16x16xf32>
    %20 = math.exp %19 : vector<2x16x16xf32>
    %c0_17 = arith.constant 0 : index
    %c0_18 = arith.constant 0 : index
    %c0_19 = arith.constant 0 : index
    %21 = vector.load %arg8[%c0_17, %c0_18, %c0_19] : memref<2x16x1xf32, #tpu.memory_space<vmem>>, vector<2x16x1xf32>
    %22 = arith.mulf %17, %21 : vector<2x16x1xf32>
    %cst_20 = arith.constant dense<0.000000e+00> : vector<2x16xf32>
    %23 = vector.multi_reduction <add>, %20, %cst_20 [2] : vector<2x16x16xf32> to vector<2x16xf32>
    %24 = vector.shape_cast %23 : vector<2x16xf32> to vector<2x16x1xf32>
    %25 = arith.addf %22, %24 : vector<2x16x1xf32>
    %c0_21 = arith.constant 0 : index
    %c0_22 = arith.constant 0 : index
    %c0_23 = arith.constant 0 : index
    %26 = vector.load %arg8[%c0_21, %c0_22, %c0_23] : memref<2x16x1xf32, #tpu.memory_space<vmem>>, vector<2x16x1xf32>
    tpu.vector_store %arg8[%c0_21, %c0_22, %c0_23], %25 {strides = array<i32>} : memref<2x16x1xf32, #tpu.memory_space<vmem>>, vector<2x16x1xf32>,
    %c0_24 = arith.constant 0 : index
    %c0_25 = arith.constant 0 : index
    %c0_26 = arith.constant 0 : index
    %27 = vector.load %arg9[%c0_24, %c0_25, %c0_26] : memref<2x16x16xf32, #tpu.memory_space<vmem>>, vector<2x16x16xf32>
    %28 = vector.broadcast %17 : vector<2x16x1xf32> to vector<2x16x16xf32>
    %29 = arith.mulf %28, %27 : vector<2x16x16xf32>
    %30 = arith.truncf %20 : vector<2x16x16xf32> to vector<2x16x16xbf16>
    "tpu.trace_start"() <{level = 10 : i32, message = "hqk,hkd->hqd"}> : () -> ()
    %cst_27 = arith.constant dense<0.000000e+00> : vector<2x16x16xf32>
    %31 = tpu.matmul %30, %8, %cst_27 {dimension_numbers = #tpu.dot_dimension_numbers<[2], [1], [1], [2], [0, 0, 0, 1, 1, 2], [0], [0]>} : vector<2x16x16xbf16>, vector<2x16x16xbf16>, vector<2x16x16xf32> -> vector<2x16x16xf32>
    "tpu.trace_stop"() : () -> ()
    %32 = arith.addf %29, %31 : vector<2x16x16xf32>
    %c0_28 = arith.constant 0 : index
    %c0_29 = arith.constant 0 : index
    %c0_30 = arith.constant 0 : index
    %33 = vector.load %arg9[%c0_28, %c0_29, %c0_30] : memref<2x16x16xf32, #tpu.memory_space<vmem>>, vector<2x16x16xf32>
    tpu.vector_store %arg9[%c0_28, %c0_29, %c0_30], %32 {strides = array<i32>} : memref<2x16x16xf32, #tpu.memory_space<vmem>>, vector<2x16x16xf32>,
    %c0_31 = arith.constant 0 : index
    %c0_32 = arith.constant 0 : index
    %c0_33 = arith.constant 0 : index
    %34 = vector.load %arg7[%c0_31, %c0_32, %c0_33] : memref<2x16x1xf32, #tpu.memory_space<vmem>>, vector<2x16x1xf32>
    tpu.vector_store %arg7[%c0_31, %c0_32, %c0_33], %15 {strides = array<i32>} : memref<2x16x1xf32, #tpu.memory_space<vmem>>, vector<2x16x1xf32>,
    %c3_i32 = arith.constant 3 : i32
    %35 = arith.cmpi eq, %arg2, %c3_i32 : i32
    %36 = arith.extui %35 : i1 to i32
    %c0_i32_34 = arith.constant 0 : i32
    %37 = arith.cmpi ne, %36, %c0_i32_34 : i32
    scf.if %37 {
      %c0_35 = arith.constant 0 : index
      %c0_36 = arith.constant 0 : index
      %c0_37 = arith.constant 0 : index
      %38 = vector.load %arg9[%c0_35, %c0_36, %c0_37] : memref<2x16x16xf32, #tpu.memory_space<vmem>>, vector<2x16x16xf32>
      %c0_38 = arith.constant 0 : index
      %c0_39 = arith.constant 0 : index
      %c0_40 = arith.constant 0 : index
      %39 = vector.load %arg8[%c0_38, %c0_39, %c0_40] : memref<2x16x1xf32, #tpu.memory_space<vmem>>, vector<2x16x1xf32>
      %40 = tpu.reciprocal %39 {approx = true} : vector<2x16x1xf32> -> vector<2x16x1xf32>
      %41 = vector.broadcast %40 : vector<2x16x1xf32> to vector<2x16x16xf32>
      %42 = arith.mulf %38, %41 : vector<2x16x16xf32>
      %43 = tpu.transpose %42, [1, 0, 2] : vector<2x16x16xf32> -> vector<16x2x16xf32>
      %44 = vector.shape_cast %43 : vector<16x2x16xf32> to vector<16x32xf32>
      %45 = arith.truncf %44 : vector<16x32xf32> to vector<16x32xbf16>
      %c0_41 = arith.constant 0 : index
      %c0_42 = arith.constant 0 : index
      %c0_43 = arith.constant 0 : index
      %46 = vector.load %arg6[%c0_41, %c0_42, %c0_43] : memref<1x16x32xbf16, #tpu.memory_space<vmem>>, vector<1x16x32xbf16>
      %47 = vector.shape_cast %46 : vector<1x16x32xbf16> to vector<16x32xbf16>
      %48 = vector.shape_cast %45 : vector<16x32xbf16> to vector<1x16x32xbf16>
      tpu.vector_store %arg6[%c0_41, %c0_42, %c0_43], %48 {strides = array<i32>} : memref<1x16x32xbf16, #tpu.memory_space<vmem>>, vector<1x16x32xbf16>,
    } else {
    }
    return
  }
  func.func @transform_0(%arg0: i32, %arg1: i32, %arg2: i32) -> (i32, i32, i32, i32) {
    %c0_i32 = arith.constant 0 : i32
    %c0_i32_0 = arith.constant 0 : i32
    %c0_i32_1 = arith.constant 0 : i32
    return %arg0, %c0_i32, %arg1, %c0_i32_0 : i32, i32, i32, i32
  }
  func.func @transform_1(%arg0: i32, %arg1: i32, %arg2: i32) -> (i32, i32, i32, i32) {
    %c0_i32 = arith.constant 0 : i32
    %c0_i32_0 = arith.constant 0 : i32
    %c0_i32_1 = arith.constant 0 : i32
    return %arg0, %c0_i32, %arg2, %c0_i32_0 : i32, i32, i32, i32
  }
  func.func @transform_2(%arg0: i32, %arg1: i32, %arg2: i32) -> (i32, i32, i32, i32) {
    %c0_i32 = arith.constant 0 : i32
    %c0_i32_0 = arith.constant 0 : i32
    %c0_i32_1 = arith.constant 0 : i32
    return %arg0, %c0_i32, %arg2, %c0_i32_0 : i32, i32, i32, i32
  }
  func.func @transform_3(%arg0: i32, %arg1: i32, %arg2: i32) -> (i32, i32, i32) {
    %c0_i32 = arith.constant 0 : i32
    %c0_i32_0 = arith.constant 0 : i32
    return %arg0, %arg1, %c0_i32 : i32, i32, i32
  }
}

module attributes {stable_mosaic.version = 11 : i64} {
  func.func @proj_mlp_kernel(%arg0: i32, %arg1: i32, %arg2: memref<1x16x32xf32, #tpu.memory_space<vmem>>, %arg3: memref<1x16x32xbf16, #tpu.memory_space<vmem>>, %arg4: memref<32x32xbf16, #tpu.memory_space<vmem>>, %arg5: memref<1x32xf32, #tpu.memory_space<vmem>>, %arg6: memref<1x32xf32, #tpu.memory_space<vmem>>, %arg7: memref<1x32xf32, #tpu.memory_space<vmem>>, %arg8: memref<32x128xbf16, #tpu.memory_space<vmem>>, %arg9: memref<1x128xf32, #tpu.memory_space<vmem>>, %arg10: memref<128x32xbf16, #tpu.memory_space<vmem>>, %arg11: memref<1x32xf32, #tpu.memory_space<vmem>>, %arg12: memref<1x16x32xf32, #tpu.memory_space<vmem>>) attributes {dimension_semantics = [#tpu.dimension_semantics<parallel>, #tpu.dimension_semantics<parallel>], iteration_bounds = array<i64: 2, 4>, scalar_prefetch = 0 : i64, scratch_operands = 0 : i64, tpu.core_type = #tpu.core_type<tc>, window_params = [{transform_indices = @transform_0, window_bounds = array<i64: 1, 16, 32>}, {transform_indices = @transform_1, window_bounds = array<i64: 1, 16, 32>}, {pipeline_mode = #tpu.pipeline_mode<synchronous>, transform_indices = @transform_2, window_bounds = array<i64: 32, 32>}, {pipeline_mode = #tpu.pipeline_mode<synchronous>, transform_indices = @transform_3, window_bounds = array<i64: 1, 32>}, {pipeline_mode = #tpu.pipeline_mode<synchronous>, transform_indices = @transform_4, window_bounds = array<i64: 1, 32>}, {pipeline_mode = #tpu.pipeline_mode<synchronous>, transform_indices = @transform_5, window_bounds = array<i64: 1, 32>}, {pipeline_mode = #tpu.pipeline_mode<synchronous>, transform_indices = @transform_6, window_bounds = array<i64: 32, 128>}, {pipeline_mode = #tpu.pipeline_mode<synchronous>, transform_indices = @transform_7, window_bounds = array<i64: 1, 128>}, {pipeline_mode = #tpu.pipeline_mode<synchronous>, transform_indices = @transform_8, window_bounds = array<i64: 128, 32>}, {pipeline_mode = #tpu.pipeline_mode<synchronous>, transform_indices = @transform_9, window_bounds = array<i64: 1, 32>}, {transform_indices = @transform_10, window_bounds = array<i64: 1, 16, 32>}]} {
    %c0 = arith.constant 0 : index
    %c0_0 = arith.constant 0 : index
    %c0_1 = arith.constant 0 : index
    %0 = vector.load %arg2[%c0, %c0_0, %c0_1] : memref<1x16x32xf32, #tpu.memory_space<vmem>>, vector<1x16x32xf32>
    %1 = vector.shape_cast %0 : vector<1x16x32xf32> to vector<16x32xf32>
    %c0_2 = arith.constant 0 : index
    %c0_3 = arith.constant 0 : index
    %c0_4 = arith.constant 0 : index
    %2 = vector.load %arg3[%c0_2, %c0_3, %c0_4] : memref<1x16x32xbf16, #tpu.memory_space<vmem>>, vector<1x16x32xbf16>
    %3 = vector.shape_cast %2 : vector<1x16x32xbf16> to vector<16x32xbf16>
    %c0_5 = arith.constant 0 : index
    %c0_6 = arith.constant 0 : index
    %4 = vector.load %arg4[%c0_5, %c0_6] : memref<32x32xbf16, #tpu.memory_space<vmem>>, vector<32x32xbf16>
    %cst = arith.constant dense<0.000000e+00> : vector<16x32xf32>
    %5 = tpu.matmul %3, %4, %cst {dimension_numbers = #tpu.dot_dimension_numbers<[1], [0], [0], [1], [0, 0, 1, 1], [], []>} : vector<16x32xbf16>, vector<32x32xbf16>, vector<16x32xf32> -> vector<16x32xf32>
    %6 = arith.addf %1, %5 : vector<16x32xf32>
    %c0_7 = arith.constant 0 : index
    %c0_8 = arith.constant 0 : index
    %7 = vector.load %arg5[%c0_7, %c0_8] : memref<1x32xf32, #tpu.memory_space<vmem>>, vector<1x32xf32>
    %8 = vector.broadcast %7 : vector<1x32xf32> to vector<16x32xf32>
    %9 = arith.addf %6, %8 : vector<16x32xf32>
    %c0_9 = arith.constant 0 : index
    %c0_10 = arith.constant 0 : index
    %10 = vector.load %arg6[%c0_9, %c0_10] : memref<1x32xf32, #tpu.memory_space<vmem>>, vector<1x32xf32>
    %c0_11 = arith.constant 0 : index
    %c0_12 = arith.constant 0 : index
    %11 = vector.load %arg7[%c0_11, %c0_12] : memref<1x32xf32, #tpu.memory_space<vmem>>, vector<1x32xf32>
    %cst_13 = arith.constant dense<0.000000e+00> : vector<16xf32>
    %12 = vector.multi_reduction <add>, %9, %cst_13 [1] : vector<16x32xf32> to vector<16xf32>
    %13 = vector.shape_cast %12 : vector<16xf32> to vector<16x1xf32>
    %cst_14 = arith.constant 3.200000e+01 : f32
    %14 = vector.broadcast %cst_14 : f32 to vector<16x1xf32>
    %15 = arith.divf %13, %14 : vector<16x1xf32>
    %16 = arith.mulf %9, %9 : vector<16x32xf32>
    %cst_15 = arith.constant dense<0.000000e+00> : vector<16xf32>
    %17 = vector.multi_reduction <add>, %16, %cst_15 [1] : vector<16x32xf32> to vector<16xf32>
    %18 = vector.shape_cast %17 : vector<16xf32> to vector<16x1xf32>
    %cst_16 = arith.constant 3.200000e+01 : f32
    %19 = vector.broadcast %cst_16 : f32 to vector<16x1xf32>
    %20 = arith.divf %18, %19 : vector<16x1xf32>
    %21 = arith.mulf %15, %15 : vector<16x1xf32>
    %22 = arith.subf %20, %21 : vector<16x1xf32>
    %cst_17 = arith.constant 0.000000e+00 : f32
    %23 = vector.broadcast %cst_17 : f32 to vector<16x1xf32>
    %24 = arith.maximumf %22, %23 : vector<16x1xf32>
    %25 = vector.broadcast %15 : vector<16x1xf32> to vector<16x32xf32>
    %26 = arith.subf %9, %25 : vector<16x32xf32>
    %cst_18 = arith.constant 9.99999997E-7 : f32
    %27 = vector.broadcast %cst_18 : f32 to vector<16x1xf32>
    %28 = arith.addf %24, %27 : vector<16x1xf32>
    %29 = math.rsqrt %28 : vector<16x1xf32>
    %30 = vector.broadcast %29 : vector<16x1xf32> to vector<16x32xf32>
    %31 = arith.mulf %26, %30 : vector<16x32xf32>
    %32 = vector.broadcast %10 : vector<1x32xf32> to vector<16x32xf32>
    %33 = arith.mulf %31, %32 : vector<16x32xf32>
    %34 = vector.broadcast %11 : vector<1x32xf32> to vector<16x32xf32>
    %35 = arith.addf %33, %34 : vector<16x32xf32>
    %36 = arith.truncf %35 : vector<16x32xf32> to vector<16x32xbf16>
    %c0_19 = arith.constant 0 : index
    %c0_20 = arith.constant 0 : index
    %37 = vector.load %arg8[%c0_19, %c0_20] : memref<32x128xbf16, #tpu.memory_space<vmem>>, vector<32x128xbf16>
    %cst_21 = arith.constant dense<0.000000e+00> : vector<16x128xf32>
    %38 = tpu.matmul %36, %37, %cst_21 {dimension_numbers = #tpu.dot_dimension_numbers<[1], [0], [0], [1], [0, 0, 1, 1], [], []>} : vector<16x32xbf16>, vector<32x128xbf16>, vector<16x128xf32> -> vector<16x128xf32>
    %c0_22 = arith.constant 0 : index
    %c0_23 = arith.constant 0 : index
    %39 = vector.load %arg9[%c0_22, %c0_23] : memref<1x128xf32, #tpu.memory_space<vmem>>, vector<1x128xf32>
    %40 = vector.broadcast %39 : vector<1x128xf32> to vector<16x128xf32>
    %41 = arith.addf %38, %40 : vector<16x128xf32>
    %cst_24 = arith.constant 5.000000e-01 : f32
    %42 = vector.broadcast %cst_24 : f32 to vector<16x128xf32>
    %43 = arith.mulf %42, %41 : vector<16x128xf32>
    %cst_25 = arith.constant 0.707106769 : f32
    %44 = vector.broadcast %cst_25 : f32 to vector<16x128xf32>
    %45 = arith.mulf %41, %44 : vector<16x128xf32>
    %46 = math.erf %45 : vector<16x128xf32>
    %cst_26 = arith.constant 1.000000e+00 : f32
    %47 = vector.broadcast %cst_26 : f32 to vector<16x128xf32>
    %48 = arith.addf %47, %46 : vector<16x128xf32>
    %49 = arith.mulf %43, %48 : vector<16x128xf32>
    %50 = arith.truncf %49 : vector<16x128xf32> to vector<16x128xbf16>
    %c0_27 = arith.constant 0 : index
    %c0_28 = arith.constant 0 : index
    %51 = vector.load %arg10[%c0_27, %c0_28] : memref<128x32xbf16, #tpu.memory_space<vmem>>, vector<128x32xbf16>
    %cst_29 = arith.constant dense<0.000000e+00> : vector<16x32xf32>
    %52 = tpu.matmul %50, %51, %cst_29 {dimension_numbers = #tpu.dot_dimension_numbers<[1], [0], [0], [1], [0, 0, 1, 1], [], []>} : vector<16x128xbf16>, vector<128x32xbf16>, vector<16x32xf32> -> vector<16x32xf32>
    %c0_30 = arith.constant 0 : index
    %c0_31 = arith.constant 0 : index
    %53 = vector.load %arg11[%c0_30, %c0_31] : memref<1x32xf32, #tpu.memory_space<vmem>>, vector<1x32xf32>
    %54 = vector.broadcast %53 : vector<1x32xf32> to vector<16x32xf32>
    %55 = arith.addf %52, %54 : vector<16x32xf32>
    %56 = arith.addf %9, %55 : vector<16x32xf32>
    %c0_32 = arith.constant 0 : index
    %c0_33 = arith.constant 0 : index
    %c0_34 = arith.constant 0 : index
    %57 = vector.load %arg12[%c0_32, %c0_33, %c0_34] : memref<1x16x32xf32, #tpu.memory_space<vmem>>, vector<1x16x32xf32>
    %58 = vector.shape_cast %57 : vector<1x16x32xf32> to vector<16x32xf32>
    %59 = vector.shape_cast %56 : vector<16x32xf32> to vector<1x16x32xf32>
    tpu.vector_store %arg12[%c0_32, %c0_33, %c0_34], %59 {strides = array<i32>} : memref<1x16x32xf32, #tpu.memory_space<vmem>>, vector<1x16x32xf32>,
    return
  }
  func.func @transform_0(%arg0: i32, %arg1: i32) -> (i32, i32, i32) {
    %c0_i32 = arith.constant 0 : i32
    %c0_i32_0 = arith.constant 0 : i32
    return %arg0, %arg1, %c0_i32 : i32, i32, i32
  }
  func.func @transform_1(%arg0: i32, %arg1: i32) -> (i32, i32, i32) {
    %c0_i32 = arith.constant 0 : i32
    %c0_i32_0 = arith.constant 0 : i32
    return %arg0, %arg1, %c0_i32 : i32, i32, i32
  }
  func.func @transform_2(%arg0: i32, %arg1: i32) -> (i32, i32) {
    %c0_i32 = arith.constant 0 : i32
    %c0_i32_0 = arith.constant 0 : i32
    %c0_i32_1 = arith.constant 0 : i32
    return %c0_i32, %c0_i32_0 : i32, i32
  }
  func.func @transform_3(%arg0: i32, %arg1: i32) -> (i32, i32) {
    %c0_i32 = arith.constant 0 : i32
    %c0_i32_0 = arith.constant 0 : i32
    %c0_i32_1 = arith.constant 0 : i32
    return %c0_i32, %c0_i32_0 : i32, i32
  }
  func.func @transform_4(%arg0: i32, %arg1: i32) -> (i32, i32) {
    %c0_i32 = arith.constant 0 : i32
    %c0_i32_0 = arith.constant 0 : i32
    %c0_i32_1 = arith.constant 0 : i32
    return %c0_i32, %c0_i32_0 : i32, i32
  }
  func.func @transform_5(%arg0: i32, %arg1: i32) -> (i32, i32) {
    %c0_i32 = arith.constant 0 : i32
    %c0_i32_0 = arith.constant 0 : i32
    %c0_i32_1 = arith.constant 0 : i32
    return %c0_i32, %c0_i32_0 : i32, i32
  }
  func.func @transform_6(%arg0: i32, %arg1: i32) -> (i32, i32) {
    %c0_i32 = arith.constant 0 : i32
    %c0_i32_0 = arith.constant 0 : i32
    %c0_i32_1 = arith.constant 0 : i32
    return %c0_i32, %c0_i32_0 : i32, i32
  }
  func.func @transform_7(%arg0: i32, %arg1: i32) -> (i32, i32) {
    %c0_i32 = arith.constant 0 : i32
    %c0_i32_0 = arith.constant 0 : i32
    %c0_i32_1 = arith.constant 0 : i32
    return %c0_i32, %c0_i32_0 : i32, i32
  }
  func.func @transform_8(%arg0: i32, %arg1: i32) -> (i32, i32) {
    %c0_i32 = arith.constant 0 : i32
    %c0_i32_0 = arith.constant 0 : i32
    %c0_i32_1 = arith.constant 0 : i32
    return %c0_i32, %c0_i32_0 : i32, i32
  }
  func.func @transform_9(%arg0: i32, %arg1: i32) -> (i32, i32) {
    %c0_i32 = arith.constant 0 : i32
    %c0_i32_0 = arith.constant 0 : i32
    %c0_i32_1 = arith.constant 0 : i32
    return %c0_i32, %c0_i32_0 : i32, i32
  }
  func.func @transform_10(%arg0: i32, %arg1: i32) -> (i32, i32, i32) {
    %c0_i32 = arith.constant 0 : i32
    %c0_i32_0 = arith.constant 0 : i32
    return %arg0, %arg1, %c0_i32 : i32, i32, i32
  }
}

module attributes {stable_mosaic.version = 11 : i64} {
  func.func @ln_qkv_kernel(%arg0: i32, %arg1: i32, %arg2: memref<1x16x32xf32, #tpu.memory_space<vmem>>, %arg3: memref<1x32xf32, #tpu.memory_space<vmem>>, %arg4: memref<1x32xf32, #tpu.memory_space<vmem>>, %arg5: memref<32x96xbf16, #tpu.memory_space<vmem>>, %arg6: memref<1x96xf32, #tpu.memory_space<vmem>>, %arg7: memref<1x2x16x16xbf16, #tpu.memory_space<vmem>>, %arg8: memref<1x2x16x16xbf16, #tpu.memory_space<vmem>>, %arg9: memref<1x2x16x16xbf16, #tpu.memory_space<vmem>>) attributes {dimension_semantics = [#tpu.dimension_semantics<parallel>, #tpu.dimension_semantics<parallel>], iteration_bounds = array<i64: 2, 4>, scalar_prefetch = 0 : i64, scratch_operands = 0 : i64, tpu.core_type = #tpu.core_type<tc>, window_params = [{transform_indices = @transform_0, window_bounds = array<i64: 1, 16, 32>}, {pipeline_mode = #tpu.pipeline_mode<synchronous>, transform_indices = @transform_1, window_bounds = array<i64: 1, 32>}, {pipeline_mode = #tpu.pipeline_mode<synchronous>, transform_indices = @transform_2, window_bounds = array<i64: 1, 32>}, {pipeline_mode = #tpu.pipeline_mode<synchronous>, transform_indices = @transform_3, window_bounds = array<i64: 32, 96>}, {pipeline_mode = #tpu.pipeline_mode<synchronous>, transform_indices = @transform_4, window_bounds = array<i64: 1, 96>}, {transform_indices = @transform_5, window_bounds = array<i64: 1, 2, 16, 16>}, {transform_indices = @transform_6, window_bounds = array<i64: 1, 2, 16, 16>}, {transform_indices = @transform_7, window_bounds = array<i64: 1, 2, 16, 16>}]} {
    %c0 = arith.constant 0 : index
    %c0_0 = arith.constant 0 : index
    %c0_1 = arith.constant 0 : index
    %0 = vector.load %arg2[%c0, %c0_0, %c0_1] : memref<1x16x32xf32, #tpu.memory_space<vmem>>, vector<1x16x32xf32>
    %1 = vector.shape_cast %0 : vector<1x16x32xf32> to vector<16x32xf32>
    %c0_2 = arith.constant 0 : index
    %c0_3 = arith.constant 0 : index
    %2 = vector.load %arg3[%c0_2, %c0_3] : memref<1x32xf32, #tpu.memory_space<vmem>>, vector<1x32xf32>
    %c0_4 = arith.constant 0 : index
    %c0_5 = arith.constant 0 : index
    %3 = vector.load %arg4[%c0_4, %c0_5] : memref<1x32xf32, #tpu.memory_space<vmem>>, vector<1x32xf32>
    %cst = arith.constant dense<0.000000e+00> : vector<16xf32>
    %4 = vector.multi_reduction <add>, %1, %cst [1] : vector<16x32xf32> to vector<16xf32>
    %5 = vector.shape_cast %4 : vector<16xf32> to vector<16x1xf32>
    %cst_6 = arith.constant 3.200000e+01 : f32
    %6 = vector.broadcast %cst_6 : f32 to vector<16x1xf32>
    %7 = arith.divf %5, %6 : vector<16x1xf32>
    %8 = arith.mulf %1, %1 : vector<16x32xf32>
    %cst_7 = arith.constant dense<0.000000e+00> : vector<16xf32>
    %9 = vector.multi_reduction <add>, %8, %cst_7 [1] : vector<16x32xf32> to vector<16xf32>
    %10 = vector.shape_cast %9 : vector<16xf32> to vector<16x1xf32>
    %cst_8 = arith.constant 3.200000e+01 : f32
    %11 = vector.broadcast %cst_8 : f32 to vector<16x1xf32>
    %12 = arith.divf %10, %11 : vector<16x1xf32>
    %13 = arith.mulf %7, %7 : vector<16x1xf32>
    %14 = arith.subf %12, %13 : vector<16x1xf32>
    %cst_9 = arith.constant 0.000000e+00 : f32
    %15 = vector.broadcast %cst_9 : f32 to vector<16x1xf32>
    %16 = arith.maximumf %14, %15 : vector<16x1xf32>
    %17 = vector.broadcast %7 : vector<16x1xf32> to vector<16x32xf32>
    %18 = arith.subf %1, %17 : vector<16x32xf32>
    %cst_10 = arith.constant 9.99999997E-7 : f32
    %19 = vector.broadcast %cst_10 : f32 to vector<16x1xf32>
    %20 = arith.addf %16, %19 : vector<16x1xf32>
    %21 = math.rsqrt %20 : vector<16x1xf32>
    %22 = vector.broadcast %21 : vector<16x1xf32> to vector<16x32xf32>
    %23 = arith.mulf %18, %22 : vector<16x32xf32>
    %24 = vector.broadcast %2 : vector<1x32xf32> to vector<16x32xf32>
    %25 = arith.mulf %23, %24 : vector<16x32xf32>
    %26 = vector.broadcast %3 : vector<1x32xf32> to vector<16x32xf32>
    %27 = arith.addf %25, %26 : vector<16x32xf32>
    %28 = arith.truncf %27 : vector<16x32xf32> to vector<16x32xbf16>
    %c0_11 = arith.constant 0 : index
    %c0_12 = arith.constant 0 : index
    %29 = vector.load %arg5[%c0_11, %c0_12] : memref<32x96xbf16, #tpu.memory_space<vmem>>, vector<32x96xbf16>
    %cst_13 = arith.constant dense<0.000000e+00> : vector<16x96xf32>
    %30 = tpu.matmul %28, %29, %cst_13 {dimension_numbers = #tpu.dot_dimension_numbers<[1], [0], [0], [1], [0, 0, 1, 1], [], []>} : vector<16x32xbf16>, vector<32x96xbf16>, vector<16x96xf32> -> vector<16x96xf32>
    %c0_14 = arith.constant 0 : index
    %c0_15 = arith.constant 0 : index
    %31 = vector.load %arg6[%c0_14, %c0_15] : memref<1x96xf32, #tpu.memory_space<vmem>>, vector<1x96xf32>
    %32 = vector.broadcast %31 : vector<1x96xf32> to vector<16x96xf32>
    %33 = arith.addf %30, %32 : vector<16x96xf32>
    %34 = vector.extract_strided_slice %33 {offsets = [0, 0], sizes = [16, 32], strides = [1, 1]} : vector<16x96xf32> to vector<16x32xf32>
    %35 = vector.shape_cast %34 : vector<16x32xf32> to vector<16x2x16xf32>
    %36 = tpu.transpose %35, [1, 0, 2] : vector<16x2x16xf32> -> vector<2x16x16xf32>
    %37 = arith.truncf %36 : vector<2x16x16xf32> to vector<2x16x16xbf16>
    %c0_16 = arith.constant 0 : index
    %c0_17 = arith.constant 0 : index
    %c0_18 = arith.constant 0 : index
    %c0_19 = arith.constant 0 : index
    %38 = vector.load %arg7[%c0_16, %c0_17, %c0_18, %c0_19] : memref<1x2x16x16xbf16, #tpu.memory_space<vmem>>, vector<1x2x16x16xbf16>
    %39 = vector.shape_cast %38 : vector<1x2x16x16xbf16> to vector<2x16x16xbf16>
    %40 = vector.shape_cast %37 : vector<2x16x16xbf16> to vector<1x2x16x16xbf16>
    tpu.vector_store %arg7[%c0_16, %c0_17, %c0_18, %c0_19], %40 {strides = array<i32>} : memref<1x2x16x16xbf16, #tpu.memory_space<vmem>>, vector<1x2x16x16xbf16>,
    %41 = vector.extract_strided_slice %33 {offsets = [0, 32], sizes = [16, 32], strides = [1, 1]} : vector<16x96xf32> to vector<16x32xf32>
    %42 = vector.shape_cast %41 : vector<16x32xf32> to vector<16x2x16xf32>
    %43 = tpu.transpose %42, [1, 0, 2] : vector<16x2x16xf32> -> vector<2x16x16xf32>
    %44 = arith.truncf %43 : vector<2x16x16xf32> to vector<2x16x16xbf16>
    %c0_20 = arith.constant 0 : index
    %c0_21 = arith.constant 0 : index
    %c0_22 = arith.constant 0 : index
    %c0_23 = arith.constant 0 : index
    %45 = vector.load %arg8[%c0_20, %c0_21, %c0_22, %c0_23] : memref<1x2x16x16xbf16, #tpu.memory_space<vmem>>, vector<1x2x16x16xbf16>
    %46 = vector.shape_cast %45 : vector<1x2x16x16xbf16> to vector<2x16x16xbf16>
    %47 = vector.shape_cast %44 : vector<2x16x16xbf16> to vector<1x2x16x16xbf16>
    tpu.vector_store %arg8[%c0_20, %c0_21, %c0_22, %c0_23], %47 {strides = array<i32>} : memref<1x2x16x16xbf16, #tpu.memory_space<vmem>>, vector<1x2x16x16xbf16>,
    %48 = vector.extract_strided_slice %33 {offsets = [0, 64], sizes = [16, 32], strides = [1, 1]} : vector<16x96xf32> to vector<16x32xf32>
    %49 = vector.shape_cast %48 : vector<16x32xf32> to vector<16x2x16xf32>
    %50 = tpu.transpose %49, [1, 0, 2] : vector<16x2x16xf32> -> vector<2x16x16xf32>
    %51 = arith.truncf %50 : vector<2x16x16xf32> to vector<2x16x16xbf16>
    %c0_24 = arith.constant 0 : index
    %c0_25 = arith.constant 0 : index
    %c0_26 = arith.constant 0 : index
    %c0_27 = arith.constant 0 : index
    %52 = vector.load %arg9[%c0_24, %c0_25, %c0_26, %c0_27] : memref<1x2x16x16xbf16, #tpu.memory_space<vmem>>, vector<1x2x16x16xbf16>
    %53 = vector.shape_cast %52 : vector<1x2x16x16xbf16> to vector<2x16x16xbf16>
    %54 = vector.shape_cast %51 : vector<2x16x16xbf16> to vector<1x2x16x16xbf16>
    tpu.vector_store %arg9[%c0_24, %c0_25, %c0_26, %c0_27], %54 {strides = array<i32>} : memref<1x2x16x16xbf16, #tpu.memory_space<vmem>>, vector<1x2x16x16xbf16>,
    return
  }
  func.func @transform_0(%arg0: i32, %arg1: i32) -> (i32, i32, i32) {
    %c0_i32 = arith.constant 0 : i32
    %c0_i32_0 = arith.constant 0 : i32
    return %arg0, %arg1, %c0_i32 : i32, i32, i32
  }
  func.func @transform_1(%arg0: i32, %arg1: i32) -> (i32, i32) {
    %c0_i32 = arith.constant 0 : i32
    %c0_i32_0 = arith.constant 0 : i32
    %c0_i32_1 = arith.constant 0 : i32
    return %c0_i32, %c0_i32_0 : i32, i32
  }
  func.func @transform_2(%arg0: i32, %arg1: i32) -> (i32, i32) {
    %c0_i32 = arith.constant 0 : i32
    %c0_i32_0 = arith.constant 0 : i32
    %c0_i32_1 = arith.constant 0 : i32
    return %c0_i32, %c0_i32_0 : i32, i32
  }
  func.func @transform_3(%arg0: i32, %arg1: i32) -> (i32, i32) {
    %c0_i32 = arith.constant 0 : i32
    %c0_i32_0 = arith.constant 0 : i32
    %c0_i32_1 = arith.constant 0 : i32
    return %c0_i32, %c0_i32_0 : i32, i32
  }
  func.func @transform_4(%arg0: i32, %arg1: i32) -> (i32, i32) {
    %c0_i32 = arith.constant 0 : i32
    %c0_i32_0 = arith.constant 0 : i32
    %c0_i32_1 = arith.constant 0 : i32
    return %c0_i32, %c0_i32_0 : i32, i32
  }
  func.func @transform_5(%arg0: i32, %arg1: i32) -> (i32, i32, i32, i32) {
    %c0_i32 = arith.constant 0 : i32
    %c0_i32_0 = arith.constant 0 : i32
    %c0_i32_1 = arith.constant 0 : i32
    return %arg0, %c0_i32, %arg1, %c0_i32_0 : i32, i32, i32, i32
  }
  func.func @transform_6(%arg0: i32, %arg1: i32) -> (i32, i32, i32, i32) {
    %c0_i32 = arith.constant 0 : i32
    %c0_i32_0 = arith.constant 0 : i32
    %c0_i32_1 = arith.constant 0 : i32
    return %arg0, %c0_i32, %arg1, %c0_i32_0 : i32, i32, i32, i32
  }
  func.func @transform_7(%arg0: i32, %arg1: i32) -> (i32, i32, i32, i32) {
    %c0_i32 = arith.constant 0 : i32
    %c0_i32_0 = arith.constant 0 : i32
    %c0_i32_1 = arith.constant 0 : i32
    return %arg0, %c0_i32, %arg1, %c0_i32_0 : i32, i32, i32, i32
  }
}

module attributes {stable_mosaic.version = 11 : i64} {
  func.func @proj_mlp_kernel(%arg0: i32, %arg1: i32, %arg2: memref<1x16x32xf32, #tpu.memory_space<vmem>>, %arg3: memref<1x16x32xbf16, #tpu.memory_space<vmem>>, %arg4: memref<32x32xbf16, #tpu.memory_space<vmem>>, %arg5: memref<1x32xf32, #tpu.memory_space<vmem>>, %arg6: memref<1x32xf32, #tpu.memory_space<vmem>>, %arg7: memref<1x32xf32, #tpu.memory_space<vmem>>, %arg8: memref<32x128xbf16, #tpu.memory_space<vmem>>, %arg9: memref<1x128xf32, #tpu.memory_space<vmem>>, %arg10: memref<128x32xbf16, #tpu.memory_space<vmem>>, %arg11: memref<1x32xf32, #tpu.memory_space<vmem>>, %arg12: memref<1x16x32xf32, #tpu.memory_space<vmem>>) attributes {dimension_semantics = [#tpu.dimension_semantics<parallel>, #tpu.dimension_semantics<parallel>], iteration_bounds = array<i64: 2, 4>, scalar_prefetch = 0 : i64, scratch_operands = 0 : i64, tpu.core_type = #tpu.core_type<tc>, window_params = [{transform_indices = @transform_0, window_bounds = array<i64: 1, 16, 32>}, {transform_indices = @transform_1, window_bounds = array<i64: 1, 16, 32>}, {pipeline_mode = #tpu.pipeline_mode<synchronous>, transform_indices = @transform_2, window_bounds = array<i64: 32, 32>}, {pipeline_mode = #tpu.pipeline_mode<synchronous>, transform_indices = @transform_3, window_bounds = array<i64: 1, 32>}, {pipeline_mode = #tpu.pipeline_mode<synchronous>, transform_indices = @transform_4, window_bounds = array<i64: 1, 32>}, {pipeline_mode = #tpu.pipeline_mode<synchronous>, transform_indices = @transform_5, window_bounds = array<i64: 1, 32>}, {pipeline_mode = #tpu.pipeline_mode<synchronous>, transform_indices = @transform_6, window_bounds = array<i64: 32, 128>}, {pipeline_mode = #tpu.pipeline_mode<synchronous>, transform_indices = @transform_7, window_bounds = array<i64: 1, 128>}, {pipeline_mode = #tpu.pipeline_mode<synchronous>, transform_indices = @transform_8, window_bounds = array<i64: 128, 32>}, {pipeline_mode = #tpu.pipeline_mode<synchronous>, transform_indices = @transform_9, window_bounds = array<i64: 1, 32>}, {transform_indices = @transform_10, window_bounds = array<i64: 1, 16, 32>}]} {
    %c0 = arith.constant 0 : index
    %c0_0 = arith.constant 0 : index
    %c0_1 = arith.constant 0 : index
    %0 = vector.load %arg2[%c0, %c0_0, %c0_1] : memref<1x16x32xf32, #tpu.memory_space<vmem>>, vector<1x16x32xf32>
    %1 = vector.shape_cast %0 : vector<1x16x32xf32> to vector<16x32xf32>
    %c0_2 = arith.constant 0 : index
    %c0_3 = arith.constant 0 : index
    %c0_4 = arith.constant 0 : index
    %2 = vector.load %arg3[%c0_2, %c0_3, %c0_4] : memref<1x16x32xbf16, #tpu.memory_space<vmem>>, vector<1x16x32xbf16>
    %3 = vector.shape_cast %2 : vector<1x16x32xbf16> to vector<16x32xbf16>
    %c0_5 = arith.constant 0 : index
    %c0_6 = arith.constant 0 : index
    %4 = vector.load %arg4[%c0_5, %c0_6] : memref<32x32xbf16, #tpu.memory_space<vmem>>, vector<32x32xbf16>
    %cst = arith.constant dense<0.000000e+00> : vector<16x32xf32>
    %5 = tpu.matmul %3, %4, %cst {dimension_numbers = #tpu.dot_dimension_numbers<[1], [0], [0], [1], [0, 0, 1, 1], [], []>} : vector<16x32xbf16>, vector<32x32xbf16>, vector<16x32xf32> -> vector<16x32xf32>
    %6 = arith.addf %1, %5 : vector<16x32xf32>
    %c0_7 = arith.constant 0 : index
    %c0_8 = arith.constant 0 : index
    %7 = vector.load %arg5[%c0_7, %c0_8] : memref<1x32xf32, #tpu.memory_space<vmem>>, vector<1x32xf32>
    %8 = vector.broadcast %7 : vector<1x32xf32> to vector<16x32xf32>
    %9 = arith.addf %6, %8 : vector<16x32xf32>
    %c0_9 = arith.constant 0 : index
    %c0_10 = arith.constant 0 : index
    %10 = vector.load %arg6[%c0_9, %c0_10] : memref<1x32xf32, #tpu.memory_space<vmem>>, vector<1x32xf32>
    %c0_11 = arith.constant 0 : index
    %c0_12 = arith.constant 0 : index
    %11 = vector.load %arg7[%c0_11, %c0_12] : memref<1x32xf32, #tpu.memory_space<vmem>>, vector<1x32xf32>
    %cst_13 = arith.constant dense<0.000000e+00> : vector<16xf32>
    %12 = vector.multi_reduction <add>, %9, %cst_13 [1] : vector<16x32xf32> to vector<16xf32>
    %13 = vector.shape_cast %12 : vector<16xf32> to vector<16x1xf32>
    %cst_14 = arith.constant 3.200000e+01 : f32
    %14 = vector.broadcast %cst_14 : f32 to vector<16x1xf32>
    %15 = arith.divf %13, %14 : vector<16x1xf32>
    %16 = arith.mulf %9, %9 : vector<16x32xf32>
    %cst_15 = arith.constant dense<0.000000e+00> : vector<16xf32>
    %17 = vector.multi_reduction <add>, %16, %cst_15 [1] : vector<16x32xf32> to vector<16xf32>
    %18 = vector.shape_cast %17 : vector<16xf32> to vector<16x1xf32>
    %cst_16 = arith.constant 3.200000e+01 : f32
    %19 = vector.broadcast %cst_16 : f32 to vector<16x1xf32>
    %20 = arith.divf %18, %19 : vector<16x1xf32>
    %21 = arith.mulf %15, %15 : vector<16x1xf32>
    %22 = arith.subf %20, %21 : vector<16x1xf32>
    %cst_17 = arith.constant 0.000000e+00 : f32
    %23 = vector.broadcast %cst_17 : f32 to vector<16x1xf32>
    %24 = arith.maximumf %22, %23 : vector<16x1xf32>
    %25 = vector.broadcast %15 : vector<16x1xf32> to vector<16x32xf32>
    %26 = arith.subf %9, %25 : vector<16x32xf32>
    %cst_18 = arith.constant 9.99999997E-7 : f32
    %27 = vector.broadcast %cst_18 : f32 to vector<16x1xf32>
    %28 = arith.addf %24, %27 : vector<16x1xf32>
    %29 = math.rsqrt %28 : vector<16x1xf32>
    %30 = vector.broadcast %29 : vector<16x1xf32> to vector<16x32xf32>
    %31 = arith.mulf %26, %30 : vector<16x32xf32>
    %32 = vector.broadcast %10 : vector<1x32xf32> to vector<16x32xf32>
    %33 = arith.mulf %31, %32 : vector<16x32xf32>
    %34 = vector.broadcast %11 : vector<1x32xf32> to vector<16x32xf32>
    %35 = arith.addf %33, %34 : vector<16x32xf32>
    %36 = arith.truncf %35 : vector<16x32xf32> to vector<16x32xbf16>
    %c0_19 = arith.constant 0 : index
    %c0_20 = arith.constant 0 : index
    %37 = vector.load %arg8[%c0_19, %c0_20] : memref<32x128xbf16, #tpu.memory_space<vmem>>, vector<32x128xbf16>
    %cst_21 = arith.constant dense<0.000000e+00> : vector<16x128xf32>
    %38 = tpu.matmul %36, %37, %cst_21 {dimension_numbers = #tpu.dot_dimension_numbers<[1], [0], [0], [1], [0, 0, 1, 1], [], []>} : vector<16x32xbf16>, vector<32x128xbf16>, vector<16x128xf32> -> vector<16x128xf32>
    %c0_22 = arith.constant 0 : index
    %c0_23 = arith.constant 0 : index
    %39 = vector.load %arg9[%c0_22, %c0_23] : memref<1x128xf32, #tpu.memory_space<vmem>>, vector<1x128xf32>
    %40 = vector.broadcast %39 : vector<1x128xf32> to vector<16x128xf32>
    %41 = arith.addf %38, %40 : vector<16x128xf32>
    %cst_24 = arith.constant 5.000000e-01 : f32
    %42 = vector.broadcast %cst_24 : f32 to vector<16x128xf32>
    %43 = arith.mulf %42, %41 : vector<16x128xf32>
    %cst_25 = arith.constant 0.707106769 : f32
    %44 = vector.broadcast %cst_25 : f32 to vector<16x128xf32>
    %45 = arith.mulf %41, %44 : vector<16x128xf32>
    %46 = math.erf %45 : vector<16x128xf32>
    %cst_26 = arith.constant 1.000000e+00 : f32
    %47 = vector.broadcast %cst_26 : f32 to vector<16x128xf32>
    %48 = arith.addf %47, %46 : vector<16x128xf32>
    %49 = arith.mulf %43, %48 : vector<16x128xf32>
    %50 = arith.truncf %49 : vector<16x128xf32> to vector<16x128xbf16>
    %c0_27 = arith.constant 0 : index
    %c0_28 = arith.constant 0 : index
    %51 = vector.load %arg10[%c0_27, %c0_28] : memref<128x32xbf16, #tpu.memory_space<vmem>>, vector<128x32xbf16>
    %cst_29 = arith.constant dense<0.000000e+00> : vector<16x32xf32>
    %52 = tpu.matmul %50, %51, %cst_29 {dimension_numbers = #tpu.dot_dimension_numbers<[1], [0], [0], [1], [0, 0, 1, 1], [], []>} : vector<16x128xbf16>, vector<128x32xbf16>, vector<16x32xf32> -> vector<16x32xf32>
    %c0_30 = arith.constant 0 : index
    %c0_31 = arith.constant 0 : index
    %53 = vector.load %arg11[%c0_30, %c0_31] : memref<1x32xf32, #tpu.memory_space<vmem>>, vector<1x32xf32>
    %54 = vector.broadcast %53 : vector<1x32xf32> to vector<16x32xf32>
    %55 = arith.addf %52, %54 : vector<16x32xf32>
    %56 = arith.addf %9, %55 : vector<16x32xf32>
    %c0_32 = arith.constant 0 : index
    %c0_33 = arith.constant 0 : index
    %c0_34 = arith.constant 0 : index
    %57 = vector.load %arg12[%c0_32, %c0_33, %c0_34] : memref<1x16x32xf32, #tpu.memory_space<vmem>>, vector<1x16x32xf32>
    %58 = vector.shape_cast %57 : vector<1x16x32xf32> to vector<16x32xf32>
    %59 = vector.shape_cast %56 : vector<16x32xf32> to vector<1x16x32xf32>
    tpu.vector_store %arg12[%c0_32, %c0_33, %c0_34], %59 {strides = array<i32>} : memref<1x16x32xf32, #tpu.memory_space<vmem>>, vector<1x16x32xf32>,
    return
  }
  func.func @transform_0(%arg0: i32, %arg1: i32) -> (i32, i32, i32) {
    %c0_i32 = arith.constant 0 : i32
    %c0_i32_0 = arith.constant 0 : i32
    return %arg0, %arg1, %c0_i32 : i32, i32, i32
  }
  func.func @transform_1(%arg0: i32, %arg1: i32) -> (i32, i32, i32) {
    %c0_i32 = arith.constant 0 : i32
    %c0_i32_0 = arith.constant 0 : i32
    return %arg0, %arg1, %c0_i32 : i32, i32, i32
  }
  func.func @transform_2(%arg0: i32, %arg1: i32) -> (i32, i32) {
    %c0_i32 = arith.constant 0 : i32
    %c0_i32_0 = arith.constant 0 : i32
    %c0_i32_1 = arith.constant 0 : i32
    return %c0_i32, %c0_i32_0 : i32, i32
  }
  func.func @transform_3(%arg0: i32, %arg1: i32) -> (i32, i32) {
    %c0_i32 = arith.constant 0 : i32
    %c0_i32_0 = arith.constant 0 : i32
    %c0_i32_1 = arith.constant 0 : i32
    return %c0_i32, %c0_i32_0 : i32, i32
  }
  func.func @transform_4(%arg0: i32, %arg1: i32) -> (i32, i32) {
    %c0_i32 = arith.constant 0 : i32
    %c0_i32_0 = arith.constant 0 : i32
    %c0_i32_1 = arith.constant 0 : i32
    return %c0_i32, %c0_i32_0 : i32, i32
  }
  func.func @transform_5(%arg0: i32, %arg1: i32) -> (i32, i32) {
    %c0_i32 = arith.constant 0 : i32
    %c0_i32_0 = arith.constant 0 : i32
    %c0_i32_1 = arith.constant 0 : i32
    return %c0_i32, %c0_i32_0 : i32, i32
  }
  func.func @transform_6(%arg0: i32, %arg1: i32) -> (i32, i32) {
    %c0_i32 = arith.constant 0 : i32
    %c0_i32_0 = arith.constant 0 : i32
    %c0_i32_1 = arith.constant 0 : i32
    return %c0_i32, %c0_i32_0 : i32, i32
  }
  func.func @transform_7(%arg0: i32, %arg1: i32) -> (i32, i32) {
    %c0_i32 = arith.constant 0 : i32
    %c0_i32_0 = arith.constant 0 : i32
    %c0_i32_1 = arith.constant 0 : i32
    return %c0_i32, %c0_i32_0 : i32, i32
  }
  func.func @transform_8(%arg0: i32, %arg1: i32) -> (i32, i32) {
    %c0_i32 = arith.constant 0 : i32
    %c0_i32_0 = arith.constant 0 : i32
    %c0_i32_1 = arith.constant 0 : i32
    return %c0_i32, %c0_i32_0 : i32, i32
  }
  func.func @transform_9(%arg0: i32, %arg1: i32) -> (i32, i32) {
    %c0_i32 = arith.constant 0 : i32
    %c0_i32_0 = arith.constant 0 : i32
    %c0_i32_1 = arith.constant 0 : i32
    return %c0_i32, %c0_i32_0 : i32, i32
  }
  func.func @transform_10(%arg0: i32, %arg1: i32) -> (i32, i32, i32) {
    %c0_i32 = arith.constant 0 : i32
    %c0_i32_0 = arith.constant 0 : i32
    return %arg0, %arg1, %c0_i32 : i32, i32, i32
  }
}

</mosaic_0001>

<llo_original>
// kernel: sam_vision_encoder_forward.10
$region0: #{sam_vision_encoder_forward.10}
  #allocation0 [shape = 'u32[]', space=smem, size = 0x4, offset = 0x4, fixed_abs, tag = 'smem constant byte address 0x4 - core index']
  #allocation1 [shape = 'u32[144,128]{1,0:T(1,128)}', space=vmem, size = 0x12000, scoped, tag = 'internal scratch']
  %s0 = inlined_call_operand.vmem [shape: f32[2,64,32], index: 0, kind: input, shape index: {}]
  %s1 = inlined_call_operand.vmem [shape: bf16[2,64,32], index: 1, kind: input, shape index: {}]
  %s2 = inlined_call_operand.vmem [shape: bf16[32,32], index: 2, kind: input, shape index: {}]
  %s3 = inlined_call_operand.vmem [shape: f32[1,32], index: 3, kind: input, shape index: {}]
  %s4 = inlined_call_operand.vmem [shape: f32[1,32], index: 4, kind: input, shape index: {}]
  %s5 = inlined_call_operand.vmem [shape: f32[1,32], index: 5, kind: input, shape index: {}]
  %s6 = inlined_call_operand.vmem [shape: bf16[32,128], index: 6, kind: input, shape index: {}]
  %s7 = inlined_call_operand.vmem [shape: f32[1,128], index: 7, kind: input, shape index: {}]
  %s8 = inlined_call_operand.vmem [shape: bf16[128,32], index: 8, kind: input, shape index: {}]
  %s9 = inlined_call_operand.vmem [shape: f32[1,32], index: 9, kind: input, shape index: {}]
  %s10 = inlined_call_operand.vmem [shape: f32[2,64,32], index: 10, kind: output, shape index: {}]
  %s11 = sld [smem:[#allocation0]]
  $region73: #{sam_vision_encoder_forward.10} parent=0
    _
  %s13 = ssub.s32 1, %s11
  %s14 = scalar_select 0, %s13, %s11
  loop: start=0, step=1, limit=10
  $region2: #{sam_vision_encoder_forward.10} parent=0 // loop_pre_header
    _
  $region3: #{sam_vision_encoder_forward.10} parent=0 // loop_header
    %s16 = sphi 0, %s20
    %p17 = scmp.ge.s32.totalorder %s16, 10
    %s23 = sphi 0, %s35
    %s24 = sphi 0, %s31
    %s25 = sphi 0, %s23
    %s26 = sphi 0, %s24
    %s27 = sphi 0, %s25
    %s28 = sphi 0, %s26
    %s40 = sphi 0, %s42
    %s43 = sphi 0, %s40
    %s44 = sphi 0, %s43
    %s60 = sphi 0, %s44
    %s68 = sphi 0, %s70
    %s71 = sphi 0, %s68
    %s72 = sphi 0, %s71
    %s88 = sphi 0, %s72
    %s92 = sphi 0, %s92
    %s94 = sphi 0, %s92
    %s95 = sphi 0, %s94
    %s109 = sphi 0, %s95
    %s113 = sphi 0, %s113
    %s115 = sphi 0, %s113
    %s116 = sphi 0, %s115
    %s130 = sphi 0, %s116
    %s134 = sphi 0, %s134
    %s136 = sphi 0, %s134
    %s137 = sphi 0, %s136
    %s151 = sphi 0, %s137
    %s155 = sphi 0, %s155
    %s157 = sphi 0, %s155
    %s158 = sphi 0, %s157
    %s172 = sphi 0, %s158
    %s176 = sphi 0, %s176
    %s178 = sphi 0, %s176
    %s179 = sphi 0, %s178
    %s193 = sphi 0, %s179
    %s197 = sphi 0, %s197
    %s199 = sphi 0, %s197
    %s200 = sphi 0, %s199
    %s214 = sphi 0, %s200
    %s218 = sphi 0, %s218
    %s220 = sphi 0, %s218
    %s221 = sphi 0, %s220
    %s235 = sphi 0, %s221
    %s239 = sphi 0, %s239
    %s241 = sphi 0, %s239
    %s242 = sphi 0, %s241
    %s256 = sphi 0, %s242
    %s264 = sphi 0, %s266
    %s267 = sphi 0, %s264
    %s268 = sphi 0, %s267
    %s284 = sphi 0, %s268
  $region4: #{sam_vision_encoder_forward.10} parent=0 // loop_header_branch
    %19 = sbr.rel (%p17) target = $region8
  $region5: #{sam_vision_encoder_forward.10} parent=0 // loop_body
    %s21 = ssub.s32 %s16, 1
    %s22 = ssub.s32 %s16, 2
    %s29 = sadd.s32 1, %s24
    %p30 = scmp.ge.s32.totalorder %s29, 4
    %s31 = scalar_select %p30, 0, %s29
    %s32 = sadd.s32 1, %s23
    %s33 = scalar_select %p30, %s32, %s23
    %p34 = scmp.ge.s32.totalorder %s33, 2
    %s35 = scalar_select %p34, 0, %s33
    %s36 = ssub.s32 %s23, %s35
    %s37 = ssub.s32 %s24, %s31
    %s38 = sor.u32 %s36, %s37
    %p39 = scmp.eq.s32.totalorder %s38, 0
    %s41 = sadd.s32 %s40, 1
    %s42 = scalar_select %p39, %s40, %s41
    %p45 = pneg %p39
    %p46 = scmp.eq.s32.totalorder %s16, 7
    %p47 = por %p45, %p46
    %p48 = scmp.ne.s32.totalorder %s40, %s43
    %p49 = scmp.eq.s32.totalorder %s16, 0
    %p50 = por %p48, %p49
    %p51 = scmp.ne.s32.totalorder %s40, %s43
    %p52 = scmp.eq.s32.totalorder %s21, 7
    %p53 = por %p51, %p52
    %p54 = scmp.ne.s32.totalorder %s43, %s44
    %p55 = scmp.eq.s32.totalorder %s21, 0
    %p56 = por %p54, %p55
    %p57 = scmp.ne.s32.totalorder %s43, %s44
    %p58 = scmp.eq.s32.totalorder %s22, 7
    %p59 = por %p57, %p58
    %p61 = scmp.ne.s32.totalorder %s44, %s60
    %p62 = scmp.eq.s32.totalorder %s22, 0
    %p63 = por %p61, %p62
    %s64 = ssub.s32 %s23, %s35
    %s65 = ssub.s32 %s24, %s31
    %s66 = sor.u32 %s64, %s65
    %p67 = scmp.eq.s32.totalorder %s66, 0
    %s69 = sadd.s32 %s68, 1
    %s70 = scalar_select %p67, %s68, %s69
    %p73 = pneg %p67
    %p74 = scmp.eq.s32.totalorder %s16, 7
    %p75 = por %p73, %p74
    %p76 = scmp.ne.s32.totalorder %s68, %s71
    %p77 = scmp.eq.s32.totalorder %s16, 0
    %p78 = por %p76, %p77
    %p79 = scmp.ne.s32.totalorder %s68, %s71
    %p80 = scmp.eq.s32.totalorder %s21, 7
    %p81 = por %p79, %p80
    %p82 = scmp.ne.s32.totalorder %s71, %s72
    %p83 = scmp.eq.s32.totalorder %s21, 0
    %p84 = por %p82, %p83
    %p85 = scmp.ne.s32.totalorder %s71, %s72
    %p86 = scmp.eq.s32.totalorder %s22, 7
    %p87 = por %p85, %p86
    %p89 = scmp.ne.s32.totalorder %s72, %s88
    %p90 = scmp.eq.s32.totalorder %s22, 0
    %p91 = por %p89, %p90
    %s93 = sadd.s32 %s92, 1
    %p96 = scmp.eq.s32.totalorder %s16, 7
    %p97 = scmp.ne.s32.totalorder %s92, %s94
    %p98 = scmp.eq.s32.totalorder %s16, 0
    %p99 = por %p97, %p98
    %p100 = scmp.ne.s32.totalorder %s92, %s94
    %p101 = scmp.eq.s32.totalorder %s21, 7
    %p102 = por %p100, %p101
    %p103 = scmp.ne.s32.totalorder %s94, %s95
    %p104 = scmp.eq.s32.totalorder %s21, 0
    %p105 = por %p103, %p104
    %p106 = scmp.ne.s32.totalorder %s94, %s95
    %p107 = scmp.eq.s32.totalorder %s22, 7
    %p108 = por %p106, %p107
    %p110 = scmp.ne.s32.totalorder %s95, %s109
    %p111 = scmp.eq.s32.totalorder %s22, 0
    %p112 = por %p110, %p111
    %s114 = sadd.s32 %s113, 1
    %p117 = scmp.eq.s32.totalorder %s16, 7
    %p118 = scmp.ne.s32.totalorder %s113, %s115
    %p119 = scmp.eq.s32.totalorder %s16, 0
    %p120 = por %p118, %p119
    %p121 = scmp.ne.s32.totalorder %s113, %s115
    %p122 = scmp.eq.s32.totalorder %s21, 7
    %p123 = por %p121, %p122
    %p124 = scmp.ne.s32.totalorder %s115, %s116
    %p125 = scmp.eq.s32.totalorder %s21, 0
    %p126 = por %p124, %p125
    %p127 = scmp.ne.s32.totalorder %s115, %s116
    %p128 = scmp.eq.s32.totalorder %s22, 7
    %p129 = por %p127, %p128
    %p131 = scmp.ne.s32.totalorder %s116, %s130
    %p132 = scmp.eq.s32.totalorder %s22, 0
    %p133 = por %p131, %p132
    %s135 = sadd.s32 %s134, 1
    %p138 = scmp.eq.s32.totalorder %s16, 7
    %p139 = scmp.ne.s32.totalorder %s134, %s136
    %p140 = scmp.eq.s32.totalorder %s16, 0
    %p141 = por %p139, %p140
    %p142 = scmp.ne.s32.totalorder %s134, %s136
    %p143 = scmp.eq.s32.totalorder %s21, 7
    %p144 = por %p142, %p143
    %p145 = scmp.ne.s32.totalorder %s136, %s137
    %p146 = scmp.eq.s32.totalorder %s21, 0
    %p147 = por %p145, %p146
    %p148 = scmp.ne.s32.totalorder %s136, %s137
    %p149 = scmp.eq.s32.totalorder %s22, 7
    %p150 = por %p148, %p149
    %p152 = scmp.ne.s32.totalorder %s137, %s151
    %p153 = scmp.eq.s32.totalorder %s22, 0
    %p154 = por %p152, %p153
    %s156 = sadd.s32 %s155, 1
    %p159 = scmp.eq.s32.totalorder %s16, 7
    %p160 = scmp.ne.s32.totalorder %s155, %s157
    %p161 = scmp.eq.s32.totalorder %s16, 0
    %p162 = por %p160, %p161
    %p163 = scmp.ne.s32.totalorder %s155, %s157
    %p164 = scmp.eq.s32.totalorder %s21, 7
    %p165 = por %p163, %p164
    %p166 = scmp.ne.s32.totalorder %s157, %s158
    %p167 = scmp.eq.s32.totalorder %s21, 0
    %p168 = por %p166, %p167
    %p169 = scmp.ne.s32.totalorder %s157, %s158
    %p170 = scmp.eq.s32.totalorder %s22, 7
    %p171 = por %p169, %p170
    %p173 = scmp.ne.s32.totalorder %s158, %s172
    %p174 = scmp.eq.s32.totalorder %s22, 0
    %p175 = por %p173, %p174
    %s177 = sadd.s32 %s176, 1
    %p180 = scmp.eq.s32.totalorder %s16, 7
    %p181 = scmp.ne.s32.totalorder %s176, %s178
    %p182 = scmp.eq.s32.totalorder %s16, 0
    %p183 = por %p181, %p182
    %p184 = scmp.ne.s32.totalorder %s176, %s178
    %p185 = scmp.eq.s32.totalorder %s21, 7
    %p186 = por %p184, %p185
    %p187 = scmp.ne.s32.totalorder %s178, %s179
    %p188 = scmp.eq.s32.totalorder %s21, 0
    %p189 = por %p187, %p188
    %p190 = scmp.ne.s32.totalorder %s178, %s179
    %p191 = scmp.eq.s32.totalorder %s22, 7
    %p192 = por %p190, %p191
    %p194 = scmp.ne.s32.totalorder %s179, %s193
    %p195 = scmp.eq.s32.totalorder %s22, 0
    %p196 = por %p194, %p195
    %s198 = sadd.s32 %s197, 1
    %p201 = scmp.eq.s32.totalorder %s16, 7
    %p202 = scmp.ne.s32.totalorder %s197, %s199
    %p203 = scmp.eq.s32.totalorder %s16, 0
    %p204 = por %p202, %p203
    %p205 = scmp.ne.s32.totalorder %s197, %s199
    %p206 = scmp.eq.s32.totalorder %s21, 7
    %p207 = por %p205, %p206
    %p208 = scmp.ne.s32.totalorder %s199, %s200
    %p209 = scmp.eq.s32.totalorder %s21, 0
    %p210 = por %p208, %p209
    %p211 = scmp.ne.s32.totalorder %s199, %s200
    %p212 = scmp.eq.s32.totalorder %s22, 7
    %p213 = por %p211, %p212
    %p215 = scmp.ne.s32.totalorder %s200, %s214
    %p216 = scmp.eq.s32.totalorder %s22, 0
    %p217 = por %p215, %p216
    %s219 = sadd.s32 %s218, 1
    %p222 = scmp.eq.s32.totalorder %s16, 7
    %p223 = scmp.ne.s32.totalorder %s218, %s220
    %p224 = scmp.eq.s32.totalorder %s16, 0
    %p225 = por %p223, %p224
    %p226 = scmp.ne.s32.totalorder %s218, %s220
    %p227 = scmp.eq.s32.totalorder %s21, 7
    %p228 = por %p226, %p227
    %p229 = scmp.ne.s32.totalorder %s220, %s221
    %p230 = scmp.eq.s32.totalorder %s21, 0
    %p231 = por %p229, %p230
    %p232 = scmp.ne.s32.totalorder %s220, %s221
    %p233 = scmp.eq.s32.totalorder %s22, 7
    %p234 = por %p232, %p233
    %p236 = scmp.ne.s32.totalorder %s221, %s235
    %p237 = scmp.eq.s32.totalorder %s22, 0
    %p238 = por %p236, %p237
    %s240 = sadd.s32 %s239, 1
    %p243 = scmp.eq.s32.totalorder %s16, 7
    %p244 = scmp.ne.s32.totalorder %s239, %s241
    %p245 = scmp.eq.s32.totalorder %s16, 0
    %p246 = por %p244, %p245
    %p247 = scmp.ne.s32.totalorder %s239, %s241
    %p248 = scmp.eq.s32.totalorder %s21, 7
    %p249 = por %p247, %p248
    %p250 = scmp.ne.s32.totalorder %s241, %s242
    %p251 = scmp.eq.s32.totalorder %s21, 0
    %p252 = por %p250, %p251
    %p253 = scmp.ne.s32.totalorder %s241, %s242
    %p254 = scmp.eq.s32.totalorder %s22, 7
    %p255 = por %p253, %p254
    %p257 = scmp.ne.s32.totalorder %s242, %s256
    %p258 = scmp.eq.s32.totalorder %s22, 0
    %p259 = por %p257, %p258
    %s260 = ssub.s32 %s23, %s35
    %s261 = ssub.s32 %s24, %s31
    %s262 = sor.u32 %s260, %s261
    %p263 = scmp.eq.s32.totalorder %s262, 0
    %s265 = sadd.s32 %s264, 1
    %s266 = scalar_select %p263, %s264, %s265
    %p269 = pneg %p263
    %p270 = scmp.eq.s32.totalorder %s16, 7
    %p271 = por %p269, %p270
    %p272 = scmp.ne.s32.totalorder %s264, %s267
    %p273 = scmp.eq.s32.totalorder %s16, 0
    %p274 = por %p272, %p273
    %p275 = scmp.ne.s32.totalorder %s264, %s267
    %p276 = scmp.eq.s32.totalorder %s21, 7
    %p277 = por %p275, %p276
    %p278 = scmp.ne.s32.totalorder %s267, %s268
    %p279 = scmp.eq.s32.totalorder %s21, 0
    %p280 = por %p278, %p279
    %p281 = scmp.ne.s32.totalorder %s267, %s268
    %p282 = scmp.eq.s32.totalorder %s22, 7
    %p283 = por %p281, %p282
    %p285 = scmp.ne.s32.totalorder %s268, %s284
    %p286 = scmp.eq.s32.totalorder %s22, 0
    %p287 = por %p285, %p286
    %p288 = scmp.le.s32.totalorder 1, %s16
    %p289 = scmp.lt.s32.totalorder %s16, 9
    %p290 = pnand %p288, %p289
    %p291 = pneg %p290
    // Predicated region
    $region9: #{sam_vision_encoder_forward.10} parent=5 // pred_check
      _
    $region10: #{sam_vision_encoder_forward.10} parent=5 // pred_check_branch
      %293 = sbr.rel (%p290) target = $region12
    $region11: #{sam_vision_encoder_forward.10} parent=5 // pred_region
      %s294 = ssub.s32 %s16, 1
      // Predicated region
      $region13: #{sam_vision_encoder_forward.10} parent=11 // pred_check
        %p295 = pneg %p105
      $region14: #{sam_vision_encoder_forward.10} parent=11 // pred_check_branch
        %297 = sbr.rel (%p295) target = $region16
      $region15: #{sam_vision_encoder_forward.10} parent=11 // pred_region
        _
      $region16: #{sam_vision_encoder_forward.10} parent=11 // pred_fallthru
        _
      // Predicated region
      $region17: #{sam_vision_encoder_forward.10} parent=11 // pred_check
        %p298 = pneg %p126
      $region18: #{sam_vision_encoder_forward.10} parent=11 // pred_check_branch
        %300 = sbr.rel (%p298) target = $region20
      $region19: #{sam_vision_encoder_forward.10} parent=11 // pred_region
        _
      $region20: #{sam_vision_encoder_forward.10} parent=11 // pred_fallthru
        _
      // Predicated region
      $region21: #{sam_vision_encoder_forward.10} parent=11 // pred_check
        %p301 = pneg %p147
      $region22: #{sam_vision_encoder_forward.10} parent=11 // pred_check_branch
        %303 = sbr.rel (%p301) target = $region24
      $region23: #{sam_vision_encoder_forward.10} parent=11 // pred_region
        _
      $region24: #{sam_vision_encoder_forward.10} parent=11 // pred_fallthru
        _
      // Predicated region
      $region25: #{sam_vision_encoder_forward.10} parent=11 // pred_check
        %p304 = pneg %p168
      $region26: #{sam_vision_encoder_forward.10} parent=11 // pred_check_branch
        %306 = sbr.rel (%p304) target = $region28
      $region27: #{sam_vision_encoder_forward.10} parent=11 // pred_region
        _
      $region28: #{sam_vision_encoder_forward.10} parent=11 // pred_fallthru
        _
      // Predicated region
      $region29: #{sam_vision_encoder_forward.10} parent=11 // pred_check
        %p307 = pneg %p189
      $region30: #{sam_vision_encoder_forward.10} parent=11 // pred_check_branch
        %309 = sbr.rel (%p307) target = $region32
      $region31: #{sam_vision_encoder_forward.10} parent=11 // pred_region
        _
      $region32: #{sam_vision_encoder_forward.10} parent=11 // pred_fallthru
        _
      // Predicated region
      $region33: #{sam_vision_encoder_forward.10} parent=11 // pred_check
        %p310 = pneg %p210
      $region34: #{sam_vision_encoder_forward.10} parent=11 // pred_check_branch
        %312 = sbr.rel (%p310) target = $region36
      $region35: #{sam_vision_encoder_forward.10} parent=11 // pred_region
        _
      $region36: #{sam_vision_encoder_forward.10} parent=11 // pred_fallthru
        _
      // Predicated region
      $region37: #{sam_vision_encoder_forward.10} parent=11 // pred_check
        %p313 = pneg %p231
      $region38: #{sam_vision_encoder_forward.10} parent=11 // pred_check_branch
        %315 = sbr.rel (%p313) target = $region40
      $region39: #{sam_vision_encoder_forward.10} parent=11 // pred_region
        _
      $region40: #{sam_vision_encoder_forward.10} parent=11 // pred_fallthru
        _
      // Predicated region
      $region41: #{sam_vision_encoder_forward.10} parent=11 // pred_check
        %p316 = pneg %p252
      $region42: #{sam_vision_encoder_forward.10} parent=11 // pred_check_branch
        %318 = sbr.rel (%p316) target = $region44
      $region43: #{sam_vision_encoder_forward.10} parent=11 // pred_region
        _
      $region44: #{sam_vision_encoder_forward.10} parent=11 // pred_fallthru
        _
    $region12: #{sam_vision_encoder_forward.10} parent=5 // pred_fallthru
      _
    %p319 = scmp.lt.s32.totalorder %s16, 8
    // Predicated region
    $region45: #{sam_vision_encoder_forward.10} parent=5 // pred_check
      %p320 = pneg %p319
    $region46: #{sam_vision_encoder_forward.10} parent=5 // pred_check_branch
      %322 = sbr.rel (%p320) target = $region48
    $region47: #{sam_vision_encoder_forward.10} parent=5 // pred_region
      // Predicated region
      $region49: #{sam_vision_encoder_forward.10} parent=47 // pred_check
        %p323 = pneg %p50
      $region50: #{sam_vision_encoder_forward.10} parent=47 // pred_check_branch
        %325 = sbr.rel (%p323) target = $region52
      $region51: #{sam_vision_encoder_forward.10} parent=47 // pred_region
        %s326 = smul.u32 2, %s24
        %p327 = scmp.lt.s32.totalorder %s23, 1
        %s328 = scalar_select %p327, %s23, 1
        %p329 = scmp.lt.s32.totalorder %s326, 7
        %s330 = scalar_select %p329, %s326, 7
        %s331 = smul.addr %s328, 8
        %s332 = sadd.s32 %s330, %s331
        %s333 = smul.addr %s332, 8
        %s334 = scalar_lea.vmem %s0, %s333
        %s335 = smul.u32 2, %s24
      $region52: #{sam_vision_encoder_forward.10} parent=47 // pred_fallthru
        _
      // Predicated region
      $region53: #{sam_vision_encoder_forward.10} parent=47 // pred_check
        %p336 = pneg %p78
      $region54: #{sam_vision_encoder_forward.10} parent=47 // pred_check_branch
        %338 = sbr.rel (%p336) target = $region56
      $region55: #{sam_vision_encoder_forward.10} parent=47 // pred_region
        %s339 = smul.u32 2, %s24
        %p340 = scmp.lt.s32.totalorder %s23, 1
        %s341 = scalar_select %p340, %s23, 1
        %p342 = scmp.lt.s32.totalorder %s339, 7
        %s343 = scalar_select %p342, %s339, 7
        %s344 = smul.addr %s341, 8
        %s345 = sadd.s32 %s343, %s344
        %s346 = smul.addr %s345, 4
        %s347 = scalar_lea.vmem %s1, %s346
        %s348 = smul.u32 2, %s24
      $region56: #{sam_vision_encoder_forward.10} parent=47 // pred_fallthru
        _
    $region48: #{sam_vision_encoder_forward.10} parent=5 // pred_fallthru
      _
    %p349 = scmp.le.s32.totalorder 1, %s16
    %p350 = scmp.lt.s32.totalorder %s16, 9
    %p351 = pnand %p349, %p350
    %p352 = pneg %p351
    // Predicated region
    $region57: #{sam_vision_encoder_forward.10} parent=5 // pred_check
      _
    $region58: #{sam_vision_encoder_forward.10} parent=5 // pred_check_branch
      %354 = sbr.rel (%p351) target = $region60
    $region59: #{sam_vision_encoder_forward.10} parent=5 // pred_region
      %s355 = ssub.s32 %s16, 1
      %s356 = smul.u32 2, %s26
      %p357 = scmp.lt.s32.totalorder %s25, 1
      %s358 = scalar_select %p357, %s25, 1
      %p359 = scmp.lt.s32.totalorder %s356, 7
      %s360 = scalar_select %p359, %s356, 7
      %s361 = smul.addr %s358, 8
      %s362 = sadd.s32 %s360, %s361
      %s363 = smul.addr %s362, 8
      %s364 = scalar_lea.vmem %s0, %s363
      %p365 = pneg %p56
      %p366 = pneg %p53
      %s367 = smul.u32 2, %s26
      %p368 = scmp.lt.s32.totalorder %s25, 1
      %s369 = scalar_select %p368, %s25, 1
      %p370 = scmp.lt.s32.totalorder %s367, 7
      %s371 = scalar_select %p370, %s367, 7
      %s372 = smul.addr %s369, 8
      %s373 = sadd.s32 %s371, %s372
      %s374 = smul.addr %s373, 4
      %s375 = scalar_lea.vmem %s1, %s374
      %p376 = pneg %p84
      %p377 = pneg %p81
      %p378 = pneg %p105
      %p379 = pneg %p102
      %p380 = pneg %p126
      %p381 = pneg %p123
      %p382 = pneg %p147
      %p383 = pneg %p144
      %p384 = pneg %p168
      %p385 = pneg %p165
      %p386 = pneg %p189
      %p387 = pneg %p186
      %p388 = pneg %p210
      %p389 = pneg %p207
      %p390 = pneg %p231
      %p391 = pneg %p228
      %p392 = pneg %p252
      %p393 = pneg %p249
      %p394 = pneg %p280
      %p395 = pneg %p277
      %s396 = smul.u32 2, %s26
      %p397 = scmp.lt.s32.totalorder %s25, 1
      %s398 = scalar_select %p397, %s25, 1
      %p399 = scmp.lt.s32.totalorder %s396, 7
      %s400 = scalar_select %p399, %s396, 7
      %s401 = smul.addr %s398, 8
      %s402 = sadd.s32 %s400, %s401
      %s403 = smul.addr %s402, 8
      %s404 = scalar_lea.vmem %s10, %s403
      %s405 = smul.u32 2, %s26
      %p406 = scmp.lt.s32.totalorder %s25, 1
      %s407 = scalar_select %p406, %s25, 1
      %p408 = scmp.lt.s32.totalorder %s405, 7
      %s409 = scalar_select %p408, %s405, 7
      %s410 = smul.addr %s407, 8
      %s411 = sadd.s32 %s409, %s410
      %s412 = smul.addr %s411, 8
      %s413 = scalar_lea.vmem %s0, %s412
      %s414 = smul.u32 2, %s26
      %s415 = smul.u32 2, %s26
      %p416 = scmp.lt.s32.totalorder %s25, 1
      %s417 = scalar_select %p416, %s25, 1
      %p418 = scmp.lt.s32.totalorder %s415, 7
      %s419 = scalar_select %p418, %s415, 7
      %s420 = smul.addr %s417, 8
      %s421 = sadd.s32 %s419, %s420
      %s422 = smul.addr %s421, 4
      %s423 = scalar_lea.vmem %s1, %s422
      %s424 = smul.u32 2, %s26
      %s425 = smul.u32 2, %s26
      %p426 = scmp.lt.s32.totalorder %s25, 1
      %s427 = scalar_select %p426, %s25, 1
      %p428 = scmp.lt.s32.totalorder %s425, 7
      %s429 = scalar_select %p428, %s425, 7
      %s430 = smul.addr %s427, 8
      %s431 = sadd.s32 %s429, %s430
      %s432 = smul.addr %s431, 8
      %s433 = scalar_lea.vmem %s10, %s432
      %s434 = smul.u32 2, %s26
      %v436 = vld [vmem:[%s413] sm:$0xff]
      %v437 = vld [vmem:[%s413 + $0x8] sm:$0xff]
      %v438 = vld [vmem:[%s423] sm:$0xf]
      %v439 = vld [vmem:[%s423 + $0x4] sm:$0xf]
      %v440 = vld [vmem:[%s2] sm:$0xf]
      %v441 = vld [vmem:[%s2 + $0x4] sm:$0xf]
      %v442 = vld [vmem:[%s2 + $0x8] sm:$0xf]
      %v443 = vld [vmem:[%s2 + $0xc] sm:$0xf]
      %v446 = vunpack.c.l.b16 %v438
      %v447 = vunpack.c.l.b16 %v439
      %v448 = vpack.c.b16 %v447, %v446
      %v453 = vunpack.c.l.b16 %v440
      %v454 = vunpack.c.l.b16 %v441
      %v455 = vunpack.c.l.b16 %v442
      %v456 = vunpack.c.l.b16 %v443
      %v457 = vpack.c.b16 %v454, %v453
      %v458 = vpack.c.b16 %v456, %v455
      %vm461 = vcmask 261120
      %v463 = vsel %vm461, %v448, 0
      %465 = vmatprep.subr.bf16.mxu0 0
      %466 = vmatpush1.bf16.msra.mxu0 %v457
      %467 = vmatprep.subr.bf16.mxu0 0
      %468 = vmatpush1.bf16.msra.mxu0 %v458
      %469 = vmatprep.subr.bf16.mxu0 0
      %470 = vmatpush1.bf16.msra.mxu0 0
      %471 = vmatprep.subr.bf16.mxu0 0
      %472 = vmatpush1.bf16.msra.mxu0 0
      %473 = vmatprep.subr.bf16.mxu0 0
      %474 = vmatpush1.bf16.msra.mxu0 0
      %475 = vmatprep.subr.bf16.mxu0 0
      %476 = vmatpush1.bf16.msra.mxu0 0
      %477 = vmatprep.subr.bf16.mxu0 0
      %478 = vmatpush1.bf16.msra.mxu0 0
      %479 = vmatprep.subr.bf16.mxu0 0
      %480 = vmatpush1.bf16.msra.mxu0 0
      %481 = vmatprep.subr.bf16.mxu0 0
      %482 = vmatpush1.bf16.msra.mxu0 0
      %483 = vmatprep.subr.bf16.mxu0 0
      %484 = vmatpush1.bf16.msra.mxu0 0
      %485 = vmatprep.subr.bf16.mxu0 0
      %486 = vmatpush1.bf16.msra.mxu0 0
      %487 = vmatprep.subr.bf16.mxu0 0
      %488 = vmatpush1.bf16.msra.mxu0 0
      %489 = vmatprep.subr.bf16.mxu0 0
      %490 = vmatpush1.bf16.msra.mxu0 0
      %491 = vmatprep.subr.bf16.mxu0 0
      %492 = vmatpush1.bf16.msra.mxu0 0
      %493 = vmatprep.subr.bf16.mxu0 0
      %494 = vmatpush1.bf16.msra.mxu0 0
      %495 = vmatprep.subr.bf16.mxu0 0
      %496 = vmatpush1.bf16.msra.mxu0 0
      %497 = vmatprep.mubr.bf16.mxu0 0
      %498 = vmatmul.mubr.bf16.gmra.mrb[0].mxu0 %v463
      %v499 = vpop.f32.mrb[0].mxu0
      %v500 = vadd.f32 0.0, %v499
      %v501 = vpop.f32.mrb[0].mxu0
      %v502 = vpop.f32.mrb[0].mxu0
      %v503 = vadd.f32 0.0, %v502
      %v504 = vpop.f32.mrb[0].mxu0
      %505 = vdwg.mxu0
      %v506 = vadd.f32 %v436, %v500
      %v507 = vadd.f32 %v437, %v503
      %v508 = vld [vmem:[%s3] sm:$0x1]
      %v510 = vlaneseq
      %v511 = vshrl.u32 %v510, 7
      %v512 = vsub.s32 0, %v511
      %v513 = vrot.slane %v508, %v512
      %v515 = vadd.f32 %v506, %v513
      %v516 = vadd.f32 %v507, %v513
      %v517 = vld [vmem:[%s4] sm:$0x1]
      %v518 = vld [vmem:[%s5] sm:$0x1]
      %v519 = vsel %vm461, %v515, 0.0
      %520 = vadd.xlane.f32.xlu0 %v519
      %v521 = vpop.xlane.xlu0 %520
      %v522 = vsel %vm461, %v516, 0.0
      %523 = vadd.xlane.f32.xlu0 %v522
      %v524 = vpop.xlane.xlu0 %523
      %v525 = vrcp.pop 32.0
      %v526 = vmul.f32 %v521, %v525
      %v527 = vmul.f32 %v524, %v525
      %v528 = vmul.f32 %v515, %v515
      %v529 = vmul.f32 %v516, %v516
      %v530 = vsel %vm461, %v528, 0.0
      %531 = vadd.xlane.f32.xlu0 %v530
      %v532 = vpop.xlane.xlu0 %531
      %v533 = vsel %vm461, %v529, 0.0
      %534 = vadd.xlane.f32.xlu0 %v533
      %v535 = vpop.xlane.xlu0 %534
      %v536 = vmul.f32 %v532, %v525
      %v537 = vmul.f32 %v535, %v525
      %v538 = vmul.f32 %v526, %v526
      %v539 = vmul.f32 %v527, %v527
      %v540 = vsub.f32 %v536, %v538
      %v541 = vsub.f32 %v537, %v539
      %v542 = vmax.f32 %v540, 0.0
      %v543 = vmax.f32 %v541, 0.0
      %v544 = vsub.f32 %v515, %v526
      %v545 = vsub.f32 %v516, %v527
      %v546 = vadd.f32 %v542, 1e-06
      %v547 = vadd.f32 %v543, 1e-06
      %v548 = vrsqrt.pop %v546
      %v549 = vrsqrt.pop %v547
      %v550 = vmul.f32 %v544, %v548
      %v551 = vmul.f32 %v545, %v549
      %v553 = vlaneseq
      %v554 = vshrl.u32 %v553, 7
      %v555 = vsub.s32 0, %v554
      %v556 = vrot.slane %v517, %v555
      %v558 = vmul.f32 %v550, %v556
      %v559 = vmul.f32 %v551, %v556
      %v561 = vlaneseq
      %v562 = vshrl.u32 %v561, 7
      %v563 = vsub.s32 0, %v562
      %v564 = vrot.slane %v518, %v563
      %v566 = vadd.f32 %v558, %v564
      %v567 = vadd.f32 %v559, %v564
      %v568 = vpack.c.bf16 %v567, %v566
      %v569 = vld [vmem:[%s6] sm:$0xf]
      %v570 = vld [vmem:[%s6 + $0x4] sm:$0xf]
      %v571 = vld [vmem:[%s6 + $0x8] sm:$0xf]
      %v572 = vld [vmem:[%s6 + $0xc] sm:$0xf]
      %v573 = vld [vmem:[%s7] sm:$0x1]
      %v575 = vlaneseq
      %v576 = vshrl.u32 %v575, 7
      %v577 = vsub.s32 0, %v576
      %v578 = vrot.slane %v573, %v577
      %v584 = vunpack.c.l.b16 %v569
      %v585 = vunpack.c.l.b16 %v570
      %v586 = vunpack.c.l.b16 %v571
      %v587 = vunpack.c.l.b16 %v572
      %v588 = vpack.c.b16 %v585, %v584
      %v589 = vpack.c.b16 %v587, %v586
      %v593 = vsel %vm461, %v568, 0
      %595 = vmatprep.subr.bf16.mxu0 0
      %596 = vmatpush1.bf16.msra.mxu0 %v588
      %597 = vmatprep.subr.bf16.mxu0 0
      %598 = vmatpush1.bf16.msra.mxu0 %v589
      %599 = vmatprep.subr.bf16.mxu0 0
      %600 = vmatpush1.bf16.msra.mxu0 0
      %601 = vmatprep.subr.bf16.mxu0 0
      %602 = vmatpush1.bf16.msra.mxu0 0
      %603 = vmatprep.subr.bf16.mxu0 0
      %604 = vmatpush1.bf16.msra.mxu0 0
      %605 = vmatprep.subr.bf16.mxu0 0
      %606 = vmatpush1.bf16.msra.mxu0 0
      %607 = vmatprep.subr.bf16.mxu0 0
      %608 = vmatpush1.bf16.msra.mxu0 0
      %609 = vmatprep.subr.bf16.mxu0 0
      %610 = vmatpush1.bf16.msra.mxu0 0
      %611 = vmatprep.subr.bf16.mxu0 0
      %612 = vmatpush1.bf16.msra.mxu0 0
      %613 = vmatprep.subr.bf16.mxu0 0
      %614 = vmatpush1.bf16.msra.mxu0 0
      %615 = vmatprep.subr.bf16.mxu0 0
      %616 = vmatpush1.bf16.msra.mxu0 0
      %617 = vmatprep.subr.bf16.mxu0 0
      %618 = vmatpush1.bf16.msra.mxu0 0
      %619 = vmatprep.subr.bf16.mxu0 0
      %620 = vmatpush1.bf16.msra.mxu0 0
      %621 = vmatprep.subr.bf16.mxu0 0
      %622 = vmatpush1.bf16.msra.mxu0 0
      %623 = vmatprep.subr.bf16.mxu0 0
      %624 = vmatpush1.bf16.msra.mxu0 0
      %625 = vmatprep.subr.bf16.mxu0 0
      %626 = vmatpush1.bf16.msra.mxu0 0
      %627 = vmatprep.mubr.bf16.mxu0 0
      %628 = vmatmul.mubr.bf16.gmra.mrb[0].mxu0 %v593
      %v629 = vpop.f32.mrb[0].mxu0
      %v630 = vadd.f32 %v578, %v629
      %v631 = vpop.f32.mrb[0].mxu0
      %v632 = vpop.f32.mrb[0].mxu0
      %v633 = vadd.f32 %v578, %v632
      %v634 = vpop.f32.mrb[0].mxu0
      %635 = vdwg.mxu0
      %v636 = vmul.f32 %v630, 0.5
      %v637 = vmul.f32 %v633, 0.5
      %v638 = vmul.f32 %v630, 0.70710677
      %v639 = vmul.f32 %v633, 0.70710677
      %v640 = verf.f32.pop %v638
      %v641 = verf.f32.pop %v639
      %v642 = vadd.f32 %v640, 1.0
      %v643 = vadd.f32 %v641, 1.0
      %v644 = vmul.f32 %v636, %v642
      %v645 = vmul.f32 %v637, %v643
      %v646 = vpack.c.bf16 %v645, %v644
      %v647 = vld [vmem:[%s8] sm:$0xf]
      %v648 = vld [vmem:[%s8 + $0x4] sm:$0xf]
      %v649 = vld [vmem:[%s8 + $0x8] sm:$0xf]
      %v650 = vld [vmem:[%s8 + $0xc] sm:$0xf]
      %v651 = vld [vmem:[%s8 + $0x10] sm:$0xf]
      %v652 = vld [vmem:[%s8 + $0x14] sm:$0xf]
      %v653 = vld [vmem:[%s8 + $0x18] sm:$0xf]
      %v654 = vld [vmem:[%s8 + $0x1c] sm:$0xf]
      %v655 = vld [vmem:[%s8 + $0x20] sm:$0xf]
      %v656 = vld [vmem:[%s8 + $0x24] sm:$0xf]
      %v657 = vld [vmem:[%s8 + $0x28] sm:$0xf]
      %v658 = vld [vmem:[%s8 + $0x2c] sm:$0xf]
      %v659 = vld [vmem:[%s8 + $0x30] sm:$0xf]
      %v660 = vld [vmem:[%s8 + $0x34] sm:$0xf]
      %v661 = vld [vmem:[%s8 + $0x38] sm:$0xf]
      %v662 = vld [vmem:[%s8 + $0x3c] sm:$0xf]
      %v663 = vld [vmem:[%s9] sm:$0x1]
      %v665 = vlaneseq
      %v666 = vshrl.u32 %v665, 7
      %v667 = vsub.s32 0, %v666
      %v668 = vrot.slane %v663, %v667
      %v686 = vunpack.c.l.b16 %v647
      %v687 = vunpack.c.l.b16 %v648
      %v688 = vunpack.c.l.b16 %v649
      %v689 = vunpack.c.l.b16 %v650
      %v690 = vunpack.c.l.b16 %v651
      %v691 = vunpack.c.l.b16 %v652
      %v692 = vunpack.c.l.b16 %v653
      %v693 = vunpack.c.l.b16 %v654
      %v694 = vunpack.c.l.b16 %v655
      %v695 = vunpack.c.l.b16 %v656
      %v696 = vunpack.c.l.b16 %v657
      %v697 = vunpack.c.l.b16 %v658
      %v698 = vunpack.c.l.b16 %v659
      %v699 = vunpack.c.l.b16 %v660
      %v700 = vunpack.c.l.b16 %v661
      %v701 = vunpack.c.l.b16 %v662
      %v702 = vpack.c.b16 %v687, %v686
      %v703 = vpack.c.b16 %v689, %v688
      %v704 = vpack.c.b16 %v691, %v690
      %v705 = vpack.c.b16 %v693, %v692
      %v706 = vpack.c.b16 %v695, %v694
      %v707 = vpack.c.b16 %v697, %v696
      %v708 = vpack.c.b16 %v699, %v698
      %v709 = vpack.c.b16 %v701, %v700
      %718 = vmatprep.subr.bf16.mxu0 0
      %719 = vmatpush1.bf16.msra.mxu0 %v702
      %720 = vmatprep.subr.bf16.mxu0 0
      %721 = vmatpush1.bf16.msra.mxu0 %v703
      %722 = vmatprep.subr.bf16.mxu0 0
      %723 = vmatpush1.bf16.msra.mxu0 %v704
      %724 = vmatprep.subr.bf16.mxu0 0
      %725 = vmatpush1.bf16.msra.mxu0 %v705
      %726 = vmatprep.subr.bf16.mxu0 0
      %727 = vmatpush1.bf16.msra.mxu0 %v706
      %728 = vmatprep.subr.bf16.mxu0 0
      %729 = vmatpush1.bf16.msra.mxu0 %v707
      %730 = vmatprep.subr.bf16.mxu0 0
      %731 = vmatpush1.bf16.msra.mxu0 %v708
      %732 = vmatprep.subr.bf16.mxu0 0
      %733 = vmatpush1.bf16.msra.mxu0 %v709
      %734 = vmatprep.subr.bf16.mxu0 0
      %735 = vmatpush1.bf16.msra.mxu0 0
      %736 = vmatprep.subr.bf16.mxu0 0
      %737 = vmatpush1.bf16.msra.mxu0 0
      %738 = vmatprep.subr.bf16.mxu0 0
      %739 = vmatpush1.bf16.msra.mxu0 0
      %740 = vmatprep.subr.bf16.mxu0 0
      %741 = vmatpush1.bf16.msra.mxu0 0
      %742 = vmatprep.subr.bf16.mxu0 0
      %743 = vmatpush1.bf16.msra.mxu0 0
      %744 = vmatprep.subr.bf16.mxu0 0
      %745 = vmatpush1.bf16.msra.mxu0 0
      %746 = vmatprep.subr.bf16.mxu0 0
      %747 = vmatpush1.bf16.msra.mxu0 0
      %748 = vmatprep.subr.bf16.mxu0 0
      %749 = vmatpush1.bf16.msra.mxu0 0
      %750 = vmatprep.mubr.bf16.mxu0 0
      %751 = vmatmul.mubr.bf16.gmra.mrb[0].mxu0 %v646
      %v752 = vpop.f32.mrb[0].mxu0
      %v753 = vadd.f32 %v668, %v752
      %v754 = vpop.f32.mrb[0].mxu0
      %v755 = vpop.f32.mrb[0].mxu0
      %v756 = vadd.f32 %v668, %v755
      %v757 = vpop.f32.mrb[0].mxu0
      %758 = vdwg.mxu0
      %v759 = vadd.f32 %v515, %v753
      %v760 = vadd.f32 %v516, %v756
      %761 = vst.msk [vmem:[%s433] sm:$0xff] %vm461, %v759
      %762 = vst.msk [vmem:[%s433 + $0x8] sm:$0xff] %vm461, %v760
      %s763 = smul.u32 2, %s26
      %p764 = scmp.lt.s32.totalorder %s25, 1
      %s765 = scalar_select %p764, %s25, 1
      %p766 = scmp.lt.s32.totalorder %s763, 7
      %s767 = scalar_select %p766, %s763, 7
      %s768 = smul.addr %s765, 8
      %s769 = sadd.s32 %s767, %s768
      %s770 = smul.addr %s769, 8
      %s771 = scalar_lea.vmem %s10, %s770
      // Predicated region
      $region61: #{sam_vision_encoder_forward.10} parent=59 // pred_check
        %p772 = pneg %p277
      $region62: #{sam_vision_encoder_forward.10} parent=59 // pred_check_branch
        %774 = sbr.rel (%p772) target = $region64
      $region63: #{sam_vision_encoder_forward.10} parent=59 // pred_region
        %s775 = smul.u32 2, %s26
      $region64: #{sam_vision_encoder_forward.10} parent=59 // pred_fallthru
        _
    $region60: #{sam_vision_encoder_forward.10} parent=5 // pred_fallthru
      _
    %p776 = scmp.le.s32.totalorder 2, %s16
    // Predicated region
    $region65: #{sam_vision_encoder_forward.10} parent=5 // pred_check
      %p777 = pneg %p776
    $region66: #{sam_vision_encoder_forward.10} parent=5 // pred_check_branch
      %779 = sbr.rel (%p777) target = $region68
    $region67: #{sam_vision_encoder_forward.10} parent=5 // pred_region
      %s780 = ssub.s32 %s16, 2
      // Predicated region
      $region69: #{sam_vision_encoder_forward.10} parent=67 // pred_check
        %p781 = pneg %p283
      $region70: #{sam_vision_encoder_forward.10} parent=67 // pred_check_branch
        %783 = sbr.rel (%p781) target = $region72
      $region71: #{sam_vision_encoder_forward.10} parent=67 // pred_region
        %s784 = smul.u32 2, %s28
        %p785 = scmp.lt.s32.totalorder %s27, 1
        %s786 = scalar_select %p785, %s27, 1
        %p787 = scmp.lt.s32.totalorder %s784, 7
        %s788 = scalar_select %p787, %s784, 7
        %s789 = smul.addr %s786, 8
        %s790 = sadd.s32 %s788, %s789
        %s791 = smul.addr %s790, 8
        %s792 = scalar_lea.vmem %s10, %s791
      $region72: #{sam_vision_encoder_forward.10} parent=67 // pred_fallthru
        _
    $region68: #{sam_vision_encoder_forward.10} parent=5 // pred_fallthru
      _
  $region6: #{sam_vision_encoder_forward.10} parent=0 // loop_footer
    %s20 = sadd.s32 1, %s16
  $region7: #{sam_vision_encoder_forward.10} parent=0 // loop_footer_branch
    %15 = sbr.rel target = $region3
  $region8: #{sam_vision_encoder_forward.10} parent=0 // loop_exit
    _

// kernel: sam_vision_encoder_forward.7
$region0: #{sam_vision_encoder_forward.7}
  #allocation0 [shape = 'u32[]', space=smem, size = 0x4, offset = 0x4, fixed_abs, tag = 'smem constant byte address 0x4 - core index']
  #allocation1 [shape = 'u32[144,128]{1,0:T(1,128)}', space=vmem, size = 0x12000, scoped, tag = 'internal scratch']
  %s0 = inlined_call_operand.vmem [shape: f32[2,64,48], index: 0, kind: input, shape index: {}]
  %s1 = inlined_call_operand.vmem [shape: bf16[48,32], index: 1, kind: input, shape index: {}]
  %s2 = inlined_call_operand.vmem [shape: f32[1,32], index: 2, kind: input, shape index: {}]
  %s3 = inlined_call_operand.vmem [shape: f32[64,32], index: 3, kind: input, shape index: {}]
  %s4 = inlined_call_operand.vmem [shape: f32[2,64,32], index: 4, kind: output, shape index: {}]
  %s5 = sld [smem:[#allocation0]]
  $region49: #{sam_vision_encoder_forward.7} parent=0
    _
  %s7 = ssub.s32 1, %s5
  %s8 = scalar_select 0, %s7, %s5
  loop: start=0, step=1, limit=10
  $region2: #{sam_vision_encoder_forward.7} parent=0 // loop_pre_header
    _
  $region3: #{sam_vision_encoder_forward.7} parent=0 // loop_header
    %s10 = sphi 0, %s14
    %p11 = scmp.ge.s32.totalorder %s10, 10
    %s17 = sphi 0, %s29
    %s18 = sphi 0, %s25
    %s19 = sphi 0, %s17
    %s20 = sphi 0, %s18
    %s21 = sphi 0, %s19
    %s22 = sphi 0, %s20
    %s34 = sphi 0, %s36
    %s37 = sphi 0, %s34
    %s38 = sphi 0, %s37
    %s54 = sphi 0, %s38
    %s58 = sphi 0, %s58
    %s60 = sphi 0, %s58
    %s61 = sphi 0, %s60
    %s75 = sphi 0, %s61
    %s79 = sphi 0, %s79
    %s81 = sphi 0, %s79
    %s82 = sphi 0, %s81
    %s96 = sphi 0, %s82
    %s102 = sphi 0, %s104
    %s105 = sphi 0, %s102
    %s106 = sphi 0, %s105
    %s122 = sphi 0, %s106
    %s130 = sphi 0, %s132
    %s133 = sphi 0, %s130
    %s134 = sphi 0, %s133
    %s150 = sphi 0, %s134
  $region4: #{sam_vision_encoder_forward.7} parent=0 // loop_header_branch
    %13 = sbr.rel (%p11) target = $region8
  $region5: #{sam_vision_encoder_forward.7} parent=0 // loop_body
    %s15 = ssub.s32 %s10, 1
    %s16 = ssub.s32 %s10, 2
    %s23 = sadd.s32 1, %s18
    %p24 = scmp.ge.s32.totalorder %s23, 4
    %s25 = scalar_select %p24, 0, %s23
    %s26 = sadd.s32 1, %s17
    %s27 = scalar_select %p24, %s26, %s17
    %p28 = scmp.ge.s32.totalorder %s27, 2
    %s29 = scalar_select %p28, 0, %s27
    %s30 = ssub.s32 %s17, %s29
    %s31 = ssub.s32 %s18, %s25
    %s32 = sor.u32 %s30, %s31
    %p33 = scmp.eq.s32.totalorder %s32, 0
    %s35 = sadd.s32 %s34, 1
    %s36 = scalar_select %p33, %s34, %s35
    %p39 = pneg %p33
    %p40 = scmp.eq.s32.totalorder %s10, 7
    %p41 = por %p39, %p40
    %p42 = scmp.ne.s32.totalorder %s34, %s37
    %p43 = scmp.eq.s32.totalorder %s10, 0
    %p44 = por %p42, %p43
    %p45 = scmp.ne.s32.totalorder %s34, %s37
    %p46 = scmp.eq.s32.totalorder %s15, 7
    %p47 = por %p45, %p46
    %p48 = scmp.ne.s32.totalorder %s37, %s38
    %p49 = scmp.eq.s32.totalorder %s15, 0
    %p50 = por %p48, %p49
    %p51 = scmp.ne.s32.totalorder %s37, %s38
    %p52 = scmp.eq.s32.totalorder %s16, 7
    %p53 = por %p51, %p52
    %p55 = scmp.ne.s32.totalorder %s38, %s54
    %p56 = scmp.eq.s32.totalorder %s16, 0
    %p57 = por %p55, %p56
    %s59 = sadd.s32 %s58, 1
    %p62 = scmp.eq.s32.totalorder %s10, 7
    %p63 = scmp.ne.s32.totalorder %s58, %s60
    %p64 = scmp.eq.s32.totalorder %s10, 0
    %p65 = por %p63, %p64
    %p66 = scmp.ne.s32.totalorder %s58, %s60
    %p67 = scmp.eq.s32.totalorder %s15, 7
    %p68 = por %p66, %p67
    %p69 = scmp.ne.s32.totalorder %s60, %s61
    %p70 = scmp.eq.s32.totalorder %s15, 0
    %p71 = por %p69, %p70
    %p72 = scmp.ne.s32.totalorder %s60, %s61
    %p73 = scmp.eq.s32.totalorder %s16, 7
    %p74 = por %p72, %p73
    %p76 = scmp.ne.s32.totalorder %s61, %s75
    %p77 = scmp.eq.s32.totalorder %s16, 0
    %p78 = por %p76, %p77
    %s80 = sadd.s32 %s79, 1
    %p83 = scmp.eq.s32.totalorder %s10, 7
    %p84 = scmp.ne.s32.totalorder %s79, %s81
    %p85 = scmp.eq.s32.totalorder %s10, 0
    %p86 = por %p84, %p85
    %p87 = scmp.ne.s32.totalorder %s79, %s81
    %p88 = scmp.eq.s32.totalorder %s15, 7
    %p89 = por %p87, %p88
    %p90 = scmp.ne.s32.totalorder %s81, %s82
    %p91 = scmp.eq.s32.totalorder %s15, 0
    %p92 = por %p90, %p91
    %p93 = scmp.ne.s32.totalorder %s81, %s82
    %p94 = scmp.eq.s32.totalorder %s16, 7
    %p95 = por %p93, %p94
    %p97 = scmp.ne.s32.totalorder %s82, %s96
    %p98 = scmp.eq.s32.totalorder %s16, 0
    %p99 = por %p97, %p98
    %s100 = ssub.s32 %s18, %s25
    %p101 = scmp.eq.s32.totalorder %s100, 0
    %s103 = sadd.s32 %s102, 1
    %s104 = scalar_select %p101, %s102, %s103
    %p107 = pneg %p101
    %p108 = scmp.eq.s32.totalorder %s10, 7
    %p109 = por %p107, %p108
    %p110 = scmp.ne.s32.totalorder %s102, %s105
    %p111 = scmp.eq.s32.totalorder %s10, 0
    %p112 = por %p110, %p111
    %p113 = scmp.ne.s32.totalorder %s102, %s105
    %p114 = scmp.eq.s32.totalorder %s15, 7
    %p115 = por %p113, %p114
    %p116 = scmp.ne.s32.totalorder %s105, %s106
    %p117 = scmp.eq.s32.totalorder %s15, 0
    %p118 = por %p116, %p117
    %p119 = scmp.ne.s32.totalorder %s105, %s106
    %p120 = scmp.eq.s32.totalorder %s16, 7
    %p121 = por %p119, %p120
    %p123 = scmp.ne.s32.totalorder %s106, %s122
    %p124 = scmp.eq.s32.totalorder %s16, 0
    %p125 = por %p123, %p124
    %s126 = ssub.s32 %s17, %s29
    %s127 = ssub.s32 %s18, %s25
    %s128 = sor.u32 %s126, %s127
    %p129 = scmp.eq.s32.totalorder %s128, 0
    %s131 = sadd.s32 %s130, 1
    %s132 = scalar_select %p129, %s130, %s131
    %p135 = pneg %p129
    %p136 = scmp.eq.s32.totalorder %s10, 7
    %p137 = por %p135, %p136
    %p138 = scmp.ne.s32.totalorder %s130, %s133
    %p139 = scmp.eq.s32.totalorder %s10, 0
    %p140 = por %p138, %p139
    %p141 = scmp.ne.s32.totalorder %s130, %s133
    %p142 = scmp.eq.s32.totalorder %s15, 7
    %p143 = por %p141, %p142
    %p144 = scmp.ne.s32.totalorder %s133, %s134
    %p145 = scmp.eq.s32.totalorder %s15, 0
    %p146 = por %p144, %p145
    %p147 = scmp.ne.s32.totalorder %s133, %s134
    %p148 = scmp.eq.s32.totalorder %s16, 7
    %p149 = por %p147, %p148
    %p151 = scmp.ne.s32.totalorder %s134, %s150
    %p152 = scmp.eq.s32.totalorder %s16, 0
    %p153 = por %p151, %p152
    %p154 = scmp.le.s32.totalorder 1, %s10
    %p155 = scmp.lt.s32.totalorder %s10, 9
    %p156 = pnand %p154, %p155
    %p157 = pneg %p156
    // Predicated region
    $region9: #{sam_vision_encoder_forward.7} parent=5 // pred_check
      _
    $region10: #{sam_vision_encoder_forward.7} parent=5 // pred_check_branch
      %159 = sbr.rel (%p156) target = $region12
    $region11: #{sam_vision_encoder_forward.7} parent=5 // pred_region
      %s160 = ssub.s32 %s10, 1
      // Predicated region
      $region13: #{sam_vision_encoder_forward.7} parent=11 // pred_check
        %p161 = pneg %p71
      $region14: #{sam_vision_encoder_forward.7} parent=11 // pred_check_branch
        %163 = sbr.rel (%p161) target = $region16
      $region15: #{sam_vision_encoder_forward.7} parent=11 // pred_region
        _
      $region16: #{sam_vision_encoder_forward.7} parent=11 // pred_fallthru
        _
      // Predicated region
      $region17: #{sam_vision_encoder_forward.7} parent=11 // pred_check
        %p164 = pneg %p92
      $region18: #{sam_vision_encoder_forward.7} parent=11 // pred_check_branch
        %166 = sbr.rel (%p164) target = $region20
      $region19: #{sam_vision_encoder_forward.7} parent=11 // pred_region
        _
      $region20: #{sam_vision_encoder_forward.7} parent=11 // pred_fallthru
        _
    $region12: #{sam_vision_encoder_forward.7} parent=5 // pred_fallthru
      _
    %p167 = scmp.lt.s32.totalorder %s10, 8
    // Predicated region
    $region21: #{sam_vision_encoder_forward.7} parent=5 // pred_check
      %p168 = pneg %p167
    $region22: #{sam_vision_encoder_forward.7} parent=5 // pred_check_branch
      %170 = sbr.rel (%p168) target = $region24
    $region23: #{sam_vision_encoder_forward.7} parent=5 // pred_region
      // Predicated region
      $region25: #{sam_vision_encoder_forward.7} parent=23 // pred_check
        %p171 = pneg %p44
      $region26: #{sam_vision_encoder_forward.7} parent=23 // pred_check_branch
        %173 = sbr.rel (%p171) target = $region28
      $region27: #{sam_vision_encoder_forward.7} parent=23 // pred_region
        %s174 = smul.u32 2, %s18
        %p175 = scmp.lt.s32.totalorder %s17, 1
        %s176 = scalar_select %p175, %s17, 1
        %p177 = scmp.lt.s32.totalorder %s174, 7
        %s178 = scalar_select %p177, %s174, 7
        %s179 = smul.addr %s176, 8
        %s180 = sadd.s32 %s178, %s179
        %s181 = smul.addr %s180, 8
        %s182 = scalar_lea.vmem %s0, %s181
        %s183 = smul.u32 2, %s18
      $region28: #{sam_vision_encoder_forward.7} parent=23 // pred_fallthru
        _
      // Predicated region
      $region29: #{sam_vision_encoder_forward.7} parent=23 // pred_check
        %p184 = pneg %p112
      $region30: #{sam_vision_encoder_forward.7} parent=23 // pred_check_branch
        %186 = sbr.rel (%p184) target = $region32
      $region31: #{sam_vision_encoder_forward.7} parent=23 // pred_region
        %s187 = smul.u32 2, %s18
        %p188 = scmp.lt.s32.totalorder %s187, 7
        %s189 = scalar_select %p188, %s187, 7
        %s190 = smul.addr %s189, 8
        %s191 = scalar_lea.vmem %s3, %s190
        %s192 = smul.u32 2, %s18
      $region32: #{sam_vision_encoder_forward.7} parent=23 // pred_fallthru
        _
    $region24: #{sam_vision_encoder_forward.7} parent=5 // pred_fallthru
      _
    %p193 = scmp.le.s32.totalorder 1, %s10
    %p194 = scmp.lt.s32.totalorder %s10, 9
    %p195 = pnand %p193, %p194
    %p196 = pneg %p195
    // Predicated region
    $region33: #{sam_vision_encoder_forward.7} parent=5 // pred_check
      _
    $region34: #{sam_vision_encoder_forward.7} parent=5 // pred_check_branch
      %198 = sbr.rel (%p195) target = $region36
    $region35: #{sam_vision_encoder_forward.7} parent=5 // pred_region
      %s199 = ssub.s32 %s10, 1
      %s200 = smul.u32 2, %s20
      %p201 = scmp.lt.s32.totalorder %s19, 1
      %s202 = scalar_select %p201, %s19, 1
      %p203 = scmp.lt.s32.totalorder %s200, 7
      %s204 = scalar_select %p203, %s200, 7
      %s205 = smul.addr %s202, 8
      %s206 = sadd.s32 %s204, %s205
      %s207 = smul.addr %s206, 8
      %s208 = scalar_lea.vmem %s0, %s207
      %p209 = pneg %p50
      %p210 = pneg %p47
      %p211 = pneg %p71
      %p212 = pneg %p68
      %p213 = pneg %p92
      %p214 = pneg %p89
      %s215 = smul.u32 2, %s20
      %p216 = scmp.lt.s32.totalorder %s215, 7
      %s217 = scalar_select %p216, %s215, 7
      %s218 = smul.addr %s217, 8
      %s219 = scalar_lea.vmem %s3, %s218
      %p220 = pneg %p118
      %p221 = pneg %p115
      %p222 = pneg %p146
      %p223 = pneg %p143
      %s224 = smul.u32 2, %s20
      %p225 = scmp.lt.s32.totalorder %s19, 1
      %s226 = scalar_select %p225, %s19, 1
      %p227 = scmp.lt.s32.totalorder %s224, 7
      %s228 = scalar_select %p227, %s224, 7
      %s229 = smul.addr %s226, 8
      %s230 = sadd.s32 %s228, %s229
      %s231 = smul.addr %s230, 8
      %s232 = scalar_lea.vmem %s4, %s231
      %s233 = smul.u32 2, %s20
      %p234 = scmp.lt.s32.totalorder %s19, 1
      %s235 = scalar_select %p234, %s19, 1
      %p236 = scmp.lt.s32.totalorder %s233, 7
      %s237 = scalar_select %p236, %s233, 7
      %s238 = smul.addr %s235, 8
      %s239 = sadd.s32 %s237, %s238
      %s240 = smul.addr %s239, 8
      %s241 = scalar_lea.vmem %s0, %s240
      %s242 = smul.u32 2, %s20
      %s243 = smul.u32 2, %s20
      %p244 = scmp.lt.s32.totalorder %s243, 7
      %s245 = scalar_select %p244, %s243, 7
      %s246 = smul.addr %s245, 8
      %s247 = scalar_lea.vmem %s3, %s246
      %s248 = smul.u32 2, %s20
      %s249 = smul.u32 2, %s20
      %p250 = scmp.lt.s32.totalorder %s19, 1
      %s251 = scalar_select %p250, %s19, 1
      %p252 = scmp.lt.s32.totalorder %s249, 7
      %s253 = scalar_select %p252, %s249, 7
      %s254 = smul.addr %s251, 8
      %s255 = sadd.s32 %s253, %s254
      %s256 = smul.addr %s255, 8
      %s257 = scalar_lea.vmem %s4, %s256
      %s258 = smul.u32 2, %s20
      %v260 = vld [vmem:[%s241] sm:$0xff]
      %v261 = vld [vmem:[%s241 + $0x8] sm:$0xff]
      %v262 = vpack.c.bf16 %v261, %v260
      %v263 = vld [vmem:[%s1] sm:$0xf]
      %v264 = vld [vmem:[%s1 + $0x4] sm:$0xf]
      %v265 = vld [vmem:[%s1 + $0x8] sm:$0xf]
      %v266 = vld [vmem:[%s1 + $0xc] sm:$0xf]
      %v267 = vld [vmem:[%s1 + $0x10] sm:$0xf]
      %v268 = vld [vmem:[%s1 + $0x14] sm:$0xf]
      %v269 = vld [vmem:[%s2] sm:$0x1]
      %v271 = vlaneseq
      %v272 = vshrl.u32 %v271, 7
      %v273 = vsub.s32 0, %v272
      %v274 = vrot.slane %v269, %v273
      %v282 = vunpack.c.l.b16 %v263
      %v283 = vunpack.c.l.b16 %v264
      %v284 = vunpack.c.l.b16 %v265
      %v285 = vunpack.c.l.b16 %v266
      %v286 = vunpack.c.l.b16 %v267
      %v287 = vunpack.c.l.b16 %v268
      %v288 = vpack.c.b16 %v283, %v282
      %v289 = vpack.c.b16 %v285, %v284
      %v290 = vpack.c.b16 %v287, %v286
      %vm294 = vcmask 392192
      %v296 = vsel %vm294, %v262, 0
      %298 = vmatprep.subr.bf16.mxu0 0
      %299 = vmatpush1.bf16.msra.mxu0 %v288
      %300 = vmatprep.subr.bf16.mxu0 0
      %301 = vmatpush1.bf16.msra.mxu0 %v289
      %302 = vmatprep.subr.bf16.mxu0 0
      %303 = vmatpush1.bf16.msra.mxu0 %v290
      %304 = vmatprep.subr.bf16.mxu0 0
      %305 = vmatpush1.bf16.msra.mxu0 0
      %306 = vmatprep.subr.bf16.mxu0 0
      %307 = vmatpush1.bf16.msra.mxu0 0
      %308 = vmatprep.subr.bf16.mxu0 0
      %309 = vmatpush1.bf16.msra.mxu0 0
      %310 = vmatprep.subr.bf16.mxu0 0
      %311 = vmatpush1.bf16.msra.mxu0 0
      %312 = vmatprep.subr.bf16.mxu0 0
      %313 = vmatpush1.bf16.msra.mxu0 0
      %314 = vmatprep.subr.bf16.mxu0 0
      %315 = vmatpush1.bf16.msra.mxu0 0
      %316 = vmatprep.subr.bf16.mxu0 0
      %317 = vmatpush1.bf16.msra.mxu0 0
      %318 = vmatprep.subr.bf16.mxu0 0
      %319 = vmatpush1.bf16.msra.mxu0 0
      %320 = vmatprep.subr.bf16.mxu0 0
      %321 = vmatpush1.bf16.msra.mxu0 0
      %322 = vmatprep.subr.bf16.mxu0 0
      %323 = vmatpush1.bf16.msra.mxu0 0
      %324 = vmatprep.subr.bf16.mxu0 0
      %325 = vmatpush1.bf16.msra.mxu0 0
      %326 = vmatprep.subr.bf16.mxu0 0
      %327 = vmatpush1.bf16.msra.mxu0 0
      %328 = vmatprep.subr.bf16.mxu0 0
      %329 = vmatpush1.bf16.msra.mxu0 0
      %330 = vmatprep.mubr.bf16.mxu0 0
      %331 = vmatmul.mubr.bf16.gmra.mrb[0].mxu0 %v296
      %v332 = vpop.f32.mrb[0].mxu0
      %v333 = vadd.f32 %v274, %v332
      %v334 = vpop.f32.mrb[0].mxu0
      %v335 = vpop.f32.mrb[0].mxu0
      %v336 = vadd.f32 %v274, %v335
      %v337 = vpop.f32.mrb[0].mxu0
      %338 = vdwg.mxu0
      %v339 = vld [vmem:[%s247] sm:$0xff]
      %v340 = vld [vmem:[%s247 + $0x8] sm:$0xff]
      %v341 = vadd.f32 %v333, %v339
      %v342 = vadd.f32 %v336, %v340
      %vm343 = vcmask 261120
      %344 = vst.msk [vmem:[%s257] sm:$0xff] %vm343, %v341
      %345 = vst.msk [vmem:[%s257 + $0x8] sm:$0xff] %vm343, %v342
      %s346 = smul.u32 2, %s20
      %p347 = scmp.lt.s32.totalorder %s19, 1
      %s348 = scalar_select %p347, %s19, 1
      %p349 = scmp.lt.s32.totalorder %s346, 7
      %s350 = scalar_select %p349, %s346, 7
      %s351 = smul.addr %s348, 8
      %s352 = sadd.s32 %s350, %s351
      %s353 = smul.addr %s352, 8
      %s354 = scalar_lea.vmem %s4, %s353
      // Predicated region
      $region37: #{sam_vision_encoder_forward.7} parent=35 // pred_check
        %p355 = pneg %p143
      $region38: #{sam_vision_encoder_forward.7} parent=35 // pred_check_branch
        %357 = sbr.rel (%p355) target = $region40
      $region39: #{sam_vision_encoder_forward.7} parent=35 // pred_region
        %s358 = smul.u32 2, %s20
      $region40: #{sam_vision_encoder_forward.7} parent=35 // pred_fallthru
        _
    $region36: #{sam_vision_encoder_forward.7} parent=5 // pred_fallthru
      _
    %p359 = scmp.le.s32.totalorder 2, %s10
    // Predicated region
    $region41: #{sam_vision_encoder_forward.7} parent=5 // pred_check
      %p360 = pneg %p359
    $region42: #{sam_vision_encoder_forward.7} parent=5 // pred_check_branch
      %362 = sbr.rel (%p360) target = $region44
    $region43: #{sam_vision_encoder_forward.7} parent=5 // pred_region
      %s363 = ssub.s32 %s10, 2
      // Predicated region
      $region45: #{sam_vision_encoder_forward.7} parent=43 // pred_check
        %p364 = pneg %p149
      $region46: #{sam_vision_encoder_forward.7} parent=43 // pred_check_branch
        %366 = sbr.rel (%p364) target = $region48
      $region47: #{sam_vision_encoder_forward.7} parent=43 // pred_region
        %s367 = smul.u32 2, %s22
        %p368 = scmp.lt.s32.totalorder %s21, 1
        %s369 = scalar_select %p368, %s21, 1
        %p370 = scmp.lt.s32.totalorder %s367, 7
        %s371 = scalar_select %p370, %s367, 7
        %s372 = smul.addr %s369, 8
        %s373 = sadd.s32 %s371, %s372
        %s374 = smul.addr %s373, 8
        %s375 = scalar_lea.vmem %s4, %s374
      $region48: #{sam_vision_encoder_forward.7} parent=43 // pred_fallthru
        _
    $region44: #{sam_vision_encoder_forward.7} parent=5 // pred_fallthru
      _
  $region6: #{sam_vision_encoder_forward.7} parent=0 // loop_footer
    %s14 = sadd.s32 1, %s10
  $region7: #{sam_vision_encoder_forward.7} parent=0 // loop_footer_branch
    %9 = sbr.rel target = $region3
  $region8: #{sam_vision_encoder_forward.7} parent=0 // loop_exit
    _

// kernel: sam_vision_encoder_forward.9
$region0: #{sam_vision_encoder_forward.9}
  #allocation0 [shape = 'u32[]', space=smem, size = 0x4, offset = 0x4, fixed_abs, tag = 'smem constant byte address 0x4 - core index']
  #allocation1 [shape = 'u32[144,128]{1,0:T(1,128)}', space=vmem, size = 0x12000, scoped, tag = 'internal scratch']
  #allocation2 [shape = 'f32[2,16,1]{2,1,0:T(8,128)}', space=vmem, size = 0x4000, scoped, tag = 'scratch operand']
  #allocation3 [shape = 'f32[2,16,1]{2,1,0:T(8,128)}', space=vmem, size = 0x4000, scoped, tag = 'scratch operand']
  #allocation4 [shape = 'f32[2,16,16]{2,1,0:T(8,128)}', space=vmem, size = 0x4000, scoped, tag = 'scratch operand']
  %s0 = inlined_call_operand.vmem [shape: bf16[2,2,64,16], index: 0, kind: input, shape index: {}]
  %s1 = inlined_call_operand.vmem [shape: bf16[2,2,64,16], index: 1, kind: input, shape index: {}]
  %s2 = inlined_call_operand.vmem [shape: bf16[2,2,64,16], index: 2, kind: input, shape index: {}]
  %s3 = inlined_call_operand.vmem [shape: bf16[2,64,32], index: 3, kind: output, shape index: {}]
  %s4 = sld [smem:[#allocation0]]
  $region176: #{sam_vision_encoder_forward.9} parent=0
    _
  %s6 = ssub.s32 1, %s4
  %s7 = scalar_select 0, %s6, %s4
  $region1: #{sam_vision_encoder_forward.9} parent=0
    #allocation5 [shape = 'u8[16384]{0}', space=vmem, size = 0x4000, scoped, tag = 'input window, operand 0']
    #allocation6 [shape = 'u8[16384]{0}', space=vmem, size = 0x4000, scoped, tag = 'input window, operand 1']
    #allocation7 [shape = 'u8[16384]{0}', space=vmem, size = 0x4000, scoped, tag = 'input window, operand 2']
    loop: start=0, step=1, limit=34
    $region2: #{sam_vision_encoder_forward.9} parent=1 // loop_pre_header
      _
    $region3: #{sam_vision_encoder_forward.9} parent=1 // loop_header
      %s9 = sphi 0, %s13
      %p10 = scmp.ge.s32.totalorder %s9, 34
      %s16 = sphi 0, %s35
      %s17 = sphi 0, %s31
      %s18 = sphi 0, %s27
      %s19 = sphi 0, %s16
      %s20 = sphi 0, %s17
      %s21 = sphi 0, %s18
      %s22 = sphi 0, %s19
      %s23 = sphi 0, %s20
      %s24 = sphi 0, %s21
      %s40 = sphi 0, %s42
      %s43 = sphi 0, %s40
      %s44 = sphi 0, %s43
      %s60 = sphi 0, %s44
      %s68 = sphi 0, %s70
      %s71 = sphi 0, %s68
      %s72 = sphi 0, %s71
      %s88 = sphi 0, %s72
      %s96 = sphi 0, %s98
      %s99 = sphi 0, %s96
      %s100 = sphi 0, %s99
      %s116 = sphi 0, %s100
      %s124 = sphi 0, %s126
      %s127 = sphi 0, %s124
      %s128 = sphi 0, %s127
      %s144 = sphi 0, %s128
    $region4: #{sam_vision_encoder_forward.9} parent=1 // loop_header_branch
      %12 = sbr.rel (%p10) target = $region8
    $region5: #{sam_vision_encoder_forward.9} parent=1 // loop_body
      %s14 = ssub.s32 %s9, 1
      %s15 = ssub.s32 %s9, 2
      %s25 = sadd.s32 1, %s18
      %p26 = scmp.ge.s32.totalorder %s25, 4
      %s27 = scalar_select %p26, 0, %s25
      %s28 = sadd.s32 1, %s17
      %s29 = scalar_select %p26, %s28, %s17
      %p30 = scmp.ge.s32.totalorder %s29, 4
      %s31 = scalar_select %p30, 0, %s29
      %s32 = sadd.s32 1, %s16
      %s33 = scalar_select %p30, %s32, %s16
      %p34 = scmp.ge.s32.totalorder %s33, 2
      %s35 = scalar_select %p34, 0, %s33
      %s36 = ssub.s32 %s16, %s35
      %s37 = ssub.s32 %s17, %s31
      %s38 = sor.u32 %s36, %s37
      %p39 = scmp.eq.s32.totalorder %s38, 0
      %s41 = sadd.s32 %s40, 1
      %s42 = scalar_select %p39, %s40, %s41
      %p45 = pneg %p39
      %p46 = scmp.eq.s32.totalorder %s9, 31
      %p47 = por %p45, %p46
      %p48 = scmp.ne.s32.totalorder %s40, %s43
      %p49 = scmp.eq.s32.totalorder %s9, 0
      %p50 = por %p48, %p49
      %p51 = scmp.ne.s32.totalorder %s40, %s43
      %p52 = scmp.eq.s32.totalorder %s14, 31
      %p53 = por %p51, %p52
      %p54 = scmp.ne.s32.totalorder %s43, %s44
      %p55 = scmp.eq.s32.totalorder %s14, 0
      %p56 = por %p54, %p55
      %p57 = scmp.ne.s32.totalorder %s43, %s44
      %p58 = scmp.eq.s32.totalorder %s15, 31
      %p59 = por %p57, %p58
      %p61 = scmp.ne.s32.totalorder %s44, %s60
      %p62 = scmp.eq.s32.totalorder %s15, 0
      %p63 = por %p61, %p62
      %s64 = ssub.s32 %s16, %s35
      %s65 = ssub.s32 %s18, %s27
      %s66 = sor.u32 %s64, %s65
      %p67 = scmp.eq.s32.totalorder %s66, 0
      %s69 = sadd.s32 %s68, 1
      %s70 = scalar_select %p67, %s68, %s69
      %p73 = pneg %p67
      %p74 = scmp.eq.s32.totalorder %s9, 31
      %p75 = por %p73, %p74
      %p76 = scmp.ne.s32.totalorder %s68, %s71
      %p77 = scmp.eq.s32.totalorder %s9, 0
      %p78 = por %p76, %p77
      %p79 = scmp.ne.s32.totalorder %s68, %s71
      %p80 = scmp.eq.s32.totalorder %s14, 31
      %p81 = por %p79, %p80
      %p82 = scmp.ne.s32.totalorder %s71, %s72
      %p83 = scmp.eq.s32.totalorder %s14, 0
      %p84 = por %p82, %p83
      %p85 = scmp.ne.s32.totalorder %s71, %s72
      %p86 = scmp.eq.s32.totalorder %s15, 31
      %p87 = por %p85, %p86
      %p89 = scmp.ne.s32.totalorder %s72, %s88
      %p90 = scmp.eq.s32.totalorder %s15, 0
      %p91 = por %p89, %p90
      %s92 = ssub.s32 %s16, %s35
      %s93 = ssub.s32 %s18, %s27
      %s94 = sor.u32 %s92, %s93
      %p95 = scmp.eq.s32.totalorder %s94, 0
      %s97 = sadd.s32 %s96, 1
      %s98 = scalar_select %p95, %s96, %s97
      %p101 = pneg %p95
      %p102 = scmp.eq.s32.totalorder %s9, 31
      %p103 = por %p101, %p102
      %p104 = scmp.ne.s32.totalorder %s96, %s99
      %p105 = scmp.eq.s32.totalorder %s9, 0
      %p106 = por %p104, %p105
      %p107 = scmp.ne.s32.totalorder %s96, %s99
      %p108 = scmp.eq.s32.totalorder %s14, 31
      %p109 = por %p107, %p108
      %p110 = scmp.ne.s32.totalorder %s99, %s100
      %p111 = scmp.eq.s32.totalorder %s14, 0
      %p112 = por %p110, %p111
      %p113 = scmp.ne.s32.totalorder %s99, %s100
      %p114 = scmp.eq.s32.totalorder %s15, 31
      %p115 = por %p113, %p114
      %p117 = scmp.ne.s32.totalorder %s100, %s116
      %p118 = scmp.eq.s32.totalorder %s15, 0
      %p119 = por %p117, %p118
      %s120 = ssub.s32 %s16, %s35
      %s121 = ssub.s32 %s17, %s31
      %s122 = sor.u32 %s120, %s121
      %p123 = scmp.eq.s32.totalorder %s122, 0
      %s125 = sadd.s32 %s124, 1
      %s126 = scalar_select %p123, %s124, %s125
      %p129 = pneg %p123
      %p130 = scmp.eq.s32.totalorder %s9, 31
      %p131 = por %p129, %p130
      %p132 = scmp.ne.s32.totalorder %s124, %s127
      %p133 = scmp.eq.s32.totalorder %s9, 0
      %p134 = por %p132, %p133
      %p135 = scmp.ne.s32.totalorder %s124, %s127
      %p136 = scmp.eq.s32.totalorder %s14, 31
      %p137 = por %p135, %p136
      %p138 = scmp.ne.s32.totalorder %s127, %s128
      %p139 = scmp.eq.s32.totalorder %s14, 0
      %p140 = por %p138, %p139
      %p141 = scmp.ne.s32.totalorder %s127, %s128
      %p142 = scmp.eq.s32.totalorder %s15, 31
      %p143 = por %p141, %p142
      %p145 = scmp.ne.s32.totalorder %s128, %s144
      %p146 = scmp.eq.s32.totalorder %s15, 0
      %p147 = por %p145, %p146
      %p148 = scmp.le.s32.totalorder 1, %s9
      %p149 = scmp.lt.s32.totalorder %s9, 33
      %p150 = pnand %p148, %p149
      %p151 = pneg %p150
      // Predicated region
      $region9: #{sam_vision_encoder_forward.9} parent=5 // pred_check
        _
      $region10: #{sam_vision_encoder_forward.9} parent=5 // pred_check_branch
        %153 = sbr.rel (%p150) target = $region12
      $region11: #{sam_vision_encoder_forward.9} parent=5 // pred_region
        %s154 = ssub.s32 %s9, 1
      $region12: #{sam_vision_encoder_forward.9} parent=5 // pred_fallthru
        _
      %p155 = scmp.lt.s32.totalorder %s9, 32
      // Predicated region
      $region13: #{sam_vision_encoder_forward.9} parent=5 // pred_check
        %p156 = pneg %p155
      $region14: #{sam_vision_encoder_forward.9} parent=5 // pred_check_branch
        %158 = sbr.rel (%p156) target = $region16
      $region15: #{sam_vision_encoder_forward.9} parent=5 // pred_region
        // Predicated region
        $region17: #{sam_vision_encoder_forward.9} parent=15 // pred_check
          %p159 = pneg %p50
        $region18: #{sam_vision_encoder_forward.9} parent=15 // pred_check_branch
          %161 = sbr.rel (%p159) target = $region20
        $region19: #{sam_vision_encoder_forward.9} parent=15 // pred_region
          %s162 = sand.u32 %s40, 1
          %s163 = sand.u32 %s40, 1
          %s164 = smul.addr %s163, 16
          %s165 = scalar_lea.vmem [#allocation5], %s164
          %s166 = smul.u32 2, %s17
          %s167 = smul.addr %s16, 16
          %s168 = sadd.s32 %s166, %s167
          %s169 = smul.addr %s168, 4
          %s170 = scalar_lea.vmem %s0, %s169
          // Predicated region
          $region21: #{sam_vision_encoder_forward.9} parent=19 // pred_check
            _
          $region22: #{sam_vision_encoder_forward.9} parent=19 // pred_check_branch
            %172 = sbr.rel (0) target = $region24
          $region23: #{sam_vision_encoder_forward.9} parent=19 // pred_region
            // Predicated region
            $region25: #{sam_vision_encoder_forward.9} parent=23 // pred_check
              _
            $region26: #{sam_vision_encoder_forward.9} parent=23 // pred_check_branch
              %174 = sbr.rel target = $region28
            $region27: #{sam_vision_encoder_forward.9} parent=23 // pred_region
              // Predicated region
              $region40: #{sam_vision_encoder_forward.9} parent=27 // pred_check
                _
              $region41: #{sam_vision_encoder_forward.9} parent=27 // pred_check_branch
                %195 = sbr.rel (0) target = $region43
              $region42: #{sam_vision_encoder_forward.9} parent=27 // pred_region
                loop: start=0, step=1, limit=1
                $region44: #{sam_vision_encoder_forward.9} parent=42 // loop_pre_header
                  _
                $region45: #{sam_vision_encoder_forward.9} parent=42 // loop_header
                  %s197 = sphi 0, %s201
                  %p198 = scmp.ge.s32.totalorder %s197, 1
                  %s202 = sphi %s170, %s170
                  %s203 = sphi %s165, %s165
                $region46: #{sam_vision_encoder_forward.9} parent=42 // loop_header_branch
                  %200 = sbr.rel (%p198) target = $region50
                $region47: #{sam_vision_encoder_forward.9} parent=42 // loop_body
                  _
                $region48: #{sam_vision_encoder_forward.9} parent=42 // loop_footer
                  %s201 = sadd.s32 1, %s197
                $region49: #{sam_vision_encoder_forward.9} parent=42 // loop_footer_branch
                  %196 = sbr.rel target = $region45
                $region50: #{sam_vision_encoder_forward.9} parent=42 // loop_exit
                  _
                loop: start=0, step=1, limit=1
                $region51: #{sam_vision_encoder_forward.9} parent=42 // loop_pre_header
                  _
                $region52: #{sam_vision_encoder_forward.9} parent=42 // loop_header
                  %s206 = sphi 0, %s210
                  %p207 = scmp.ge.s32.totalorder %s206, 1
                  %s211 = sphi %s170, %s170
                  %s212 = sphi %s165, %s165
                $region53: #{sam_vision_encoder_forward.9} parent=42 // loop_header_branch
                  %209 = sbr.rel (%p207) target = $region57
                $region54: #{sam_vision_encoder_forward.9} parent=42 // loop_body
                  %v213 = vld [vmem:[%s211] sm:$0xf]
                  %214 = vst [vmem:[%s212] sm:$0xf] %v213
                  %v215 = vld [vmem:[%s211 + $0x4] sm:$0xf]
                  %216 = vst [vmem:[%s212 + $0x4] sm:$0xf] %v215
                  %v217 = vld [vmem:[%s211 + $0x20] sm:$0xf]
                  %218 = vst [vmem:[%s212 + $0x8] sm:$0xf] %v217
                  %v219 = vld [vmem:[%s211 + $0x24] sm:$0xf]
                  %220 = vst [vmem:[%s212 + $0xc] sm:$0xf] %v219
                $region55: #{sam_vision_encoder_forward.9} parent=42 // loop_footer
                  %s210 = sadd.s32 1, %s206
                $region56: #{sam_vision_encoder_forward.9} parent=42 // loop_footer_branch
                  %205 = sbr.rel target = $region52
                $region57: #{sam_vision_encoder_forward.9} parent=42 // loop_exit
                  _
              $region43: #{sam_vision_encoder_forward.9} parent=27 // pred_fallthru
                _
            $region28: #{sam_vision_encoder_forward.9} parent=23 // pred_fallthru
              _
            // Predicated region
            $region29: #{sam_vision_encoder_forward.9} parent=23 // pred_check
              _
            $region30: #{sam_vision_encoder_forward.9} parent=23 // pred_check_branch
              %176 = sbr.rel (0) target = $region32
            $region31: #{sam_vision_encoder_forward.9} parent=23 // pred_region
              loop: start=0, step=1, limit=1
              $region33: #{sam_vision_encoder_forward.9} parent=31 // loop_pre_header
                _
              $region34: #{sam_vision_encoder_forward.9} parent=31 // loop_header
                %s179 = sphi 0, %s183
                %p180 = scmp.ge.s32.totalorder %s179, 1
                %s184 = sphi %s170, %s170
                %s185 = sphi %s165, %s165
              $region35: #{sam_vision_encoder_forward.9} parent=31 // loop_header_branch
                %182 = sbr.rel (%p180) target = $region39
              $region36: #{sam_vision_encoder_forward.9} parent=31 // loop_body
                %v186 = vld [vmem:[%s184] sm:$0xf]
                %187 = vst [vmem:[%s185] sm:$0xf] %v186
                %v188 = vld [vmem:[%s184 + $0x4] sm:$0xf]
                %189 = vst [vmem:[%s185 + $0x4] sm:$0xf] %v188
                %v190 = vld [vmem:[%s184 + $0x20] sm:$0xf]
                %191 = vst [vmem:[%s185 + $0x8] sm:$0xf] %v190
                %v192 = vld [vmem:[%s184 + $0x24] sm:$0xf]
                %193 = vst [vmem:[%s185 + $0xc] sm:$0xf] %v192
              $region37: #{sam_vision_encoder_forward.9} parent=31 // loop_footer
                %s183 = sadd.s32 1, %s179
              $region38: #{sam_vision_encoder_forward.9} parent=31 // loop_footer_branch
                %178 = sbr.rel target = $region34
              $region39: #{sam_vision_encoder_forward.9} parent=31 // loop_exit
                _
            $region32: #{sam_vision_encoder_forward.9} parent=23 // pred_fallthru
              _
          $region24: #{sam_vision_encoder_forward.9} parent=19 // pred_fallthru
            _
          %221 = vnop
        $region20: #{sam_vision_encoder_forward.9} parent=15 // pred_fallthru
          _
        // Predicated region
        $region58: #{sam_vision_encoder_forward.9} parent=15 // pred_check
          %p222 = pneg %p78
        $region59: #{sam_vision_encoder_forward.9} parent=15 // pred_check_branch
          %224 = sbr.rel (%p222) target = $region61
        $region60: #{sam_vision_encoder_forward.9} parent=15 // pred_region
          %s225 = sand.u32 %s68, 1
          %s226 = sand.u32 %s68, 1
          %s227 = smul.addr %s226, 16
          %s228 = scalar_lea.vmem [#allocation6], %s227
          %s229 = smul.u32 2, %s18
          %s230 = smul.addr %s16, 16
          %s231 = sadd.s32 %s229, %s230
          %s232 = smul.addr %s231, 4
          %s233 = scalar_lea.vmem %s1, %s232
          // Predicated region
          $region62: #{sam_vision_encoder_forward.9} parent=60 // pred_check
            _
          $region63: #{sam_vision_encoder_forward.9} parent=60 // pred_check_branch
            %235 = sbr.rel (0) target = $region65
          $region64: #{sam_vision_encoder_forward.9} parent=60 // pred_region
            // Predicated region
            $region66: #{sam_vision_encoder_forward.9} parent=64 // pred_check
              _
            $region67: #{sam_vision_encoder_forward.9} parent=64 // pred_check_branch
              %237 = sbr.rel target = $region69
            $region68: #{sam_vision_encoder_forward.9} parent=64 // pred_region
              // Predicated region
              $region81: #{sam_vision_encoder_forward.9} parent=68 // pred_check
                _
              $region82: #{sam_vision_encoder_forward.9} parent=68 // pred_check_branch
                %258 = sbr.rel (0) target = $region84
              $region83: #{sam_vision_encoder_forward.9} parent=68 // pred_region
                loop: start=0, step=1, limit=1
                $region85: #{sam_vision_encoder_forward.9} parent=83 // loop_pre_header
                  _
                $region86: #{sam_vision_encoder_forward.9} parent=83 // loop_header
                  %s260 = sphi 0, %s264
                  %p261 = scmp.ge.s32.totalorder %s260, 1
                  %s265 = sphi %s233, %s233
                  %s266 = sphi %s228, %s228
                $region87: #{sam_vision_encoder_forward.9} parent=83 // loop_header_branch
                  %263 = sbr.rel (%p261) target = $region91
                $region88: #{sam_vision_encoder_forward.9} parent=83 // loop_body
                  _
                $region89: #{sam_vision_encoder_forward.9} parent=83 // loop_footer
                  %s264 = sadd.s32 1, %s260
                $region90: #{sam_vision_encoder_forward.9} parent=83 // loop_footer_branch
                  %259 = sbr.rel target = $region86
                $region91: #{sam_vision_encoder_forward.9} parent=83 // loop_exit
                  _
                loop: start=0, step=1, limit=1
                $region92: #{sam_vision_encoder_forward.9} parent=83 // loop_pre_header
                  _
                $region93: #{sam_vision_encoder_forward.9} parent=83 // loop_header
                  %s269 = sphi 0, %s273
                  %p270 = scmp.ge.s32.totalorder %s269, 1
                  %s274 = sphi %s233, %s233
                  %s275 = sphi %s228, %s228
                $region94: #{sam_vision_encoder_forward.9} parent=83 // loop_header_branch
                  %272 = sbr.rel (%p270) target = $region98
                $region95: #{sam_vision_encoder_forward.9} parent=83 // loop_body
                  %v276 = vld [vmem:[%s274] sm:$0xf]
                  %277 = vst [vmem:[%s275] sm:$0xf] %v276
                  %v278 = vld [vmem:[%s274 + $0x4] sm:$0xf]
                  %279 = vst [vmem:[%s275 + $0x4] sm:$0xf] %v278
                  %v280 = vld [vmem:[%s274 + $0x20] sm:$0xf]
                  %281 = vst [vmem:[%s275 + $0x8] sm:$0xf] %v280
                  %v282 = vld [vmem:[%s274 + $0x24] sm:$0xf]
                  %283 = vst [vmem:[%s275 + $0xc] sm:$0xf] %v282
                $region96: #{sam_vision_encoder_forward.9} parent=83 // loop_footer
                  %s273 = sadd.s32 1, %s269
                $region97: #{sam_vision_encoder_forward.9} parent=83 // loop_footer_branch
                  %268 = sbr.rel target = $region93
                $region98: #{sam_vision_encoder_forward.9} parent=83 // loop_exit
                  _
              $region84: #{sam_vision_encoder_forward.9} parent=68 // pred_fallthru
                _
            $region69: #{sam_vision_encoder_forward.9} parent=64 // pred_fallthru
              _
            // Predicated region
            $region70: #{sam_vision_encoder_forward.9} parent=64 // pred_check
              _
            $region71: #{sam_vision_encoder_forward.9} parent=64 // pred_check_branch
              %239 = sbr.rel (0) target = $region73
            $region72: #{sam_vision_encoder_forward.9} parent=64 // pred_region
              loop: start=0, step=1, limit=1
              $region74: #{sam_vision_encoder_forward.9} parent=72 // loop_pre_header
                _
              $region75: #{sam_vision_encoder_forward.9} parent=72 // loop_header
                %s242 = sphi 0, %s246
                %p243 = scmp.ge.s32.totalorder %s242, 1
                %s247 = sphi %s233, %s233
                %s248 = sphi %s228, %s228
              $region76: #{sam_vision_encoder_forward.9} parent=72 // loop_header_branch
                %245 = sbr.rel (%p243) target = $region80
              $region77: #{sam_vision_encoder_forward.9} parent=72 // loop_body
                %v249 = vld [vmem:[%s247] sm:$0xf]
                %250 = vst [vmem:[%s248] sm:$0xf] %v249
                %v251 = vld [vmem:[%s247 + $0x4] sm:$0xf]
                %252 = vst [vmem:[%s248 + $0x4] sm:$0xf] %v251
                %v253 = vld [vmem:[%s247 + $0x20] sm:$0xf]
                %254 = vst [vmem:[%s248 + $0x8] sm:$0xf] %v253
                %v255 = vld [vmem:[%s247 + $0x24] sm:$0xf]
                %256 = vst [vmem:[%s248 + $0xc] sm:$0xf] %v255
              $region78: #{sam_vision_encoder_forward.9} parent=72 // loop_footer
                %s246 = sadd.s32 1, %s242
              $region79: #{sam_vision_encoder_forward.9} parent=72 // loop_footer_branch
                %241 = sbr.rel target = $region75
              $region80: #{sam_vision_encoder_forward.9} parent=72 // loop_exit
                _
            $region73: #{sam_vision_encoder_forward.9} parent=64 // pred_fallthru
              _
          $region65: #{sam_vision_encoder_forward.9} parent=60 // pred_fallthru
            _
          %284 = vnop
        $region61: #{sam_vision_encoder_forward.9} parent=15 // pred_fallthru
          _
        // Predicated region
        $region99: #{sam_vision_encoder_forward.9} parent=15 // pred_check
          %p285 = pneg %p106
        $region100: #{sam_vision_encoder_forward.9} parent=15 // pred_check_branch
          %287 = sbr.rel (%p285) target = $region102
        $region101: #{sam_vision_encoder_forward.9} parent=15 // pred_region
          %s288 = sand.u32 %s96, 1
          %s289 = sand.u32 %s96, 1
          %s290 = smul.addr %s289, 16
          %s291 = scalar_lea.vmem [#allocation7], %s290
          %s292 = smul.u32 2, %s18
          %s293 = smul.addr %s16, 16
          %s294 = sadd.s32 %s292, %s293
          %s295 = smul.addr %s294, 4
          %s296 = scalar_lea.vmem %s2, %s295
          // Predicated region
          $region103: #{sam_vision_encoder_forward.9} parent=101 // pred_check
            _
          $region104: #{sam_vision_encoder_forward.9} parent=101 // pred_check_branch
            %298 = sbr.rel (0) target = $region106
          $region105: #{sam_vision_encoder_forward.9} parent=101 // pred_region
            // Predicated region
            $region107: #{sam_vision_encoder_forward.9} parent=105 // pred_check
              _
            $region108: #{sam_vision_encoder_forward.9} parent=105 // pred_check_branch
              %300 = sbr.rel target = $region110
            $region109: #{sam_vision_encoder_forward.9} parent=105 // pred_region
              // Predicated region
              $region122: #{sam_vision_encoder_forward.9} parent=109 // pred_check
                _
              $region123: #{sam_vision_encoder_forward.9} parent=109 // pred_check_branch
                %321 = sbr.rel (0) target = $region125
              $region124: #{sam_vision_encoder_forward.9} parent=109 // pred_region
                loop: start=0, step=1, limit=1
                $region126: #{sam_vision_encoder_forward.9} parent=124 // loop_pre_header
                  _
                $region127: #{sam_vision_encoder_forward.9} parent=124 // loop_header
                  %s323 = sphi 0, %s327
                  %p324 = scmp.ge.s32.totalorder %s323, 1
                  %s328 = sphi %s296, %s296
                  %s329 = sphi %s291, %s291
                $region128: #{sam_vision_encoder_forward.9} parent=124 // loop_header_branch
                  %326 = sbr.rel (%p324) target = $region132
                $region129: #{sam_vision_encoder_forward.9} parent=124 // loop_body
                  _
                $region130: #{sam_vision_encoder_forward.9} parent=124 // loop_footer
                  %s327 = sadd.s32 1, %s323
                $region131: #{sam_vision_encoder_forward.9} parent=124 // loop_footer_branch
                  %322 = sbr.rel target = $region127
                $region132: #{sam_vision_encoder_forward.9} parent=124 // loop_exit
                  _
                loop: start=0, step=1, limit=1
                $region133: #{sam_vision_encoder_forward.9} parent=124 // loop_pre_header
                  _
                $region134: #{sam_vision_encoder_forward.9} parent=124 // loop_header
                  %s332 = sphi 0, %s336
                  %p333 = scmp.ge.s32.totalorder %s332, 1
                  %s337 = sphi %s296, %s296
                  %s338 = sphi %s291, %s291
                $region135: #{sam_vision_encoder_forward.9} parent=124 // loop_header_branch
                  %335 = sbr.rel (%p333) target = $region139
                $region136: #{sam_vision_encoder_forward.9} parent=124 // loop_body
                  %v339 = vld [vmem:[%s337] sm:$0xf]
                  %340 = vst [vmem:[%s338] sm:$0xf] %v339
                  %v341 = vld [vmem:[%s337 + $0x4] sm:$0xf]
                  %342 = vst [vmem:[%s338 + $0x4] sm:$0xf] %v341
                  %v343 = vld [vmem:[%s337 + $0x20] sm:$0xf]
                  %344 = vst [vmem:[%s338 + $0x8] sm:$0xf] %v343
                  %v345 = vld [vmem:[%s337 + $0x24] sm:$0xf]
                  %346 = vst [vmem:[%s338 + $0xc] sm:$0xf] %v345
                $region137: #{sam_vision_encoder_forward.9} parent=124 // loop_footer
                  %s336 = sadd.s32 1, %s332
                $region138: #{sam_vision_encoder_forward.9} parent=124 // loop_footer_branch
                  %331 = sbr.rel target = $region134
                $region139: #{sam_vision_encoder_forward.9} parent=124 // loop_exit
                  _
              $region125: #{sam_vision_encoder_forward.9} parent=109 // pred_fallthru
                _
            $region110: #{sam_vision_encoder_forward.9} parent=105 // pred_fallthru
              _
            // Predicated region
            $region111: #{sam_vision_encoder_forward.9} parent=105 // pred_check
              _
            $region112: #{sam_vision_encoder_forward.9} parent=105 // pred_check_branch
              %302 = sbr.rel (0) target = $region114
            $region113: #{sam_vision_encoder_forward.9} parent=105 // pred_region
              loop: start=0, step=1, limit=1
              $region115: #{sam_vision_encoder_forward.9} parent=113 // loop_pre_header
                _
              $region116: #{sam_vision_encoder_forward.9} parent=113 // loop_header
                %s305 = sphi 0, %s309
                %p306 = scmp.ge.s32.totalorder %s305, 1
                %s310 = sphi %s296, %s296
                %s311 = sphi %s291, %s291
              $region117: #{sam_vision_encoder_forward.9} parent=113 // loop_header_branch
                %308 = sbr.rel (%p306) target = $region121
              $region118: #{sam_vision_encoder_forward.9} parent=113 // loop_body
                %v312 = vld [vmem:[%s310] sm:$0xf]
                %313 = vst [vmem:[%s311] sm:$0xf] %v312
                %v314 = vld [vmem:[%s310 + $0x4] sm:$0xf]
                %315 = vst [vmem:[%s311 + $0x4] sm:$0xf] %v314
                %v316 = vld [vmem:[%s310 + $0x20] sm:$0xf]
                %317 = vst [vmem:[%s311 + $0x8] sm:$0xf] %v316
                %v318 = vld [vmem:[%s310 + $0x24] sm:$0xf]
                %319 = vst [vmem:[%s311 + $0xc] sm:$0xf] %v318
              $region119: #{sam_vision_encoder_forward.9} parent=113 // loop_footer
                %s309 = sadd.s32 1, %s305
              $region120: #{sam_vision_encoder_forward.9} parent=113 // loop_footer_branch
                %304 = sbr.rel target = $region116
              $region121: #{sam_vision_encoder_forward.9} parent=113 // loop_exit
                _
            $region114: #{sam_vision_encoder_forward.9} parent=105 // pred_fallthru
              _
          $region106: #{sam_vision_encoder_forward.9} parent=101 // pred_fallthru
            _
          %347 = vnop
        $region102: #{sam_vision_encoder_forward.9} parent=15 // pred_fallthru
          _
      $region16: #{sam_vision_encoder_forward.9} parent=5 // pred_fallthru
        _
      %p348 = scmp.le.s32.totalorder 1, %s9
      %p349 = scmp.lt.s32.totalorder %s9, 33
      %p350 = pnand %p348, %p349
      %p351 = pneg %p350
      // Predicated region
      $region140: #{sam_vision_encoder_forward.9} parent=5 // pred_check
        _
      $region141: #{sam_vision_encoder_forward.9} parent=5 // pred_check_branch
        %353 = sbr.rel (%p350) target = $region143
      $region142: #{sam_vision_encoder_forward.9} parent=5 // pred_region
        %s354 = ssub.s32 %s9, 1
        %s355 = sand.u32 %s43, 1
        %s356 = sand.u32 %s43, 1
        %s357 = smul.addr %s356, 16
        %s358 = scalar_lea.vmem [#allocation5], %s357
        // Predicated region
        $region144: #{sam_vision_encoder_forward.9} parent=142 // pred_check
          %p359 = pneg %p56
        $region145: #{sam_vision_encoder_forward.9} parent=142 // pred_check_branch
          %361 = sbr.rel (%p359) target = $region147
        $region146: #{sam_vision_encoder_forward.9} parent=142 // pred_region
          _
        $region147: #{sam_vision_encoder_forward.9} parent=142 // pred_fallthru
          _
        %s362 = sand.u32 %s71, 1
        %s363 = sand.u32 %s71, 1
        %s364 = smul.addr %s363, 16
        %s365 = scalar_lea.vmem [#allocation6], %s364
        // Predicated region
        $region148: #{sam_vision_encoder_forward.9} parent=142 // pred_check
          %p366 = pneg %p84
        $region149: #{sam_vision_encoder_forward.9} parent=142 // pred_check_branch
          %368 = sbr.rel (%p366) target = $region151
        $region150: #{sam_vision_encoder_forward.9} parent=142 // pred_region
          _
        $region151: #{sam_vision_encoder_forward.9} parent=142 // pred_fallthru
          _
        %s369 = sand.u32 %s99, 1
        %s370 = sand.u32 %s99, 1
        %s371 = smul.addr %s370, 16
        %s372 = scalar_lea.vmem [#allocation7], %s371
        // Predicated region
        $region152: #{sam_vision_encoder_forward.9} parent=142 // pred_check
          %p373 = pneg %p112
        $region153: #{sam_vision_encoder_forward.9} parent=142 // pred_check_branch
          %375 = sbr.rel (%p373) target = $region155
        $region154: #{sam_vision_encoder_forward.9} parent=142 // pred_region
          _
        $region155: #{sam_vision_encoder_forward.9} parent=142 // pred_fallthru
          _
        %s376 = sand.u32 %s43, 1
        %s377 = sand.u32 %s43, 1
        %s378 = smul.addr %s377, 16
        %s379 = scalar_lea.vmem [#allocation5], %s378
        %p380 = pneg %p56
        %p381 = pneg %p53
        %s382 = sand.u32 %s71, 1
        %s383 = sand.u32 %s71, 1
        %s384 = smul.addr %s383, 16
        %s385 = scalar_lea.vmem [#allocation6], %s384
        %p386 = pneg %p84
        %p387 = pneg %p81
        %s388 = sand.u32 %s99, 1
        %s389 = sand.u32 %s99, 1
        %s390 = smul.addr %s389, 16
        %s391 = scalar_lea.vmem [#allocation7], %s390
        %p392 = pneg %p112
        %p393 = pneg %p109
        %p394 = pneg %p140
        %p395 = pneg %p137
        %s396 = smul.u32 2, %s20
        %p397 = scmp.lt.s32.totalorder %s19, 1
        %s398 = scalar_select %p397, %s19, 1
        %p399 = scmp.lt.s32.totalorder %s396, 7
        %s400 = scalar_select %p399, %s396, 7
        %s401 = smul.addr %s398, 8
        %s402 = sadd.s32 %s400, %s401
        %s403 = smul.addr %s402, 4
        %s404 = scalar_lea.vmem %s3, %s403
        %s405 = smul.u32 2, %s20
        %s406 = smul.u32 2, %s21
        %s407 = smul.u32 2, %s21
        %s408 = smul.u32 2, %s20
        %p409 = scmp.lt.s32.totalorder %s19, 1
        %s410 = scalar_select %p409, %s19, 1
        %p411 = scmp.lt.s32.totalorder %s408, 7
        %s412 = scalar_select %p411, %s408, 7
        %s413 = smul.addr %s410, 8
        %s414 = sadd.s32 %s412, %s413
        %s415 = smul.addr %s414, 4
        %s416 = scalar_lea.vmem %s3, %s415
        %s417 = smul.u32 2, %s20
        %p419 = scmp.eq.s32.totalorder %s21, 0
        // Predicated region
        $region156: #{sam_vision_encoder_forward.9} parent=142 // pred_check
          %p420 = pneg %p419
        $region157: #{sam_vision_encoder_forward.9} parent=142 // pred_check_branch
          %422 = sbr.rel (%p420) target = $region159
        $region158: #{sam_vision_encoder_forward.9} parent=142 // pred_region
          %vm423 = vcmask 7168
          %424 = vst.msk [vmem:[#allocation2] sm:$0xff] %vm423, -inf
          %425 = vst.msk [vmem:[#allocation2 + $0x8] sm:$0xff] %vm423, -inf
          %426 = vst.msk [vmem:[#allocation2 + $0x10] sm:$0xff] %vm423, -inf
          %427 = vst.msk [vmem:[#allocation2 + $0x18] sm:$0xff] %vm423, -inf
          %428 = vst.msk [vmem:[#allocation3] sm:$0xff] %vm423, 0.0
          %429 = vst.msk [vmem:[#allocation3 + $0x8] sm:$0xff] %vm423, 0.0
          %430 = vst.msk [vmem:[#allocation3 + $0x10] sm:$0xff] %vm423, 0.0
          %431 = vst.msk [vmem:[#allocation3 + $0x18] sm:$0xff] %vm423, 0.0
          %vm432 = vcmask 130048
          %433 = vst.msk [vmem:[#allocation4] sm:$0xff] %vm432, 0.0
          %434 = vst.msk [vmem:[#allocation4 + $0x8] sm:$0xff] %vm432, 0.0
          %435 = vst.msk [vmem:[#allocation4 + $0x10] sm:$0xff] %vm432, 0.0
          %436 = vst.msk [vmem:[#allocation4 + $0x18] sm:$0xff] %vm432, 0.0
        $region159: #{sam_vision_encoder_forward.9} parent=142 // pred_fallthru
          _
        %v437 = vld [vmem:[%s358] sm:$0xf]
        %v438 = vld [vmem:[%s358 + $0x4] sm:$0xf]
        %v439 = vld [vmem:[%s358 + $0x8] sm:$0xf]
        %v440 = vld [vmem:[%s358 + $0xc] sm:$0xf]
        %v441 = vld [vmem:[%s365] sm:$0xf]
        %v442 = vld [vmem:[%s365 + $0x4] sm:$0xf]
        %v443 = vld [vmem:[%s365 + $0x8] sm:$0xf]
        %v444 = vld [vmem:[%s365 + $0xc] sm:$0xf]
        %v445 = vld [vmem:[%s372] sm:$0xf]
        %v446 = vld [vmem:[%s372 + $0x4] sm:$0xf]
        %v447 = vld [vmem:[%s372 + $0x8] sm:$0xf]
        %v448 = vld [vmem:[%s372 + $0xc] sm:$0xf]
        %v451 = vunpack.c.l.b16 %v437
        %v452 = vunpack.c.l.b16 %v438
        %v453 = vpack.c.b16 %v452, %v451
        %v456 = vunpack.c.l.b16 %v441
        %v457 = vunpack.c.l.b16 %v442
        %v458 = vpack.c.b16 %v457, %v456
        %vm459 = vcmask 130048
        %v461 = vsel %vm459, %v453, 0
        %v464 = vsel %vm459, %v458, 0
        %466 = vmatprep.subr.bf16.mxu0 0
        %467 = vmatpush1.bf16.xpose.msra.mxu0 %v464
        %468 = vmatprep.subr.bf16.mxu0 0
        %469 = vmatpush1.bf16.xpose.msra.mxu0 0
        %470 = vmatprep.subr.bf16.mxu0 0
        %471 = vmatpush1.bf16.xpose.msra.mxu0 0
        %472 = vmatprep.subr.bf16.mxu0 0
        %473 = vmatpush1.bf16.xpose.msra.mxu0 0
        %474 = vmatprep.subr.bf16.mxu0 0
        %475 = vmatpush1.bf16.xpose.msra.mxu0 0
        %476 = vmatprep.subr.bf16.mxu0 0
        %477 = vmatpush1.bf16.xpose.msra.mxu0 0
        %478 = vmatprep.subr.bf16.mxu0 0
        %479 = vmatpush1.bf16.xpose.msra.mxu0 0
        %480 = vmatprep.subr.bf16.mxu0 0
        %481 = vmatpush1.bf16.xpose.msra.mxu0 0
        %482 = vmatprep.subr.bf16.mxu0 0
        %483 = vmatpush1.bf16.xpose.msra.mxu0 0
        %484 = vmatprep.subr.bf16.mxu0 0
        %485 = vmatpush1.bf16.xpose.msra.mxu0 0
        %486 = vmatprep.subr.bf16.mxu0 0
        %487 = vmatpush1.bf16.xpose.msra.mxu0 0
        %488 = vmatprep.subr.bf16.mxu0 0
        %489 = vmatpush1.bf16.xpose.msra.mxu0 0
        %490 = vmatprep.subr.bf16.mxu0 0
        %491 = vmatpush1.bf16.xpose.msra.mxu0 0
        %492 = vmatprep.subr.bf16.mxu0 0
        %493 = vmatpush1.bf16.xpose.msra.mxu0 0
        %494 = vmatprep.subr.bf16.mxu0 0
        %495 = vmatpush1.bf16.xpose.msra.mxu0 0
        %496 = vmatprep.subr.bf16.mxu0 0
        %497 = vmatpush1.bf16.xpose.msra.mxu0 0
        %498 = vmatprep.mubr.bf16.mxu0 0
        %499 = vmatmul.mubr.bf16.gmra.mrb[0].mxu0 %v461
        %v500 = vpop.f32.mrb[0].mxu0
        %v501 = vadd.f32 0.0, %v500
        %v502 = vpop.f32.mrb[0].mxu0
        %v503 = vpop.f32.mrb[0].mxu0
        %v504 = vadd.f32 0.0, %v503
        %v505 = vpop.f32.mrb[0].mxu0
        %506 = vdwg.mxu0
        %v509 = vunpack.c.l.b16 %v439
        %v510 = vunpack.c.l.b16 %v440
        %v511 = vpack.c.b16 %v510, %v509
        %v514 = vunpack.c.l.b16 %v443
        %v515 = vunpack.c.l.b16 %v444
        %v516 = vpack.c.b16 %v515, %v514
        %v518 = vsel %vm459, %v511, 0
        %v521 = vsel %vm459, %v516, 0
        %523 = vmatprep.subr.bf16.mxu0 0
        %524 = vmatpush1.bf16.xpose.msra.mxu0 %v521
        %525 = vmatprep.subr.bf16.mxu0 0
        %526 = vmatpush1.bf16.xpose.msra.mxu0 0
        %527 = vmatprep.subr.bf16.mxu0 0
        %528 = vmatpush1.bf16.xpose.msra.mxu0 0
        %529 = vmatprep.subr.bf16.mxu0 0
        %530 = vmatpush1.bf16.xpose.msra.mxu0 0
        %531 = vmatprep.subr.bf16.mxu0 0
        %532 = vmatpush1.bf16.xpose.msra.mxu0 0
        %533 = vmatprep.subr.bf16.mxu0 0
        %534 = vmatpush1.bf16.xpose.msra.mxu0 0
        %535 = vmatprep.subr.bf16.mxu0 0
        %536 = vmatpush1.bf16.xpose.msra.mxu0 0
        %537 = vmatprep.subr.bf16.mxu0 0
        %538 = vmatpush1.bf16.xpose.msra.mxu0 0
        %539 = vmatprep.subr.bf16.mxu0 0
        %540 = vmatpush1.bf16.xpose.msra.mxu0 0
        %541 = vmatprep.subr.bf16.mxu0 0
        %542 = vmatpush1.bf16.xpose.msra.mxu0 0
        %543 = vmatprep.subr.bf16.mxu0 0
        %544 = vmatpush1.bf16.xpose.msra.mxu0 0
        %545 = vmatprep.subr.bf16.mxu0 0
        %546 = vmatpush1.bf16.xpose.msra.mxu0 0
        %547 = vmatprep.subr.bf16.mxu0 0
        %548 = vmatpush1.bf16.xpose.msra.mxu0 0
        %549 = vmatprep.subr.bf16.mxu0 0
        %550 = vmatpush1.bf16.xpose.msra.mxu0 0
        %551 = vmatprep.subr.bf16.mxu0 0
        %552 = vmatpush1.bf16.xpose.msra.mxu0 0
        %553 = vmatprep.subr.bf16.mxu0 0
        %554 = vmatpush1.bf16.xpose.msra.mxu0 0
        %555 = vmatprep.mubr.bf16.mxu0 0
        %556 = vmatmul.mubr.bf16.gmra.mrb[0].mxu0 %v518
        %v557 = vpop.f32.mrb[0].mxu0
        %v558 = vadd.f32 0.0, %v557
        %v559 = vpop.f32.mrb[0].mxu0
        %v560 = vpop.f32.mrb[0].mxu0
        %v561 = vadd.f32 0.0, %v560
        %v562 = vpop.f32.mrb[0].mxu0
        %563 = vdwg.mxu0
        %v564 = vmul.f32 %v501, 0.25
        %v565 = vmul.f32 %v504, 0.25
        %v566 = vmul.f32 %v558, 0.25
        %v567 = vmul.f32 %v561, 0.25
        %v568 = vld [vmem:[#allocation2] sm:$0xff]
        %v569 = vld [vmem:[#allocation2 + $0x8] sm:$0xff]
        %v570 = vld [vmem:[#allocation2 + $0x10] sm:$0xff]
        %v571 = vld [vmem:[#allocation2 + $0x18] sm:$0xff]
        %v572 = vsel %vm459, %v564, -inf
        %573 = vmax.xlane.f32.xlu0 %v572
        %v574 = vpop.xlane.xlu0 %573
        %v575 = vsel %vm459, %v565, -inf
        %576 = vmax.xlane.f32.xlu0 %v575
        %v577 = vpop.xlane.xlu0 %576
        %v578 = vsel %vm459, %v566, -inf
        %579 = vmax.xlane.f32.xlu0 %v578
        %v580 = vpop.xlane.xlu0 %579
        %v581 = vsel %vm459, %v567, -inf
        %582 = vmax.xlane.f32.xlu0 %v581
        %v583 = vpop.xlane.xlu0 %582
        %v584 = vmax.f32 %v568, %v574
        %v585 = vmax.f32 %v569, %v577
        %v586 = vmax.f32 %v570, %v580
        %v587 = vmax.f32 %v571, %v583
        %v588 = vsub.f32 %v568, %v584
        %v589 = vsub.f32 %v569, %v585
        %v590 = vsub.f32 %v570, %v586
        %v591 = vsub.f32 %v571, %v587
        %v592 = vmul.f32 %v588, 1.442695
        %v593 = vpow.pop %v592
        %v594 = vmul.f32 %v589, 1.442695
        %v595 = vpow.pop %v594
        %v596 = vmul.f32 %v590, 1.442695
        %v597 = vpow.pop %v596
        %v598 = vmul.f32 %v591, 1.442695
        %v599 = vpow.pop %v598
        %601 = vset.pattern.permute.xlu0 0
        %602 = vperm.xlu0 %601, %v584
        %v603 = vpop.permute.xlu0 %602
        %606 = vset.pattern.permute.xlu0 0
        %607 = vperm.xlu0 %606, %v585
        %v608 = vpop.permute.xlu0 %607
        %611 = vset.pattern.permute.xlu0 0
        %612 = vperm.xlu0 %611, %v586
        %v613 = vpop.permute.xlu0 %612
        %616 = vset.pattern.permute.xlu0 0
        %617 = vperm.xlu0 %616, %v587
        %v618 = vpop.permute.xlu0 %617
        %v620 = vsub.f32 %v564, %v603
        %v621 = vsub.f32 %v565, %v608
        %v622 = vsub.f32 %v566, %v613
        %v623 = vsub.f32 %v567, %v618
        %v624 = vmul.f32 %v620, 1.442695
        %v625 = vpow.pop %v624
        %v626 = vmul.f32 %v621, 1.442695
        %v627 = vpow.pop %v626
        %v628 = vmul.f32 %v622, 1.442695
        %v629 = vpow.pop %v628
        %v630 = vmul.f32 %v623, 1.442695
        %v631 = vpow.pop %v630
        %v632 = vld [vmem:[#allocation3] sm:$0xff]
        %v633 = vld [vmem:[#allocation3 + $0x8] sm:$0xff]
        %v634 = vld [vmem:[#allocation3 + $0x10] sm:$0xff]
        %v635 = vld [vmem:[#allocation3 + $0x18] sm:$0xff]
        %v636 = vmul.f32 %v593, %v632
        %v637 = vmul.f32 %v595, %v633
        %v638 = vmul.f32 %v597, %v634
        %v639 = vmul.f32 %v599, %v635
        %v640 = vsel %vm459, %v625, 0.0
        %641 = vadd.xlane.f32.xlu0 %v640
        %v642 = vpop.xlane.xlu0 %641
        %v643 = vsel %vm459, %v627, 0.0
        %644 = vadd.xlane.f32.xlu0 %v643
        %v645 = vpop.xlane.xlu0 %644
        %v646 = vsel %vm459, %v629, 0.0
        %647 = vadd.xlane.f32.xlu0 %v646
        %v648 = vpop.xlane.xlu0 %647
        %v649 = vsel %vm459, %v631, 0.0
        %650 = vadd.xlane.f32.xlu0 %v649
        %v651 = vpop.xlane.xlu0 %650
        %v652 = vadd.f32 %v636, %v642
        %v653 = vadd.f32 %v637, %v645
        %v654 = vadd.f32 %v638, %v648
        %v655 = vadd.f32 %v639, %v651
        %vm656 = vcmask 7168
        %657 = vst.msk [vmem:[#allocation3] sm:$0xff] %vm656, %v652
        %658 = vst.msk [vmem:[#allocation3 + $0x8] sm:$0xff] %vm656, %v653
        %659 = vst.msk [vmem:[#allocation3 + $0x10] sm:$0xff] %vm656, %v654
        %660 = vst.msk [vmem:[#allocation3 + $0x18] sm:$0xff] %vm656, %v655
        %v661 = vld [vmem:[#allocation4] sm:$0xff]
        %v662 = vld [vmem:[#allocation4 + $0x8] sm:$0xff]
        %v663 = vld [vmem:[#allocation4 + $0x10] sm:$0xff]
        %v664 = vld [vmem:[#allocation4 + $0x18] sm:$0xff]
        %666 = vset.pattern.permute.xlu0 0
        %667 = vperm.xlu0 %666, %v593
        %v668 = vpop.permute.xlu0 %667
        %671 = vset.pattern.permute.xlu0 0
        %672 = vperm.xlu0 %671, %v595
        %v673 = vpop.permute.xlu0 %672
        %676 = vset.pattern.permute.xlu0 0
        %677 = vperm.xlu0 %676, %v597
        %v678 = vpop.permute.xlu0 %677
        %681 = vset.pattern.permute.xlu0 0
        %682 = vperm.xlu0 %681, %v599
        %v683 = vpop.permute.xlu0 %682
        %v685 = vmul.f32 %v668, %v661
        %v686 = vmul.f32 %v673, %v662
        %v687 = vmul.f32 %v678, %v663
        %v688 = vmul.f32 %v683, %v664
        %v689 = vpack.c.bf16 %v627, %v625
        %v690 = vpack.c.bf16 %v631, %v629
        %v693 = vunpack.c.l.b16 %v445
        %v694 = vunpack.c.l.b16 %v446
        %v695 = vpack.c.b16 %v694, %v693
        %v698 = vsel %vm459, %v689, 0
        %700 = vmatprep.subr.bf16.mxu0 0
        %701 = vmatpush1.bf16.msra.mxu0 %v695
        %702 = vmatprep.subr.bf16.mxu0 0
        %703 = vmatpush1.bf16.msra.mxu0 0
        %704 = vmatprep.subr.bf16.mxu0 0
        %705 = vmatpush1.bf16.msra.mxu0 0
        %706 = vmatprep.subr.bf16.mxu0 0
        %707 = vmatpush1.bf16.msra.mxu0 0
        %708 = vmatprep.subr.bf16.mxu0 0
        %709 = vmatpush1.bf16.msra.mxu0 0
        %710 = vmatprep.subr.bf16.mxu0 0
        %711 = vmatpush1.bf16.msra.mxu0 0
        %712 = vmatprep.subr.bf16.mxu0 0
        %713 = vmatpush1.bf16.msra.mxu0 0
        %714 = vmatprep.subr.bf16.mxu0 0
        %715 = vmatpush1.bf16.msra.mxu0 0
        %716 = vmatprep.subr.bf16.mxu0 0
        %717 = vmatpush1.bf16.msra.mxu0 0
        %718 = vmatprep.subr.bf16.mxu0 0
        %719 = vmatpush1.bf16.msra.mxu0 0
        %720 = vmatprep.subr.bf16.mxu0 0
        %721 = vmatpush1.bf16.msra.mxu0 0
        %722 = vmatprep.subr.bf16.mxu0 0
        %723 = vmatpush1.bf16.msra.mxu0 0
        %724 = vmatprep.subr.bf16.mxu0 0
        %725 = vmatpush1.bf16.msra.mxu0 0
        %726 = vmatprep.subr.bf16.mxu0 0
        %727 = vmatpush1.bf16.msra.mxu0 0
        %728 = vmatprep.subr.bf16.mxu0 0
        %729 = vmatpush1.bf16.msra.mxu0 0
        %730 = vmatprep.subr.bf16.mxu0 0
        %731 = vmatpush1.bf16.msra.mxu0 0
        %732 = vmatprep.mubr.bf16.mxu0 0
        %733 = vmatmul.mubr.bf16.gmra.mrb[0].mxu0 %v698
        %v734 = vpop.f32.mrb[0].mxu0
        %v735 = vadd.f32 0.0, %v734
        %v736 = vpop.f32.mrb[0].mxu0
        %v737 = vpop.f32.mrb[0].mxu0
        %v738 = vadd.f32 0.0, %v737
        %v739 = vpop.f32.mrb[0].mxu0
        %740 = vdwg.mxu0
        %v743 = vunpack.c.l.b16 %v447
        %v744 = vunpack.c.l.b16 %v448
        %v745 = vpack.c.b16 %v744, %v743
        %v748 = vsel %vm459, %v690, 0
        %750 = vmatprep.subr.bf16.mxu0 0
        %751 = vmatpush1.bf16.msra.mxu0 %v745
        %752 = vmatprep.subr.bf16.mxu0 0
        %753 = vmatpush1.bf16.msra.mxu0 0
        %754 = vmatprep.subr.bf16.mxu0 0
        %755 = vmatpush1.bf16.msra.mxu0 0
        %756 = vmatprep.subr.bf16.mxu0 0
        %757 = vmatpush1.bf16.msra.mxu0 0
        %758 = vmatprep.subr.bf16.mxu0 0
        %759 = vmatpush1.bf16.msra.mxu0 0
        %760 = vmatprep.subr.bf16.mxu0 0
        %761 = vmatpush1.bf16.msra.mxu0 0
        %762 = vmatprep.subr.bf16.mxu0 0
        %763 = vmatpush1.bf16.msra.mxu0 0
        %764 = vmatprep.subr.bf16.mxu0 0
        %765 = vmatpush1.bf16.msra.mxu0 0
        %766 = vmatprep.subr.bf16.mxu0 0
        %767 = vmatpush1.bf16.msra.mxu0 0
        %768 = vmatprep.subr.bf16.mxu0 0
        %769 = vmatpush1.bf16.msra.mxu0 0
        %770 = vmatprep.subr.bf16.mxu0 0
        %771 = vmatpush1.bf16.msra.mxu0 0
        %772 = vmatprep.subr.bf16.mxu0 0
        %773 = vmatpush1.bf16.msra.mxu0 0
        %774 = vmatprep.subr.bf16.mxu0 0
        %775 = vmatpush1.bf16.msra.mxu0 0
        %776 = vmatprep.subr.bf16.mxu0 0
        %777 = vmatpush1.bf16.msra.mxu0 0
        %778 = vmatprep.subr.bf16.mxu0 0
        %779 = vmatpush1.bf16.msra.mxu0 0
        %780 = vmatprep.subr.bf16.mxu0 0
        %781 = vmatpush1.bf16.msra.mxu0 0
        %782 = vmatprep.mubr.bf16.mxu0 0
        %783 = vmatmul.mubr.bf16.gmra.mrb[0].mxu0 %v748
        %v784 = vpop.f32.mrb[0].mxu0
        %v785 = vadd.f32 0.0, %v784
        %v786 = vpop.f32.mrb[0].mxu0
        %v787 = vpop.f32.mrb[0].mxu0
        %v788 = vadd.f32 0.0, %v787
        %v789 = vpop.f32.mrb[0].mxu0
        %790 = vdwg.mxu0
        %v791 = vadd.f32 %v685, %v735
        %v792 = vadd.f32 %v686, %v738
        %v793 = vadd.f32 %v687, %v785
        %v794 = vadd.f32 %v688, %v788
        %795 = vst.msk [vmem:[#allocation4] sm:$0xff] %vm459, %v791
        %796 = vst.msk [vmem:[#allocation4 + $0x8] sm:$0xff] %vm459, %v792
        %797 = vst.msk [vmem:[#allocation4 + $0x10] sm:$0xff] %vm459, %v793
        %798 = vst.msk [vmem:[#allocation4 + $0x18] sm:$0xff] %vm459, %v794
        %799 = vst.msk [vmem:[#allocation2] sm:$0xff] %vm656, %v584
        %800 = vst.msk [vmem:[#allocation2 + $0x8] sm:$0xff] %vm656, %v585
        %801 = vst.msk [vmem:[#allocation2 + $0x10] sm:$0xff] %vm656, %v586
        %802 = vst.msk [vmem:[#allocation2 + $0x18] sm:$0xff] %vm656, %v587
        %p803 = scmp.eq.s32.totalorder %s21, 3
        // Predicated region
        $region160: #{sam_vision_encoder_forward.9} parent=142 // pred_check
          %p804 = pneg %p803
        $region161: #{sam_vision_encoder_forward.9} parent=142 // pred_check_branch
          %806 = sbr.rel (%p804) target = $region163
        $region162: #{sam_vision_encoder_forward.9} parent=142 // pred_region
          %v807 = vld [vmem:[#allocation4] sm:$0xff]
          %v808 = vld [vmem:[#allocation4 + $0x8] sm:$0xff]
          %v809 = vld [vmem:[#allocation4 + $0x10] sm:$0xff]
          %v810 = vld [vmem:[#allocation4 + $0x18] sm:$0xff]
          %v811 = vld [vmem:[#allocation3] sm:$0xff]
          %v812 = vld [vmem:[#allocation3 + $0x8] sm:$0xff]
          %v813 = vld [vmem:[#allocation3 + $0x10] sm:$0xff]
          %v814 = vld [vmem:[#allocation3 + $0x18] sm:$0xff]
          %v815 = vrcp.pop %v811
          %v816 = vrcp.pop %v812
          %v817 = vrcp.pop %v813
          %v818 = vrcp.pop %v814
          %820 = vset.pattern.permute.xlu0 0
          %821 = vperm.xlu0 %820, %v815
          %v822 = vpop.permute.xlu0 %821
          %825 = vset.pattern.permute.xlu0 0
          %826 = vperm.xlu0 %825, %v816
          %v827 = vpop.permute.xlu0 %826
          %830 = vset.pattern.permute.xlu0 0
          %831 = vperm.xlu0 %830, %v817
          %v832 = vpop.permute.xlu0 %831
          %835 = vset.pattern.permute.xlu0 0
          %836 = vperm.xlu0 %835, %v818
          %v837 = vpop.permute.xlu0 %836
          %v839 = vmul.f32 %v807, %v822
          %v840 = vmul.f32 %v808, %v827
          %v841 = vmul.f32 %v809, %v832
          %v842 = vmul.f32 %v810, %v837
          %v843 = vcombine.high %v839, 0.0
          %v845 = vunpack.c.l.s4 1983009808
          %v846 = vunpack.c.0.s8 %v845
          %v847 = vlaneseq
          %v848 = vshrl.u32 %v847, 7
          %v849 = vsub.s32 %v846, %v848
          %v850 = vrot.slane %v839, %v849
          %v852 = vunpack.c.l.s4 1983009808
          %v853 = vunpack.c.0.s8 %v852
          %v854 = vlaneseq
          %v855 = vshrl.u32 %v854, 7
          %v856 = vsub.s32 %v853, %v855
          %v857 = vrot.slane %v843, %v856
          %v858 = vcombine.high %v841, 0.0
          %v860 = vunpack.c.l.s4 1983009808
          %v861 = vunpack.c.0.s8 %v860
          %v862 = vlaneseq
          %v863 = vshrl.u32 %v862, 7
          %v864 = vsub.s32 %v861, %v863
          %v865 = vrot.slane %v841, %v864
          %v867 = vunpack.c.l.s4 1983009808
          %v868 = vunpack.c.0.s8 %v867
          %v869 = vlaneseq
          %v870 = vshrl.u32 %v869, 7
          %v871 = vsub.s32 %v868, %v870
          %v872 = vrot.slane %v858, %v871
          %v873 = vcombine.low %v850, %v865
          %v874 = vcombine.high %v850, %v865
          %v876 = vunpack.c.l.s4 1934713408
          %v877 = vunpack.c.0.s8 %v876
          %v878 = vlaneseq
          %v879 = vshrl.u32 %v878, 7
          %v880 = vsub.s32 %v877, %v879
          %v881 = vrot.slane %v873, %v880
          %v883 = vunpack.c.l.s4 1934713408
          %v884 = vunpack.c.0.s8 %v883
          %v885 = vlaneseq
          %v886 = vshrl.u32 %v885, 7
          %v887 = vsub.s32 %v884, %v886
          %v888 = vrot.slane %v874, %v887
          %v889 = vcombine.low %v857, %v872
          %v890 = vcombine.high %v857, %v872
          %v892 = vunpack.c.l.s4 1934713408
          %v893 = vunpack.c.0.s8 %v892
          %v894 = vlaneseq
          %v895 = vshrl.u32 %v894, 7
          %v896 = vsub.s32 %v893, %v895
          %v897 = vrot.slane %v889, %v896
          %v899 = vunpack.c.l.s4 1934713408
          %v900 = vunpack.c.0.s8 %v899
          %v901 = vlaneseq
          %v902 = vshrl.u32 %v901, 7
          %v903 = vsub.s32 %v900, %v902
          %v904 = vrot.slane %v890, %v903
          %v905 = vcombine.high %v881, 0.0
          %v906 = vcombine.high %v888, 0.0
          %v907 = vcombine.high %v897, 0.0
          %v908 = vcombine.high %v904, 0.0
          %v909 = vcombine.high %v840, 0.0
          %v911 = vunpack.c.l.s4 1983009808
          %v912 = vunpack.c.0.s8 %v911
          %v913 = vlaneseq
          %v914 = vshrl.u32 %v913, 7
          %v915 = vsub.s32 %v912, %v914
          %v916 = vrot.slane %v840, %v915
          %v918 = vunpack.c.l.s4 1983009808
          %v919 = vunpack.c.0.s8 %v918
          %v920 = vlaneseq
          %v921 = vshrl.u32 %v920, 7
          %v922 = vsub.s32 %v919, %v921
          %v923 = vrot.slane %v909, %v922
          %v924 = vcombine.high %v842, 0.0
          %v926 = vunpack.c.l.s4 1983009808
          %v927 = vunpack.c.0.s8 %v926
          %v928 = vlaneseq
          %v929 = vshrl.u32 %v928, 7
          %v930 = vsub.s32 %v927, %v929
          %v931 = vrot.slane %v842, %v930
          %v933 = vunpack.c.l.s4 1983009808
          %v934 = vunpack.c.0.s8 %v933
          %v935 = vlaneseq
          %v936 = vshrl.u32 %v935, 7
          %v937 = vsub.s32 %v934, %v936
          %v938 = vrot.slane %v924, %v937
          %v939 = vcombine.low %v916, %v931
          %v940 = vcombine.high %v916, %v931
          %v942 = vunpack.c.l.s4 1934713408
          %v943 = vunpack.c.0.s8 %v942
          %v944 = vlaneseq
          %v945 = vshrl.u32 %v944, 7
          %v946 = vsub.s32 %v943, %v945
          %v947 = vrot.slane %v939, %v946
          %v949 = vunpack.c.l.s4 1934713408
          %v950 = vunpack.c.0.s8 %v949
          %v951 = vlaneseq
          %v952 = vshrl.u32 %v951, 7
          %v953 = vsub.s32 %v950, %v952
          %v954 = vrot.slane %v940, %v953
          %v955 = vcombine.low %v923, %v938
          %v956 = vcombine.high %v923, %v938
          %v958 = vunpack.c.l.s4 1934713408
          %v959 = vunpack.c.0.s8 %v958
          %v960 = vlaneseq
          %v961 = vshrl.u32 %v960, 7
          %v962 = vsub.s32 %v959, %v961
          %v963 = vrot.slane %v955, %v962
          %v965 = vunpack.c.l.s4 1934713408
          %v966 = vunpack.c.0.s8 %v965
          %v967 = vlaneseq
          %v968 = vshrl.u32 %v967, 7
          %v969 = vsub.s32 %v966, %v968
          %v970 = vrot.slane %v956, %v969
          %v971 = vcombine.high %v947, 0.0
          %v972 = vcombine.high %v954, 0.0
          %v973 = vcombine.high %v963, 0.0
          %v974 = vcombine.high %v970, 0.0
          %v975 = vcombine.low %v881, %v888
          %v977 = vunpack.c.l.s4 1983009808
          %v978 = vunpack.c.0.s8 %v977
          %v979 = vlaneseq
          %v980 = vshrl.u32 %v979, 7
          %v981 = vsub.s32 %v978, %v980
          %v982 = vrot.slane %v975, %v981
          %v983 = vcombine.low %v905, %v906
          %v985 = vunpack.c.l.s4 1983009808
          %v986 = vunpack.c.0.s8 %v985
          %v987 = vlaneseq
          %v988 = vshrl.u32 %v987, 7
          %v989 = vsub.s32 %v986, %v988
          %v990 = vrot.slane %v983, %v989
          %v991 = vcombine.low %v897, %v904
          %v993 = vunpack.c.l.s4 1983009808
          %v994 = vunpack.c.0.s8 %v993
          %v995 = vlaneseq
          %v996 = vshrl.u32 %v995, 7
          %v997 = vsub.s32 %v994, %v996
          %v998 = vrot.slane %v991, %v997
          %v999 = vcombine.low %v907, %v908
          %v1001 = vunpack.c.l.s4 1983009808
          %v1002 = vunpack.c.0.s8 %v1001
          %v1003 = vlaneseq
          %v1004 = vshrl.u32 %v1003, 7
          %v1005 = vsub.s32 %v1002, %v1004
          %v1006 = vrot.slane %v999, %v1005
          %v1007 = vcombine.low %v982, %v990
          %v1009 = vunpack.c.l.s4 1934713408
          %v1010 = vunpack.c.0.s8 %v1009
          %v1011 = vlaneseq
          %v1012 = vshrl.u32 %v1011, 7
          %v1013 = vsub.s32 %v1010, %v1012
          %v1014 = vrot.slane %v1007, %v1013
          %v1015 = vcombine.low %v998, %v1006
          %v1017 = vunpack.c.l.s4 1934713408
          %v1018 = vunpack.c.0.s8 %v1017
          %v1019 = vlaneseq
          %v1020 = vshrl.u32 %v1019, 7
          %v1021 = vsub.s32 %v1018, %v1020
          %v1022 = vrot.slane %v1015, %v1021
          %v1023 = vcombine.low %v1014, %v1022
          %v1024 = vcombine.high %v1014, %v1022
          %v1025 = vcombine.low %v947, %v954
          %v1027 = vunpack.c.l.s4 1983009808
          %v1028 = vunpack.c.0.s8 %v1027
          %v1029 = vlaneseq
          %v1030 = vshrl.u32 %v1029, 7
          %v1031 = vsub.s32 %v1028, %v1030
          %v1032 = vrot.slane %v1025, %v1031
          %v1033 = vcombine.low %v971, %v972
          %v1035 = vunpack.c.l.s4 1983009808
          %v1036 = vunpack.c.0.s8 %v1035
          %v1037 = vlaneseq
          %v1038 = vshrl.u32 %v1037, 7
          %v1039 = vsub.s32 %v1036, %v1038
          %v1040 = vrot.slane %v1033, %v1039
          %v1041 = vcombine.low %v963, %v970
          %v1043 = vunpack.c.l.s4 1983009808
          %v1044 = vunpack.c.0.s8 %v1043
          %v1045 = vlaneseq
          %v1046 = vshrl.u32 %v1045, 7
          %v1047 = vsub.s32 %v1044, %v1046
          %v1048 = vrot.slane %v1041, %v1047
          %v1049 = vcombine.low %v973, %v974
          %v1051 = vunpack.c.l.s4 1983009808
          %v1052 = vunpack.c.0.s8 %v1051
          %v1053 = vlaneseq
          %v1054 = vshrl.u32 %v1053, 7
          %v1055 = vsub.s32 %v1052, %v1054
          %v1056 = vrot.slane %v1049, %v1055
          %v1057 = vcombine.low %v1032, %v1040
          %v1059 = vunpack.c.l.s4 1934713408
          %v1060 = vunpack.c.0.s8 %v1059
          %v1061 = vlaneseq
          %v1062 = vshrl.u32 %v1061, 7
          %v1063 = vsub.s32 %v1060, %v1062
          %v1064 = vrot.slane %v1057, %v1063
          %v1065 = vcombine.low %v1048, %v1056
          %v1067 = vunpack.c.l.s4 1934713408
          %v1068 = vunpack.c.0.s8 %v1067
          %v1069 = vlaneseq
          %v1070 = vshrl.u32 %v1069, 7
          %v1071 = vsub.s32 %v1068, %v1070
          %v1072 = vrot.slane %v1065, %v1071
          %v1073 = vcombine.low %v1064, %v1072
          %v1074 = vcombine.high %v1064, %v1072
          %1077 = vrot.lane.b32.xlu0 %v1024, 16
          %v1078 = vpop.permute.xlu0 %1077
          %1079 = vrot.lane.b32.xlu0 %v1074, 16
          %v1080 = vpop.permute.xlu0 %1079
          %v1083 = vsel %vm459, %v1023, %v1078
          %v1084 = vsel %vm459, %v1073, %v1080
          %v1085 = vpack.c.bf16 %v1084, %v1083
          %v1087 = vunpack.c.l.b16 %v1085
          %v1088 = vunpack.c.h.b16 %v1085
          %v1089 = vpack.c.b16 %v1087, %v1087
          %v1090 = vpack.c.b16 %v1088, %v1088
          %vm1093 = vcmask 257024
          %1094 = vst.msk [vmem:[%s416] sm:$0xf] %vm1093, %v1089
          %1095 = vst.msk [vmem:[%s416 + $0x4] sm:$0xf] %vm1093, %v1090
        $region163: #{sam_vision_encoder_forward.9} parent=142 // pred_fallthru
          _
        %s1096 = smul.u32 2, %s20
        %p1097 = scmp.lt.s32.totalorder %s19, 1
        %s1098 = scalar_select %p1097, %s19, 1
        %p1099 = scmp.lt.s32.totalorder %s1096, 7
        %s1100 = scalar_select %p1099, %s1096, 7
        %s1101 = smul.addr %s1098, 8
        %s1102 = sadd.s32 %s1100, %s1101
        %s1103 = smul.addr %s1102, 4
        %s1104 = scalar_lea.vmem %s3, %s1103
        // Predicated region
        $region164: #{sam_vision_encoder_forward.9} parent=142 // pred_check
          %p1105 = pneg %p137
        $region165: #{sam_vision_encoder_forward.9} parent=142 // pred_check_branch
          %1107 = sbr.rel (%p1105) target = $region167
        $region166: #{sam_vision_encoder_forward.9} parent=142 // pred_region
          %s1108 = smul.u32 2, %s20
        $region167: #{sam_vision_encoder_forward.9} parent=142 // pred_fallthru
          _
      $region143: #{sam_vision_encoder_forward.9} parent=5 // pred_fallthru
        _
      %p1109 = scmp.le.s32.totalorder 2, %s9
      // Predicated region
      $region168: #{sam_vision_encoder_forward.9} parent=5 // pred_check
        %p1110 = pneg %p1109
      $region169: #{sam_vision_encoder_forward.9} parent=5 // pred_check_branch
        %1112 = sbr.rel (%p1110) target = $region171
      $region170: #{sam_vision_encoder_forward.9} parent=5 // pred_region
        %s1113 = ssub.s32 %s9, 2
        // Predicated region
        $region172: #{sam_vision_encoder_forward.9} parent=170 // pred_check
          %p1114 = pneg %p143
        $region173: #{sam_vision_encoder_forward.9} parent=170 // pred_check_branch
          %1116 = sbr.rel (%p1114) target = $region175
        $region174: #{sam_vision_encoder_forward.9} parent=170 // pred_region
          %s1117 = smul.u32 2, %s23
          %p1118 = scmp.lt.s32.totalorder %s22, 1
          %s1119 = scalar_select %p1118, %s22, 1
          %p1120 = scmp.lt.s32.totalorder %s1117, 7
          %s1121 = scalar_select %p1120, %s1117, 7
          %s1122 = smul.addr %s1119, 8
          %s1123 = sadd.s32 %s1121, %s1122
          %s1124 = smul.addr %s1123, 4
          %s1125 = scalar_lea.vmem %s3, %s1124
        $region175: #{sam_vision_encoder_forward.9} parent=170 // pred_fallthru
          _
      $region171: #{sam_vision_encoder_forward.9} parent=5 // pred_fallthru
        _
    $region6: #{sam_vision_encoder_forward.9} parent=1 // loop_footer
      %s13 = sadd.s32 1, %s9
    $region7: #{sam_vision_encoder_forward.9} parent=1 // loop_footer_branch
      %8 = sbr.rel target = $region3
    $region8: #{sam_vision_encoder_forward.9} parent=1 // loop_exit
      _

// kernel: sam_vision_encoder_forward.8
$region0: #{sam_vision_encoder_forward.8}
  #allocation0 [shape = 'u32[]', space=smem, size = 0x4, offset = 0x4, fixed_abs, tag = 'smem constant byte address 0x4 - core index']
  #allocation1 [shape = 'u32[144,128]{1,0:T(1,128)}', space=vmem, size = 0x12000, scoped, tag = 'internal scratch']
  %s0 = inlined_call_operand.vmem [shape: f32[2,64,32], index: 0, kind: input, shape index: {}]
  %s1 = inlined_call_operand.vmem [shape: f32[1,32], index: 1, kind: input, shape index: {}]
  %s2 = inlined_call_operand.vmem [shape: f32[1,32], index: 2, kind: input, shape index: {}]
  %s3 = inlined_call_operand.vmem [shape: bf16[32,96], index: 3, kind: input, shape index: {}]
  %s4 = inlined_call_operand.vmem [shape: f32[1,96], index: 4, kind: input, shape index: {}]
  %s5 = inlined_call_operand.vmem [shape: bf16[2,2,64,16], index: 5, kind: output, shape index: {0}]
  %s6 = inlined_call_operand.vmem [shape: bf16[2,2,64,16], index: 6, kind: output, shape index: {1}]
  %s7 = inlined_call_operand.vmem [shape: bf16[2,2,64,16], index: 7, kind: output, shape index: {2}]
  %8 = xla_tuple %s5, %s6, %s7
  %s9 = sld [smem:[#allocation0]]
  $region180: #{sam_vision_encoder_forward.8} parent=0
    _
  %s11 = ssub.s32 1, %s9
  %s12 = scalar_select 0, %s11, %s9
  $region1: #{sam_vision_encoder_forward.8} parent=0
    #allocation2 [shape = 'u8[16384]{0}', space=vmem, size = 0x4000, scoped, tag = 'output window, operand 0']
    #allocation3 [shape = 'u8[16384]{0}', space=vmem, size = 0x4000, scoped, tag = 'output window, operand 1']
    #allocation4 [shape = 'u8[16384]{0}', space=vmem, size = 0x4000, scoped, tag = 'output window, operand 2']
    loop: start=0, step=1, limit=10
    $region2: #{sam_vision_encoder_forward.8} parent=1 // loop_pre_header
      _
    $region3: #{sam_vision_encoder_forward.8} parent=1 // loop_header
      %s14 = sphi 0, %s18
      %p15 = scmp.ge.s32.totalorder %s14, 10
      %s21 = sphi 0, %s33
      %s22 = sphi 0, %s29
      %s23 = sphi 0, %s21
      %s24 = sphi 0, %s22
      %s25 = sphi 0, %s23
      %s26 = sphi 0, %s24
      %s38 = sphi 0, %s40
      %s41 = sphi 0, %s38
      %s42 = sphi 0, %s41
      %s58 = sphi 0, %s42
      %s62 = sphi 0, %s62
      %s64 = sphi 0, %s62
      %s65 = sphi 0, %s64
      %s79 = sphi 0, %s65
      %s83 = sphi 0, %s83
      %s85 = sphi 0, %s83
      %s86 = sphi 0, %s85
      %s100 = sphi 0, %s86
      %s104 = sphi 0, %s104
      %s106 = sphi 0, %s104
      %s107 = sphi 0, %s106
      %s121 = sphi 0, %s107
      %s125 = sphi 0, %s125
      %s127 = sphi 0, %s125
      %s128 = sphi 0, %s127
      %s142 = sphi 0, %s128
      %s150 = sphi 0, %s152
      %s153 = sphi 0, %s150
      %s154 = sphi 0, %s153
      %s170 = sphi 0, %s154
      %s178 = sphi 0, %s180
      %s181 = sphi 0, %s178
      %s182 = sphi 0, %s181
      %s198 = sphi 0, %s182
      %s206 = sphi 0, %s208
      %s209 = sphi 0, %s206
      %s210 = sphi 0, %s209
      %s226 = sphi 0, %s210
    $region4: #{sam_vision_encoder_forward.8} parent=1 // loop_header_branch
      %17 = sbr.rel (%p15) target = $region8
    $region5: #{sam_vision_encoder_forward.8} parent=1 // loop_body
      %s19 = ssub.s32 %s14, 1
      %s20 = ssub.s32 %s14, 2
      %s27 = sadd.s32 1, %s22
      %p28 = scmp.ge.s32.totalorder %s27, 4
      %s29 = scalar_select %p28, 0, %s27
      %s30 = sadd.s32 1, %s21
      %s31 = scalar_select %p28, %s30, %s21
      %p32 = scmp.ge.s32.totalorder %s31, 2
      %s33 = scalar_select %p32, 0, %s31
      %s34 = ssub.s32 %s21, %s33
      %s35 = ssub.s32 %s22, %s29
      %s36 = sor.u32 %s34, %s35
      %p37 = scmp.eq.s32.totalorder %s36, 0
      %s39 = sadd.s32 %s38, 1
      %s40 = scalar_select %p37, %s38, %s39
      %p43 = pneg %p37
      %p44 = scmp.eq.s32.totalorder %s14, 7
      %p45 = por %p43, %p44
      %p46 = scmp.ne.s32.totalorder %s38, %s41
      %p47 = scmp.eq.s32.totalorder %s14, 0
      %p48 = por %p46, %p47
      %p49 = scmp.ne.s32.totalorder %s38, %s41
      %p50 = scmp.eq.s32.totalorder %s19, 7
      %p51 = por %p49, %p50
      %p52 = scmp.ne.s32.totalorder %s41, %s42
      %p53 = scmp.eq.s32.totalorder %s19, 0
      %p54 = por %p52, %p53
      %p55 = scmp.ne.s32.totalorder %s41, %s42
      %p56 = scmp.eq.s32.totalorder %s20, 7
      %p57 = por %p55, %p56
      %p59 = scmp.ne.s32.totalorder %s42, %s58
      %p60 = scmp.eq.s32.totalorder %s20, 0
      %p61 = por %p59, %p60
      %s63 = sadd.s32 %s62, 1
      %p66 = scmp.eq.s32.totalorder %s14, 7
      %p67 = scmp.ne.s32.totalorder %s62, %s64
      %p68 = scmp.eq.s32.totalorder %s14, 0
      %p69 = por %p67, %p68
      %p70 = scmp.ne.s32.totalorder %s62, %s64
      %p71 = scmp.eq.s32.totalorder %s19, 7
      %p72 = por %p70, %p71
      %p73 = scmp.ne.s32.totalorder %s64, %s65
      %p74 = scmp.eq.s32.totalorder %s19, 0
      %p75 = por %p73, %p74
      %p76 = scmp.ne.s32.totalorder %s64, %s65
      %p77 = scmp.eq.s32.totalorder %s20, 7
      %p78 = por %p76, %p77
      %p80 = scmp.ne.s32.totalorder %s65, %s79
      %p81 = scmp.eq.s32.totalorder %s20, 0
      %p82 = por %p80, %p81
      %s84 = sadd.s32 %s83, 1
      %p87 = scmp.eq.s32.totalorder %s14, 7
      %p88 = scmp.ne.s32.totalorder %s83, %s85
      %p89 = scmp.eq.s32.totalorder %s14, 0
      %p90 = por %p88, %p89
      %p91 = scmp.ne.s32.totalorder %s83, %s85
      %p92 = scmp.eq.s32.totalorder %s19, 7
      %p93 = por %p91, %p92
      %p94 = scmp.ne.s32.totalorder %s85, %s86
      %p95 = scmp.eq.s32.totalorder %s19, 0
      %p96 = por %p94, %p95
      %p97 = scmp.ne.s32.totalorder %s85, %s86
      %p98 = scmp.eq.s32.totalorder %s20, 7
      %p99 = por %p97, %p98
      %p101 = scmp.ne.s32.totalorder %s86, %s100
      %p102 = scmp.eq.s32.totalorder %s20, 0
      %p103 = por %p101, %p102
      %s105 = sadd.s32 %s104, 1
      %p108 = scmp.eq.s32.totalorder %s14, 7
      %p109 = scmp.ne.s32.totalorder %s104, %s106
      %p110 = scmp.eq.s32.totalorder %s14, 0
      %p111 = por %p109, %p110
      %p112 = scmp.ne.s32.totalorder %s104, %s106
      %p113 = scmp.eq.s32.totalorder %s19, 7
      %p114 = por %p112, %p113
      %p115 = scmp.ne.s32.totalorder %s106, %s107
      %p116 = scmp.eq.s32.totalorder %s19, 0
      %p117 = por %p115, %p116
      %p118 = scmp.ne.s32.totalorder %s106, %s107
      %p119 = scmp.eq.s32.totalorder %s20, 7
      %p120 = por %p118, %p119
      %p122 = scmp.ne.s32.totalorder %s107, %s121
      %p123 = scmp.eq.s32.totalorder %s20, 0
      %p124 = por %p122, %p123
      %s126 = sadd.s32 %s125, 1
      %p129 = scmp.eq.s32.totalorder %s14, 7
      %p130 = scmp.ne.s32.totalorder %s125, %s127
      %p131 = scmp.eq.s32.totalorder %s14, 0
      %p132 = por %p130, %p131
      %p133 = scmp.ne.s32.totalorder %s125, %s127
      %p134 = scmp.eq.s32.totalorder %s19, 7
      %p135 = por %p133, %p134
      %p136 = scmp.ne.s32.totalorder %s127, %s128
      %p137 = scmp.eq.s32.totalorder %s19, 0
      %p138 = por %p136, %p137
      %p139 = scmp.ne.s32.totalorder %s127, %s128
      %p140 = scmp.eq.s32.totalorder %s20, 7
      %p141 = por %p139, %p140
      %p143 = scmp.ne.s32.totalorder %s128, %s142
      %p144 = scmp.eq.s32.totalorder %s20, 0
      %p145 = por %p143, %p144
      %s146 = ssub.s32 %s21, %s33
      %s147 = ssub.s32 %s22, %s29
      %s148 = sor.u32 %s146, %s147
      %p149 = scmp.eq.s32.totalorder %s148, 0
      %s151 = sadd.s32 %s150, 1
      %s152 = scalar_select %p149, %s150, %s151
      %p155 = pneg %p149
      %p156 = scmp.eq.s32.totalorder %s14, 7
      %p157 = por %p155, %p156
      %p158 = scmp.ne.s32.totalorder %s150, %s153
      %p159 = scmp.eq.s32.totalorder %s14, 0
      %p160 = por %p158, %p159
      %p161 = scmp.ne.s32.totalorder %s150, %s153
      %p162 = scmp.eq.s32.totalorder %s19, 7
      %p163 = por %p161, %p162
      %p164 = scmp.ne.s32.totalorder %s153, %s154
      %p165 = scmp.eq.s32.totalorder %s19, 0
      %p166 = por %p164, %p165
      %p167 = scmp.ne.s32.totalorder %s153, %s154
      %p168 = scmp.eq.s32.totalorder %s20, 7
      %p169 = por %p167, %p168
      %p171 = scmp.ne.s32.totalorder %s154, %s170
      %p172 = scmp.eq.s32.totalorder %s20, 0
      %p173 = por %p171, %p172
      %s174 = ssub.s32 %s21, %s33
      %s175 = ssub.s32 %s22, %s29
      %s176 = sor.u32 %s174, %s175
      %p177 = scmp.eq.s32.totalorder %s176, 0
      %s179 = sadd.s32 %s178, 1
      %s180 = scalar_select %p177, %s178, %s179
      %p183 = pneg %p177
      %p184 = scmp.eq.s32.totalorder %s14, 7
      %p185 = por %p183, %p184
      %p186 = scmp.ne.s32.totalorder %s178, %s181
      %p187 = scmp.eq.s32.totalorder %s14, 0
      %p188 = por %p186, %p187
      %p189 = scmp.ne.s32.totalorder %s178, %s181
      %p190 = scmp.eq.s32.totalorder %s19, 7
      %p191 = por %p189, %p190
      %p192 = scmp.ne.s32.totalorder %s181, %s182
      %p193 = scmp.eq.s32.totalorder %s19, 0
      %p194 = por %p192, %p193
      %p195 = scmp.ne.s32.totalorder %s181, %s182
      %p196 = scmp.eq.s32.totalorder %s20, 7
      %p197 = por %p195, %p196
      %p199 = scmp.ne.s32.totalorder %s182, %s198
      %p200 = scmp.eq.s32.totalorder %s20, 0
      %p201 = por %p199, %p200
      %s202 = ssub.s32 %s21, %s33
      %s203 = ssub.s32 %s22, %s29
      %s204 = sor.u32 %s202, %s203
      %p205 = scmp.eq.s32.totalorder %s204, 0
      %s207 = sadd.s32 %s206, 1
      %s208 = scalar_select %p205, %s206, %s207
      %p211 = pneg %p205
      %p212 = scmp.eq.s32.totalorder %s14, 7
      %p213 = por %p211, %p212
      %p214 = scmp.ne.s32.totalorder %s206, %s209
      %p215 = scmp.eq.s32.totalorder %s14, 0
      %p216 = por %p214, %p215
      %p217 = scmp.ne.s32.totalorder %s206, %s209
      %p218 = scmp.eq.s32.totalorder %s19, 7
      %p219 = por %p217, %p218
      %p220 = scmp.ne.s32.totalorder %s209, %s210
      %p221 = scmp.eq.s32.totalorder %s19, 0
      %p222 = por %p220, %p221
      %p223 = scmp.ne.s32.totalorder %s209, %s210
      %p224 = scmp.eq.s32.totalorder %s20, 7
      %p225 = por %p223, %p224
      %p227 = scmp.ne.s32.totalorder %s210, %s226
      %p228 = scmp.eq.s32.totalorder %s20, 0
      %p229 = por %p227, %p228
      %p230 = scmp.le.s32.totalorder 1, %s14
      %p231 = scmp.lt.s32.totalorder %s14, 9
      %p232 = pnand %p230, %p231
      %p233 = pneg %p232
      // Predicated region
      $region9: #{sam_vision_encoder_forward.8} parent=5 // pred_check
        _
      $region10: #{sam_vision_encoder_forward.8} parent=5 // pred_check_branch
        %235 = sbr.rel (%p232) target = $region12
      $region11: #{sam_vision_encoder_forward.8} parent=5 // pred_region
        %s236 = ssub.s32 %s14, 1
        // Predicated region
        $region13: #{sam_vision_encoder_forward.8} parent=11 // pred_check
          %p237 = pneg %p75
        $region14: #{sam_vision_encoder_forward.8} parent=11 // pred_check_branch
          %239 = sbr.rel (%p237) target = $region16
        $region15: #{sam_vision_encoder_forward.8} parent=11 // pred_region
          _
        $region16: #{sam_vision_encoder_forward.8} parent=11 // pred_fallthru
          _
        // Predicated region
        $region17: #{sam_vision_encoder_forward.8} parent=11 // pred_check
          %p240 = pneg %p96
        $region18: #{sam_vision_encoder_forward.8} parent=11 // pred_check_branch
          %242 = sbr.rel (%p240) target = $region20
        $region19: #{sam_vision_encoder_forward.8} parent=11 // pred_region
          _
        $region20: #{sam_vision_encoder_forward.8} parent=11 // pred_fallthru
          _
        // Predicated region
        $region21: #{sam_vision_encoder_forward.8} parent=11 // pred_check
          %p243 = pneg %p117
        $region22: #{sam_vision_encoder_forward.8} parent=11 // pred_check_branch
          %245 = sbr.rel (%p243) target = $region24
        $region23: #{sam_vision_encoder_forward.8} parent=11 // pred_region
          _
        $region24: #{sam_vision_encoder_forward.8} parent=11 // pred_fallthru
          _
        // Predicated region
        $region25: #{sam_vision_encoder_forward.8} parent=11 // pred_check
          %p246 = pneg %p138
        $region26: #{sam_vision_encoder_forward.8} parent=11 // pred_check_branch
          %248 = sbr.rel (%p246) target = $region28
        $region27: #{sam_vision_encoder_forward.8} parent=11 // pred_region
          _
        $region28: #{sam_vision_encoder_forward.8} parent=11 // pred_fallthru
          _
      $region12: #{sam_vision_encoder_forward.8} parent=5 // pred_fallthru
        _
      %p249 = scmp.lt.s32.totalorder %s14, 8
      // Predicated region
      $region29: #{sam_vision_encoder_forward.8} parent=5 // pred_check
        %p250 = pneg %p249
      $region30: #{sam_vision_encoder_forward.8} parent=5 // pred_check_branch
        %252 = sbr.rel (%p250) target = $region32
      $region31: #{sam_vision_encoder_forward.8} parent=5 // pred_region
        // Predicated region
        $region33: #{sam_vision_encoder_forward.8} parent=31 // pred_check
          %p253 = pneg %p48
        $region34: #{sam_vision_encoder_forward.8} parent=31 // pred_check_branch
          %255 = sbr.rel (%p253) target = $region36
        $region35: #{sam_vision_encoder_forward.8} parent=31 // pred_region
          %s256 = smul.u32 2, %s22
          %p257 = scmp.lt.s32.totalorder %s21, 1
          %s258 = scalar_select %p257, %s21, 1
          %p259 = scmp.lt.s32.totalorder %s256, 7
          %s260 = scalar_select %p259, %s256, 7
          %s261 = smul.addr %s258, 8
          %s262 = sadd.s32 %s260, %s261
          %s263 = smul.addr %s262, 8
          %s264 = scalar_lea.vmem %s0, %s263
          %s265 = smul.u32 2, %s22
        $region36: #{sam_vision_encoder_forward.8} parent=31 // pred_fallthru
          _
      $region32: #{sam_vision_encoder_forward.8} parent=5 // pred_fallthru
        _
      %p266 = scmp.le.s32.totalorder 1, %s14
      %p267 = scmp.lt.s32.totalorder %s14, 9
      %p268 = pnand %p266, %p267
      %p269 = pneg %p268
      // Predicated region
      $region37: #{sam_vision_encoder_forward.8} parent=5 // pred_check
        _
      $region38: #{sam_vision_encoder_forward.8} parent=5 // pred_check_branch
        %271 = sbr.rel (%p268) target = $region40
      $region39: #{sam_vision_encoder_forward.8} parent=5 // pred_region
        %s272 = ssub.s32 %s14, 1
        %s273 = smul.u32 2, %s24
        %p274 = scmp.lt.s32.totalorder %s23, 1
        %s275 = scalar_select %p274, %s23, 1
        %p276 = scmp.lt.s32.totalorder %s273, 7
        %s277 = scalar_select %p276, %s273, 7
        %s278 = smul.addr %s275, 8
        %s279 = sadd.s32 %s277, %s278
        %s280 = smul.addr %s279, 8
        %s281 = scalar_lea.vmem %s0, %s280
        %p282 = pneg %p54
        %p283 = pneg %p51
        %p284 = pneg %p75
        %p285 = pneg %p72
        %p286 = pneg %p96
        %p287 = pneg %p93
        %p288 = pneg %p117
        %p289 = pneg %p114
        %p290 = pneg %p138
        %p291 = pneg %p135
        %p292 = pneg %p166
        %p293 = pneg %p163
        %s294 = sand.u32 %s153, 1
        %s295 = sand.u32 %s153, 1
        %s296 = smul.addr %s295, 16
        %s297 = scalar_lea.vmem [#allocation2], %s296
        %p298 = pneg %p194
        %p299 = pneg %p191
        %s300 = sand.u32 %s181, 1
        %s301 = sand.u32 %s181, 1
        %s302 = smul.addr %s301, 16
        %s303 = scalar_lea.vmem [#allocation3], %s302
        %p304 = pneg %p222
        %p305 = pneg %p219
        %s306 = sand.u32 %s209, 1
        %s307 = sand.u32 %s209, 1
        %s308 = smul.addr %s307, 16
        %s309 = scalar_lea.vmem [#allocation4], %s308
        %s310 = smul.u32 2, %s24
        %p311 = scmp.lt.s32.totalorder %s23, 1
        %s312 = scalar_select %p311, %s23, 1
        %p313 = scmp.lt.s32.totalorder %s310, 7
        %s314 = scalar_select %p313, %s310, 7
        %s315 = smul.addr %s312, 8
        %s316 = sadd.s32 %s314, %s315
        %s317 = smul.addr %s316, 8
        %s318 = scalar_lea.vmem %s0, %s317
        %s319 = smul.u32 2, %s24
        %s320 = smul.u32 2, %s24
        %s321 = smul.u32 2, %s24
        %s322 = smul.u32 2, %s24
        %v324 = vld [vmem:[%s318] sm:$0xff]
        %v325 = vld [vmem:[%s318 + $0x8] sm:$0xff]
        %v326 = vld [vmem:[%s1] sm:$0x1]
        %v327 = vld [vmem:[%s2] sm:$0x1]
        %vm328 = vcmask 261120
        %v329 = vsel %vm328, %v324, 0.0
        %330 = vadd.xlane.f32.xlu0 %v329
        %v331 = vpop.xlane.xlu0 %330
        %v332 = vsel %vm328, %v325, 0.0
        %333 = vadd.xlane.f32.xlu0 %v332
        %v334 = vpop.xlane.xlu0 %333
        %v335 = vrcp.pop 32.0
        %v336 = vmul.f32 %v331, %v335
        %v337 = vmul.f32 %v334, %v335
        %v338 = vmul.f32 %v324, %v324
        %v339 = vmul.f32 %v325, %v325
        %v340 = vsel %vm328, %v338, 0.0
        %341 = vadd.xlane.f32.xlu0 %v340
        %v342 = vpop.xlane.xlu0 %341
        %v343 = vsel %vm328, %v339, 0.0
        %344 = vadd.xlane.f32.xlu0 %v343
        %v345 = vpop.xlane.xlu0 %344
        %v346 = vmul.f32 %v342, %v335
        %v347 = vmul.f32 %v345, %v335
        %v348 = vmul.f32 %v336, %v336
        %v349 = vmul.f32 %v337, %v337
        %v350 = vsub.f32 %v346, %v348
        %v351 = vsub.f32 %v347, %v349
        %v352 = vmax.f32 %v350, 0.0
        %v353 = vmax.f32 %v351, 0.0
        %v354 = vsub.f32 %v324, %v336
        %v355 = vsub.f32 %v325, %v337
        %v356 = vadd.f32 %v352, 1e-06
        %v357 = vadd.f32 %v353, 1e-06
        %v358 = vrsqrt.pop %v356
        %v359 = vrsqrt.pop %v357
        %v360 = vmul.f32 %v354, %v358
        %v361 = vmul.f32 %v355, %v359
        %v363 = vlaneseq
        %v364 = vshrl.u32 %v363, 7
        %v365 = vsub.s32 0, %v364
        %v366 = vrot.slane %v326, %v365
        %v368 = vmul.f32 %v360, %v366
        %v369 = vmul.f32 %v361, %v366
        %v371 = vlaneseq
        %v372 = vshrl.u32 %v371, 7
        %v373 = vsub.s32 0, %v372
        %v374 = vrot.slane %v327, %v373
        %v376 = vadd.f32 %v368, %v374
        %v377 = vadd.f32 %v369, %v374
        %v378 = vpack.c.bf16 %v377, %v376
        %v379 = vld [vmem:[%s3] sm:$0xf]
        %v380 = vld [vmem:[%s3 + $0x4] sm:$0xf]
        %v381 = vld [vmem:[%s3 + $0x8] sm:$0xf]
        %v382 = vld [vmem:[%s3 + $0xc] sm:$0xf]
        %v383 = vld [vmem:[%s4] sm:$0x1]
        %v385 = vlaneseq
        %v386 = vshrl.u32 %v385, 7
        %v387 = vsub.s32 0, %v386
        %v388 = vrot.slane %v383, %v387
        %v394 = vunpack.c.l.b16 %v379
        %v395 = vunpack.c.l.b16 %v380
        %v396 = vunpack.c.l.b16 %v381
        %v397 = vunpack.c.l.b16 %v382
        %v398 = vpack.c.b16 %v395, %v394
        %v399 = vpack.c.b16 %v397, %v396
        %v403 = vsel %vm328, %v378, 0
        %405 = vmatprep.subr.bf16.mxu0 0
        %406 = vmatpush1.bf16.msra.mxu0 %v398
        %407 = vmatprep.subr.bf16.mxu0 0
        %408 = vmatpush1.bf16.msra.mxu0 %v399
        %409 = vmatprep.subr.bf16.mxu0 0
        %410 = vmatpush1.bf16.msra.mxu0 0
        %411 = vmatprep.subr.bf16.mxu0 0
        %412 = vmatpush1.bf16.msra.mxu0 0
        %413 = vmatprep.subr.bf16.mxu0 0
        %414 = vmatpush1.bf16.msra.mxu0 0
        %415 = vmatprep.subr.bf16.mxu0 0
        %416 = vmatpush1.bf16.msra.mxu0 0
        %417 = vmatprep.subr.bf16.mxu0 0
        %418 = vmatpush1.bf16.msra.mxu0 0
        %419 = vmatprep.subr.bf16.mxu0 0
        %420 = vmatpush1.bf16.msra.mxu0 0
        %421 = vmatprep.subr.bf16.mxu0 0
        %422 = vmatpush1.bf16.msra.mxu0 0
        %423 = vmatprep.subr.bf16.mxu0 0
        %424 = vmatpush1.bf16.msra.mxu0 0
        %425 = vmatprep.subr.bf16.mxu0 0
        %426 = vmatpush1.bf16.msra.mxu0 0
        %427 = vmatprep.subr.bf16.mxu0 0
        %428 = vmatpush1.bf16.msra.mxu0 0
        %429 = vmatprep.subr.bf16.mxu0 0
        %430 = vmatpush1.bf16.msra.mxu0 0
        %431 = vmatprep.subr.bf16.mxu0 0
        %432 = vmatpush1.bf16.msra.mxu0 0
        %433 = vmatprep.subr.bf16.mxu0 0
        %434 = vmatpush1.bf16.msra.mxu0 0
        %435 = vmatprep.subr.bf16.mxu0 0
        %436 = vmatpush1.bf16.msra.mxu0 0
        %437 = vmatprep.mubr.bf16.mxu0 0
        %438 = vmatmul.mubr.bf16.gmra.mrb[0].mxu0 %v403
        %v439 = vpop.f32.mrb[0].mxu0
        %v440 = vadd.f32 %v388, %v439
        %v441 = vpop.f32.mrb[0].mxu0
        %v442 = vpop.f32.mrb[0].mxu0
        %v443 = vadd.f32 %v388, %v442
        %v444 = vpop.f32.mrb[0].mxu0
        %445 = vdwg.mxu0
        %448 = vrot.lane.b32.xlu0 %v440, 112
        %v449 = vpop.permute.xlu0 %448
        %450 = vrot.lane.b32.xlu0 %v443, 112
        %v451 = vpop.permute.xlu0 %450
        %v454 = vcombine.high %v440, 0.0
        %v456 = vunpack.c.l.s4 1983009808
        %v457 = vunpack.c.0.s8 %v456
        %v458 = vlaneseq
        %v459 = vshrl.u32 %v458, 7
        %v460 = vsub.s32 %v457, %v459
        %v461 = vrot.slane %v440, %v460
        %v463 = vunpack.c.l.s4 1983009808
        %v464 = vunpack.c.0.s8 %v463
        %v465 = vlaneseq
        %v466 = vshrl.u32 %v465, 7
        %v467 = vsub.s32 %v464, %v466
        %v468 = vrot.slane %v454, %v467
        %v469 = vcombine.high %v449, 0.0
        %v471 = vunpack.c.l.s4 1983009808
        %v472 = vunpack.c.0.s8 %v471
        %v473 = vlaneseq
        %v474 = vshrl.u32 %v473, 7
        %v475 = vsub.s32 %v472, %v474
        %v476 = vrot.slane %v449, %v475
        %v478 = vunpack.c.l.s4 1983009808
        %v479 = vunpack.c.0.s8 %v478
        %v480 = vlaneseq
        %v481 = vshrl.u32 %v480, 7
        %v482 = vsub.s32 %v479, %v481
        %v483 = vrot.slane %v469, %v482
        %v484 = vcombine.low %v461, %v476
        %v485 = vcombine.high %v461, %v476
        %v487 = vunpack.c.l.s4 1934713408
        %v488 = vunpack.c.0.s8 %v487
        %v489 = vlaneseq
        %v490 = vshrl.u32 %v489, 7
        %v491 = vsub.s32 %v488, %v490
        %v492 = vrot.slane %v484, %v491
        %v494 = vunpack.c.l.s4 1934713408
        %v495 = vunpack.c.0.s8 %v494
        %v496 = vlaneseq
        %v497 = vshrl.u32 %v496, 7
        %v498 = vsub.s32 %v495, %v497
        %v499 = vrot.slane %v485, %v498
        %v500 = vcombine.low %v468, %v483
        %v501 = vcombine.high %v468, %v483
        %v503 = vunpack.c.l.s4 1934713408
        %v504 = vunpack.c.0.s8 %v503
        %v505 = vlaneseq
        %v506 = vshrl.u32 %v505, 7
        %v507 = vsub.s32 %v504, %v506
        %v508 = vrot.slane %v500, %v507
        %v510 = vunpack.c.l.s4 1934713408
        %v511 = vunpack.c.0.s8 %v510
        %v512 = vlaneseq
        %v513 = vshrl.u32 %v512, 7
        %v514 = vsub.s32 %v511, %v513
        %v515 = vrot.slane %v501, %v514
        %v516 = vcombine.high %v492, 0.0
        %v517 = vcombine.high %v499, 0.0
        %v518 = vcombine.high %v508, 0.0
        %v519 = vcombine.high %v515, 0.0
        %v520 = vcombine.high %v443, 0.0
        %v522 = vunpack.c.l.s4 1983009808
        %v523 = vunpack.c.0.s8 %v522
        %v524 = vlaneseq
        %v525 = vshrl.u32 %v524, 7
        %v526 = vsub.s32 %v523, %v525
        %v527 = vrot.slane %v443, %v526
        %v529 = vunpack.c.l.s4 1983009808
        %v530 = vunpack.c.0.s8 %v529
        %v531 = vlaneseq
        %v532 = vshrl.u32 %v531, 7
        %v533 = vsub.s32 %v530, %v532
        %v534 = vrot.slane %v520, %v533
        %v535 = vcombine.high %v451, 0.0
        %v537 = vunpack.c.l.s4 1983009808
        %v538 = vunpack.c.0.s8 %v537
        %v539 = vlaneseq
        %v540 = vshrl.u32 %v539, 7
        %v541 = vsub.s32 %v538, %v540
        %v542 = vrot.slane %v451, %v541
        %v544 = vunpack.c.l.s4 1983009808
        %v545 = vunpack.c.0.s8 %v544
        %v546 = vlaneseq
        %v547 = vshrl.u32 %v546, 7
        %v548 = vsub.s32 %v545, %v547
        %v549 = vrot.slane %v535, %v548
        %v550 = vcombine.low %v527, %v542
        %v551 = vcombine.high %v527, %v542
        %v553 = vunpack.c.l.s4 1934713408
        %v554 = vunpack.c.0.s8 %v553
        %v555 = vlaneseq
        %v556 = vshrl.u32 %v555, 7
        %v557 = vsub.s32 %v554, %v556
        %v558 = vrot.slane %v550, %v557
        %v560 = vunpack.c.l.s4 1934713408
        %v561 = vunpack.c.0.s8 %v560
        %v562 = vlaneseq
        %v563 = vshrl.u32 %v562, 7
        %v564 = vsub.s32 %v561, %v563
        %v565 = vrot.slane %v551, %v564
        %v566 = vcombine.low %v534, %v549
        %v567 = vcombine.high %v534, %v549
        %v569 = vunpack.c.l.s4 1934713408
        %v570 = vunpack.c.0.s8 %v569
        %v571 = vlaneseq
        %v572 = vshrl.u32 %v571, 7
        %v573 = vsub.s32 %v570, %v572
        %v574 = vrot.slane %v566, %v573
        %v576 = vunpack.c.l.s4 1934713408
        %v577 = vunpack.c.0.s8 %v576
        %v578 = vlaneseq
        %v579 = vshrl.u32 %v578, 7
        %v580 = vsub.s32 %v577, %v579
        %v581 = vrot.slane %v567, %v580
        %v582 = vcombine.high %v558, 0.0
        %v583 = vcombine.high %v565, 0.0
        %v584 = vcombine.high %v574, 0.0
        %v585 = vcombine.high %v581, 0.0
        %v586 = vcombine.low %v492, %v499
        %v588 = vunpack.c.l.s4 1983009808
        %v589 = vunpack.c.0.s8 %v588
        %v590 = vlaneseq
        %v591 = vshrl.u32 %v590, 7
        %v592 = vsub.s32 %v589, %v591
        %v593 = vrot.slane %v586, %v592
        %v594 = vcombine.low %v516, %v517
        %v596 = vunpack.c.l.s4 1983009808
        %v597 = vunpack.c.0.s8 %v596
        %v598 = vlaneseq
        %v599 = vshrl.u32 %v598, 7
        %v600 = vsub.s32 %v597, %v599
        %v601 = vrot.slane %v594, %v600
        %v602 = vcombine.low %v508, %v515
        %v604 = vunpack.c.l.s4 1983009808
        %v605 = vunpack.c.0.s8 %v604
        %v606 = vlaneseq
        %v607 = vshrl.u32 %v606, 7
        %v608 = vsub.s32 %v605, %v607
        %v609 = vrot.slane %v602, %v608
        %v610 = vcombine.low %v518, %v519
        %v612 = vunpack.c.l.s4 1983009808
        %v613 = vunpack.c.0.s8 %v612
        %v614 = vlaneseq
        %v615 = vshrl.u32 %v614, 7
        %v616 = vsub.s32 %v613, %v615
        %v617 = vrot.slane %v610, %v616
        %v618 = vcombine.low %v593, %v601
        %v620 = vunpack.c.l.s4 1934713408
        %v621 = vunpack.c.0.s8 %v620
        %v622 = vlaneseq
        %v623 = vshrl.u32 %v622, 7
        %v624 = vsub.s32 %v621, %v623
        %v625 = vrot.slane %v618, %v624
        %v626 = vcombine.low %v609, %v617
        %v628 = vunpack.c.l.s4 1934713408
        %v629 = vunpack.c.0.s8 %v628
        %v630 = vlaneseq
        %v631 = vshrl.u32 %v630, 7
        %v632 = vsub.s32 %v629, %v631
        %v633 = vrot.slane %v626, %v632
        %v634 = vcombine.low %v625, %v633
        %v635 = vcombine.high %v625, %v633
        %v636 = vcombine.low %v558, %v565
        %v638 = vunpack.c.l.s4 1983009808
        %v639 = vunpack.c.0.s8 %v638
        %v640 = vlaneseq
        %v641 = vshrl.u32 %v640, 7
        %v642 = vsub.s32 %v639, %v641
        %v643 = vrot.slane %v636, %v642
        %v644 = vcombine.low %v582, %v583
        %v646 = vunpack.c.l.s4 1983009808
        %v647 = vunpack.c.0.s8 %v646
        %v648 = vlaneseq
        %v649 = vshrl.u32 %v648, 7
        %v650 = vsub.s32 %v647, %v649
        %v651 = vrot.slane %v644, %v650
        %v652 = vcombine.low %v574, %v581
        %v654 = vunpack.c.l.s4 1983009808
        %v655 = vunpack.c.0.s8 %v654
        %v656 = vlaneseq
        %v657 = vshrl.u32 %v656, 7
        %v658 = vsub.s32 %v655, %v657
        %v659 = vrot.slane %v652, %v658
        %v660 = vcombine.low %v584, %v585
        %v662 = vunpack.c.l.s4 1983009808
        %v663 = vunpack.c.0.s8 %v662
        %v664 = vlaneseq
        %v665 = vshrl.u32 %v664, 7
        %v666 = vsub.s32 %v663, %v665
        %v667 = vrot.slane %v660, %v666
        %v668 = vcombine.low %v643, %v651
        %v670 = vunpack.c.l.s4 1934713408
        %v671 = vunpack.c.0.s8 %v670
        %v672 = vlaneseq
        %v673 = vshrl.u32 %v672, 7
        %v674 = vsub.s32 %v671, %v673
        %v675 = vrot.slane %v668, %v674
        %v676 = vcombine.low %v659, %v667
        %v678 = vunpack.c.l.s4 1934713408
        %v679 = vunpack.c.0.s8 %v678
        %v680 = vlaneseq
        %v681 = vshrl.u32 %v680, 7
        %v682 = vsub.s32 %v679, %v681
        %v683 = vrot.slane %v676, %v682
        %v684 = vcombine.low %v675, %v683
        %v685 = vcombine.high %v675, %v683
        %v686 = vpack.c.bf16 %v684, %v634
        %v687 = vpack.c.bf16 %v685, %v635
        %v690 = vunpack.c.l.b16 %v686
        %v691 = vunpack.c.h.b16 %v686
        %v692 = vunpack.c.l.b16 %v687
        %v693 = vunpack.c.h.b16 %v687
        %v694 = vpack.c.b16 %v690, %v690
        %v695 = vpack.c.b16 %v691, %v691
        %v696 = vpack.c.b16 %v692, %v692
        %v697 = vpack.c.b16 %v693, %v693
        %vm702 = vcmask 125952
        %703 = vst.msk [vmem:[%s297] sm:$0xf] %vm702, %v694
        %704 = vst.msk [vmem:[%s297 + $0x4] sm:$0xf] %vm702, %v695
        %705 = vst.msk [vmem:[%s297 + $0x8] sm:$0xf] %vm702, %v696
        %706 = vst.msk [vmem:[%s297 + $0xc] sm:$0xf] %vm702, %v697
        %707 = vrot.lane.b32.xlu0 %v440, 96
        %v708 = vpop.permute.xlu0 %707
        %709 = vrot.lane.b32.xlu0 %v443, 96
        %v710 = vpop.permute.xlu0 %709
        %711 = vrot.lane.b32.xlu0 %v449, 96
        %v712 = vpop.permute.xlu0 %711
        %713 = vrot.lane.b32.xlu0 %v451, 96
        %v714 = vpop.permute.xlu0 %713
        %v719 = vcombine.high %v708, 0.0
        %v721 = vunpack.c.l.s4 1983009808
        %v722 = vunpack.c.0.s8 %v721
        %v723 = vlaneseq
        %v724 = vshrl.u32 %v723, 7
        %v725 = vsub.s32 %v722, %v724
        %v726 = vrot.slane %v708, %v725
        %v728 = vunpack.c.l.s4 1983009808
        %v729 = vunpack.c.0.s8 %v728
        %v730 = vlaneseq
        %v731 = vshrl.u32 %v730, 7
        %v732 = vsub.s32 %v729, %v731
        %v733 = vrot.slane %v719, %v732
        %v734 = vcombine.high %v712, 0.0
        %v736 = vunpack.c.l.s4 1983009808
        %v737 = vunpack.c.0.s8 %v736
        %v738 = vlaneseq
        %v739 = vshrl.u32 %v738, 7
        %v740 = vsub.s32 %v737, %v739
        %v741 = vrot.slane %v712, %v740
        %v743 = vunpack.c.l.s4 1983009808
        %v744 = vunpack.c.0.s8 %v743
        %v745 = vlaneseq
        %v746 = vshrl.u32 %v745, 7
        %v747 = vsub.s32 %v744, %v746
        %v748 = vrot.slane %v734, %v747
        %v749 = vcombine.low %v726, %v741
        %v750 = vcombine.high %v726, %v741
        %v752 = vunpack.c.l.s4 1934713408
        %v753 = vunpack.c.0.s8 %v752
        %v754 = vlaneseq
        %v755 = vshrl.u32 %v754, 7
        %v756 = vsub.s32 %v753, %v755
        %v757 = vrot.slane %v749, %v756
        %v759 = vunpack.c.l.s4 1934713408
        %v760 = vunpack.c.0.s8 %v759
        %v761 = vlaneseq
        %v762 = vshrl.u32 %v761, 7
        %v763 = vsub.s32 %v760, %v762
        %v764 = vrot.slane %v750, %v763
        %v765 = vcombine.low %v733, %v748
        %v766 = vcombine.high %v733, %v748
        %v768 = vunpack.c.l.s4 1934713408
        %v769 = vunpack.c.0.s8 %v768
        %v770 = vlaneseq
        %v771 = vshrl.u32 %v770, 7
        %v772 = vsub.s32 %v769, %v771
        %v773 = vrot.slane %v765, %v772
        %v775 = vunpack.c.l.s4 1934713408
        %v776 = vunpack.c.0.s8 %v775
        %v777 = vlaneseq
        %v778 = vshrl.u32 %v777, 7
        %v779 = vsub.s32 %v776, %v778
        %v780 = vrot.slane %v766, %v779
        %v781 = vcombine.high %v757, 0.0
        %v782 = vcombine.high %v764, 0.0
        %v783 = vcombine.high %v773, 0.0
        %v784 = vcombine.high %v780, 0.0
        %v785 = vcombine.high %v710, 0.0
        %v787 = vunpack.c.l.s4 1983009808
        %v788 = vunpack.c.0.s8 %v787
        %v789 = vlaneseq
        %v790 = vshrl.u32 %v789, 7
        %v791 = vsub.s32 %v788, %v790
        %v792 = vrot.slane %v710, %v791
        %v794 = vunpack.c.l.s4 1983009808
        %v795 = vunpack.c.0.s8 %v794
        %v796 = vlaneseq
        %v797 = vshrl.u32 %v796, 7
        %v798 = vsub.s32 %v795, %v797
        %v799 = vrot.slane %v785, %v798
        %v800 = vcombine.high %v714, 0.0
        %v802 = vunpack.c.l.s4 1983009808
        %v803 = vunpack.c.0.s8 %v802
        %v804 = vlaneseq
        %v805 = vshrl.u32 %v804, 7
        %v806 = vsub.s32 %v803, %v805
        %v807 = vrot.slane %v714, %v806
        %v809 = vunpack.c.l.s4 1983009808
        %v810 = vunpack.c.0.s8 %v809
        %v811 = vlaneseq
        %v812 = vshrl.u32 %v811, 7
        %v813 = vsub.s32 %v810, %v812
        %v814 = vrot.slane %v800, %v813
        %v815 = vcombine.low %v792, %v807
        %v816 = vcombine.high %v792, %v807
        %v818 = vunpack.c.l.s4 1934713408
        %v819 = vunpack.c.0.s8 %v818
        %v820 = vlaneseq
        %v821 = vshrl.u32 %v820, 7
        %v822 = vsub.s32 %v819, %v821
        %v823 = vrot.slane %v815, %v822
        %v825 = vunpack.c.l.s4 1934713408
        %v826 = vunpack.c.0.s8 %v825
        %v827 = vlaneseq
        %v828 = vshrl.u32 %v827, 7
        %v829 = vsub.s32 %v826, %v828
        %v830 = vrot.slane %v816, %v829
        %v831 = vcombine.low %v799, %v814
        %v832 = vcombine.high %v799, %v814
        %v834 = vunpack.c.l.s4 1934713408
        %v835 = vunpack.c.0.s8 %v834
        %v836 = vlaneseq
        %v837 = vshrl.u32 %v836, 7
        %v838 = vsub.s32 %v835, %v837
        %v839 = vrot.slane %v831, %v838
        %v841 = vunpack.c.l.s4 1934713408
        %v842 = vunpack.c.0.s8 %v841
        %v843 = vlaneseq
        %v844 = vshrl.u32 %v843, 7
        %v845 = vsub.s32 %v842, %v844
        %v846 = vrot.slane %v832, %v845
        %v847 = vcombine.high %v823, 0.0
        %v848 = vcombine.high %v830, 0.0
        %v849 = vcombine.high %v839, 0.0
        %v850 = vcombine.high %v846, 0.0
        %v851 = vcombine.low %v757, %v764
        %v853 = vunpack.c.l.s4 1983009808
        %v854 = vunpack.c.0.s8 %v853
        %v855 = vlaneseq
        %v856 = vshrl.u32 %v855, 7
        %v857 = vsub.s32 %v854, %v856
        %v858 = vrot.slane %v851, %v857
        %v859 = vcombine.low %v781, %v782
        %v861 = vunpack.c.l.s4 1983009808
        %v862 = vunpack.c.0.s8 %v861
        %v863 = vlaneseq
        %v864 = vshrl.u32 %v863, 7
        %v865 = vsub.s32 %v862, %v864
        %v866 = vrot.slane %v859, %v865
        %v867 = vcombine.low %v773, %v780
        %v869 = vunpack.c.l.s4 1983009808
        %v870 = vunpack.c.0.s8 %v869
        %v871 = vlaneseq
        %v872 = vshrl.u32 %v871, 7
        %v873 = vsub.s32 %v870, %v872
        %v874 = vrot.slane %v867, %v873
        %v875 = vcombine.low %v783, %v784
        %v877 = vunpack.c.l.s4 1983009808
        %v878 = vunpack.c.0.s8 %v877
        %v879 = vlaneseq
        %v880 = vshrl.u32 %v879, 7
        %v881 = vsub.s32 %v878, %v880
        %v882 = vrot.slane %v875, %v881
        %v883 = vcombine.low %v858, %v866
        %v885 = vunpack.c.l.s4 1934713408
        %v886 = vunpack.c.0.s8 %v885
        %v887 = vlaneseq
        %v888 = vshrl.u32 %v887, 7
        %v889 = vsub.s32 %v886, %v888
        %v890 = vrot.slane %v883, %v889
        %v891 = vcombine.low %v874, %v882
        %v893 = vunpack.c.l.s4 1934713408
        %v894 = vunpack.c.0.s8 %v893
        %v895 = vlaneseq
        %v896 = vshrl.u32 %v895, 7
        %v897 = vsub.s32 %v894, %v896
        %v898 = vrot.slane %v891, %v897
        %v899 = vcombine.low %v890, %v898
        %v900 = vcombine.high %v890, %v898
        %v901 = vcombine.low %v823, %v830
        %v903 = vunpack.c.l.s4 1983009808
        %v904 = vunpack.c.0.s8 %v903
        %v905 = vlaneseq
        %v906 = vshrl.u32 %v905, 7
        %v907 = vsub.s32 %v904, %v906
        %v908 = vrot.slane %v901, %v907
        %v909 = vcombine.low %v847, %v848
        %v911 = vunpack.c.l.s4 1983009808
        %v912 = vunpack.c.0.s8 %v911
        %v913 = vlaneseq
        %v914 = vshrl.u32 %v913, 7
        %v915 = vsub.s32 %v912, %v914
        %v916 = vrot.slane %v909, %v915
        %v917 = vcombine.low %v839, %v846
        %v919 = vunpack.c.l.s4 1983009808
        %v920 = vunpack.c.0.s8 %v919
        %v921 = vlaneseq
        %v922 = vshrl.u32 %v921, 7
        %v923 = vsub.s32 %v920, %v922
        %v924 = vrot.slane %v917, %v923
        %v925 = vcombine.low %v849, %v850
        %v927 = vunpack.c.l.s4 1983009808
        %v928 = vunpack.c.0.s8 %v927
        %v929 = vlaneseq
        %v930 = vshrl.u32 %v929, 7
        %v931 = vsub.s32 %v928, %v930
        %v932 = vrot.slane %v925, %v931
        %v933 = vcombine.low %v908, %v916
        %v935 = vunpack.c.l.s4 1934713408
        %v936 = vunpack.c.0.s8 %v935
        %v937 = vlaneseq
        %v938 = vshrl.u32 %v937, 7
        %v939 = vsub.s32 %v936, %v938
        %v940 = vrot.slane %v933, %v939
        %v941 = vcombine.low %v924, %v932
        %v943 = vunpack.c.l.s4 1934713408
        %v944 = vunpack.c.0.s8 %v943
        %v945 = vlaneseq
        %v946 = vshrl.u32 %v945, 7
        %v947 = vsub.s32 %v944, %v946
        %v948 = vrot.slane %v941, %v947
        %v949 = vcombine.low %v940, %v948
        %v950 = vcombine.high %v940, %v948
        %v951 = vpack.c.bf16 %v949, %v899
        %v952 = vpack.c.bf16 %v950, %v900
        %v955 = vunpack.c.l.b16 %v951
        %v956 = vunpack.c.h.b16 %v951
        %v957 = vunpack.c.l.b16 %v952
        %v958 = vunpack.c.h.b16 %v952
        %v959 = vpack.c.b16 %v955, %v955
        %v960 = vpack.c.b16 %v956, %v956
        %v961 = vpack.c.b16 %v957, %v957
        %v962 = vpack.c.b16 %v958, %v958
        %967 = vst.msk [vmem:[%s303] sm:$0xf] %vm702, %v959
        %968 = vst.msk [vmem:[%s303 + $0x4] sm:$0xf] %vm702, %v960
        %969 = vst.msk [vmem:[%s303 + $0x8] sm:$0xf] %vm702, %v961
        %970 = vst.msk [vmem:[%s303 + $0xc] sm:$0xf] %vm702, %v962
        %971 = vrot.lane.b32.xlu0 %v440, 64
        %v972 = vpop.permute.xlu0 %971
        %973 = vrot.lane.b32.xlu0 %v443, 64
        %v974 = vpop.permute.xlu0 %973
        %975 = vrot.lane.b32.xlu0 %v449, 64
        %v976 = vpop.permute.xlu0 %975
        %977 = vrot.lane.b32.xlu0 %v451, 64
        %v978 = vpop.permute.xlu0 %977
        %v983 = vcombine.high %v972, 0.0
        %v985 = vunpack.c.l.s4 1983009808
        %v986 = vunpack.c.0.s8 %v985
        %v987 = vlaneseq
        %v988 = vshrl.u32 %v987, 7
        %v989 = vsub.s32 %v986, %v988
        %v990 = vrot.slane %v972, %v989
        %v992 = vunpack.c.l.s4 1983009808
        %v993 = vunpack.c.0.s8 %v992
        %v994 = vlaneseq
        %v995 = vshrl.u32 %v994, 7
        %v996 = vsub.s32 %v993, %v995
        %v997 = vrot.slane %v983, %v996
        %v998 = vcombine.high %v976, 0.0
        %v1000 = vunpack.c.l.s4 1983009808
        %v1001 = vunpack.c.0.s8 %v1000
        %v1002 = vlaneseq
        %v1003 = vshrl.u32 %v1002, 7
        %v1004 = vsub.s32 %v1001, %v1003
        %v1005 = vrot.slane %v976, %v1004
        %v1007 = vunpack.c.l.s4 1983009808
        %v1008 = vunpack.c.0.s8 %v1007
        %v1009 = vlaneseq
        %v1010 = vshrl.u32 %v1009, 7
        %v1011 = vsub.s32 %v1008, %v1010
        %v1012 = vrot.slane %v998, %v1011
        %v1013 = vcombine.low %v990, %v1005
        %v1014 = vcombine.high %v990, %v1005
        %v1016 = vunpack.c.l.s4 1934713408
        %v1017 = vunpack.c.0.s8 %v1016
        %v1018 = vlaneseq
        %v1019 = vshrl.u32 %v1018, 7
        %v1020 = vsub.s32 %v1017, %v1019
        %v1021 = vrot.slane %v1013, %v1020
        %v1023 = vunpack.c.l.s4 1934713408
        %v1024 = vunpack.c.0.s8 %v1023
        %v1025 = vlaneseq
        %v1026 = vshrl.u32 %v1025, 7
        %v1027 = vsub.s32 %v1024, %v1026
        %v1028 = vrot.slane %v1014, %v1027
        %v1029 = vcombine.low %v997, %v1012
        %v1030 = vcombine.high %v997, %v1012
        %v1032 = vunpack.c.l.s4 1934713408
        %v1033 = vunpack.c.0.s8 %v1032
        %v1034 = vlaneseq
        %v1035 = vshrl.u32 %v1034, 7
        %v1036 = vsub.s32 %v1033, %v1035
        %v1037 = vrot.slane %v1029, %v1036
        %v1039 = vunpack.c.l.s4 1934713408
        %v1040 = vunpack.c.0.s8 %v1039
        %v1041 = vlaneseq
        %v1042 = vshrl.u32 %v1041, 7
        %v1043 = vsub.s32 %v1040, %v1042
        %v1044 = vrot.slane %v1030, %v1043
        %v1045 = vcombine.high %v1021, 0.0
        %v1046 = vcombine.high %v1028, 0.0
        %v1047 = vcombine.high %v1037, 0.0
        %v1048 = vcombine.high %v1044, 0.0
        %v1049 = vcombine.high %v974, 0.0
        %v1051 = vunpack.c.l.s4 1983009808
        %v1052 = vunpack.c.0.s8 %v1051
        %v1053 = vlaneseq
        %v1054 = vshrl.u32 %v1053, 7
        %v1055 = vsub.s32 %v1052, %v1054
        %v1056 = vrot.slane %v974, %v1055
        %v1058 = vunpack.c.l.s4 1983009808
        %v1059 = vunpack.c.0.s8 %v1058
        %v1060 = vlaneseq
        %v1061 = vshrl.u32 %v1060, 7
        %v1062 = vsub.s32 %v1059, %v1061
        %v1063 = vrot.slane %v1049, %v1062
        %v1064 = vcombine.high %v978, 0.0
        %v1066 = vunpack.c.l.s4 1983009808
        %v1067 = vunpack.c.0.s8 %v1066
        %v1068 = vlaneseq
        %v1069 = vshrl.u32 %v1068, 7
        %v1070 = vsub.s32 %v1067, %v1069
        %v1071 = vrot.slane %v978, %v1070
        %v1073 = vunpack.c.l.s4 1983009808
        %v1074 = vunpack.c.0.s8 %v1073
        %v1075 = vlaneseq
        %v1076 = vshrl.u32 %v1075, 7
        %v1077 = vsub.s32 %v1074, %v1076
        %v1078 = vrot.slane %v1064, %v1077
        %v1079 = vcombine.low %v1056, %v1071
        %v1080 = vcombine.high %v1056, %v1071
        %v1082 = vunpack.c.l.s4 1934713408
        %v1083 = vunpack.c.0.s8 %v1082
        %v1084 = vlaneseq
        %v1085 = vshrl.u32 %v1084, 7
        %v1086 = vsub.s32 %v1083, %v1085
        %v1087 = vrot.slane %v1079, %v1086
        %v1089 = vunpack.c.l.s4 1934713408
        %v1090 = vunpack.c.0.s8 %v1089
        %v1091 = vlaneseq
        %v1092 = vshrl.u32 %v1091, 7
        %v1093 = vsub.s32 %v1090, %v1092
        %v1094 = vrot.slane %v1080, %v1093
        %v1095 = vcombine.low %v1063, %v1078
        %v1096 = vcombine.high %v1063, %v1078
        %v1098 = vunpack.c.l.s4 1934713408
        %v1099 = vunpack.c.0.s8 %v1098
        %v1100 = vlaneseq
        %v1101 = vshrl.u32 %v1100, 7
        %v1102 = vsub.s32 %v1099, %v1101
        %v1103 = vrot.slane %v1095, %v1102
        %v1105 = vunpack.c.l.s4 1934713408
        %v1106 = vunpack.c.0.s8 %v1105
        %v1107 = vlaneseq
        %v1108 = vshrl.u32 %v1107, 7
        %v1109 = vsub.s32 %v1106, %v1108
        %v1110 = vrot.slane %v1096, %v1109
        %v1111 = vcombine.high %v1087, 0.0
        %v1112 = vcombine.high %v1094, 0.0
        %v1113 = vcombine.high %v1103, 0.0
        %v1114 = vcombine.high %v1110, 0.0
        %v1115 = vcombine.low %v1021, %v1028
        %v1117 = vunpack.c.l.s4 1983009808
        %v1118 = vunpack.c.0.s8 %v1117
        %v1119 = vlaneseq
        %v1120 = vshrl.u32 %v1119, 7
        %v1121 = vsub.s32 %v1118, %v1120
        %v1122 = vrot.slane %v1115, %v1121
        %v1123 = vcombine.low %v1045, %v1046
        %v1125 = vunpack.c.l.s4 1983009808
        %v1126 = vunpack.c.0.s8 %v1125
        %v1127 = vlaneseq
        %v1128 = vshrl.u32 %v1127, 7
        %v1129 = vsub.s32 %v1126, %v1128
        %v1130 = vrot.slane %v1123, %v1129
        %v1131 = vcombine.low %v1037, %v1044
        %v1133 = vunpack.c.l.s4 1983009808
        %v1134 = vunpack.c.0.s8 %v1133
        %v1135 = vlaneseq
        %v1136 = vshrl.u32 %v1135, 7
        %v1137 = vsub.s32 %v1134, %v1136
        %v1138 = vrot.slane %v1131, %v1137
        %v1139 = vcombine.low %v1047, %v1048
        %v1141 = vunpack.c.l.s4 1983009808
        %v1142 = vunpack.c.0.s8 %v1141
        %v1143 = vlaneseq
        %v1144 = vshrl.u32 %v1143, 7
        %v1145 = vsub.s32 %v1142, %v1144
        %v1146 = vrot.slane %v1139, %v1145
        %v1147 = vcombine.low %v1122, %v1130
        %v1149 = vunpack.c.l.s4 1934713408
        %v1150 = vunpack.c.0.s8 %v1149
        %v1151 = vlaneseq
        %v1152 = vshrl.u32 %v1151, 7
        %v1153 = vsub.s32 %v1150, %v1152
        %v1154 = vrot.slane %v1147, %v1153
        %v1155 = vcombine.low %v1138, %v1146
        %v1157 = vunpack.c.l.s4 1934713408
        %v1158 = vunpack.c.0.s8 %v1157
        %v1159 = vlaneseq
        %v1160 = vshrl.u32 %v1159, 7
        %v1161 = vsub.s32 %v1158, %v1160
        %v1162 = vrot.slane %v1155, %v1161
        %v1163 = vcombine.low %v1154, %v1162
        %v1164 = vcombine.high %v1154, %v1162
        %v1165 = vcombine.low %v1087, %v1094
        %v1167 = vunpack.c.l.s4 1983009808
        %v1168 = vunpack.c.0.s8 %v1167
        %v1169 = vlaneseq
        %v1170 = vshrl.u32 %v1169, 7
        %v1171 = vsub.s32 %v1168, %v1170
        %v1172 = vrot.slane %v1165, %v1171
        %v1173 = vcombine.low %v1111, %v1112
        %v1175 = vunpack.c.l.s4 1983009808
        %v1176 = vunpack.c.0.s8 %v1175
        %v1177 = vlaneseq
        %v1178 = vshrl.u32 %v1177, 7
        %v1179 = vsub.s32 %v1176, %v1178
        %v1180 = vrot.slane %v1173, %v1179
        %v1181 = vcombine.low %v1103, %v1110
        %v1183 = vunpack.c.l.s4 1983009808
        %v1184 = vunpack.c.0.s8 %v1183
        %v1185 = vlaneseq
        %v1186 = vshrl.u32 %v1185, 7
        %v1187 = vsub.s32 %v1184, %v1186
        %v1188 = vrot.slane %v1181, %v1187
        %v1189 = vcombine.low %v1113, %v1114
        %v1191 = vunpack.c.l.s4 1983009808
        %v1192 = vunpack.c.0.s8 %v1191
        %v1193 = vlaneseq
        %v1194 = vshrl.u32 %v1193, 7
        %v1195 = vsub.s32 %v1192, %v1194
        %v1196 = vrot.slane %v1189, %v1195
        %v1197 = vcombine.low %v1172, %v1180
        %v1199 = vunpack.c.l.s4 1934713408
        %v1200 = vunpack.c.0.s8 %v1199
        %v1201 = vlaneseq
        %v1202 = vshrl.u32 %v1201, 7
        %v1203 = vsub.s32 %v1200, %v1202
        %v1204 = vrot.slane %v1197, %v1203
        %v1205 = vcombine.low %v1188, %v1196
        %v1207 = vunpack.c.l.s4 1934713408
        %v1208 = vunpack.c.0.s8 %v1207
        %v1209 = vlaneseq
        %v1210 = vshrl.u32 %v1209, 7
        %v1211 = vsub.s32 %v1208, %v1210
        %v1212 = vrot.slane %v1205, %v1211
        %v1213 = vcombine.low %v1204, %v1212
        %v1214 = vcombine.high %v1204, %v1212
        %v1215 = vpack.c.bf16 %v1213, %v1163
        %v1216 = vpack.c.bf16 %v1214, %v1164
        %v1219 = vunpack.c.l.b16 %v1215
        %v1220 = vunpack.c.h.b16 %v1215
        %v1221 = vunpack.c.l.b16 %v1216
        %v1222 = vunpack.c.h.b16 %v1216
        %v1223 = vpack.c.b16 %v1219, %v1219
        %v1224 = vpack.c.b16 %v1220, %v1220
        %v1225 = vpack.c.b16 %v1221, %v1221
        %v1226 = vpack.c.b16 %v1222, %v1222
        %1231 = vst.msk [vmem:[%s309] sm:$0xf] %vm702, %v1223
        %1232 = vst.msk [vmem:[%s309 + $0x4] sm:$0xf] %vm702, %v1224
        %1233 = vst.msk [vmem:[%s309 + $0x8] sm:$0xf] %vm702, %v1225
        %1234 = vst.msk [vmem:[%s309 + $0xc] sm:$0xf] %vm702, %v1226
        %s1235 = sand.u32 %s153, 1
        %s1236 = sand.u32 %s153, 1
        %s1237 = smul.addr %s1236, 16
        %s1238 = scalar_lea.vmem [#allocation2], %s1237
        %s1239 = sand.u32 %s181, 1
        %s1240 = sand.u32 %s181, 1
        %s1241 = smul.addr %s1240, 16
        %s1242 = scalar_lea.vmem [#allocation3], %s1241
        %s1243 = sand.u32 %s209, 1
        %s1244 = sand.u32 %s209, 1
        %s1245 = smul.addr %s1244, 16
        %s1246 = scalar_lea.vmem [#allocation4], %s1245
        // Predicated region
        $region41: #{sam_vision_encoder_forward.8} parent=39 // pred_check
          %p1247 = pneg %p163
        $region42: #{sam_vision_encoder_forward.8} parent=39 // pred_check_branch
          %1249 = sbr.rel (%p1247) target = $region44
        $region43: #{sam_vision_encoder_forward.8} parent=39 // pred_region
          %s1250 = smul.u32 2, %s24
          %s1251 = smul.addr %s23, 16
          %s1252 = sadd.s32 %s1250, %s1251
          %s1253 = smul.addr %s1252, 4
          %s1254 = scalar_lea.vmem %s5, %s1253
          // Predicated region
          $region45: #{sam_vision_encoder_forward.8} parent=43 // pred_check
            _
          $region46: #{sam_vision_encoder_forward.8} parent=43 // pred_check_branch
            %1256 = sbr.rel (0) target = $region48
          $region47: #{sam_vision_encoder_forward.8} parent=43 // pred_region
            // Predicated region
            $region49: #{sam_vision_encoder_forward.8} parent=47 // pred_check
              _
            $region50: #{sam_vision_encoder_forward.8} parent=47 // pred_check_branch
              %1258 = sbr.rel target = $region52
            $region51: #{sam_vision_encoder_forward.8} parent=47 // pred_region
              // Predicated region
              $region64: #{sam_vision_encoder_forward.8} parent=51 // pred_check
                _
              $region65: #{sam_vision_encoder_forward.8} parent=51 // pred_check_branch
                %1279 = sbr.rel (0) target = $region67
              $region66: #{sam_vision_encoder_forward.8} parent=51 // pred_region
                loop: start=0, step=1, limit=1
                $region68: #{sam_vision_encoder_forward.8} parent=66 // loop_pre_header
                  _
                $region69: #{sam_vision_encoder_forward.8} parent=66 // loop_header
                  %s1281 = sphi 0, %s1285
                  %p1282 = scmp.ge.s32.totalorder %s1281, 1
                  %s1286 = sphi %s1238, %s1238
                  %s1287 = sphi %s1254, %s1254
                $region70: #{sam_vision_encoder_forward.8} parent=66 // loop_header_branch
                  %1284 = sbr.rel (%p1282) target = $region74
                $region71: #{sam_vision_encoder_forward.8} parent=66 // loop_body
                  _
                $region72: #{sam_vision_encoder_forward.8} parent=66 // loop_footer
                  %s1285 = sadd.s32 1, %s1281
                $region73: #{sam_vision_encoder_forward.8} parent=66 // loop_footer_branch
                  %1280 = sbr.rel target = $region69
                $region74: #{sam_vision_encoder_forward.8} parent=66 // loop_exit
                  _
                loop: start=0, step=1, limit=1
                $region75: #{sam_vision_encoder_forward.8} parent=66 // loop_pre_header
                  _
                $region76: #{sam_vision_encoder_forward.8} parent=66 // loop_header
                  %s1290 = sphi 0, %s1294
                  %p1291 = scmp.ge.s32.totalorder %s1290, 1
                  %s1295 = sphi %s1238, %s1238
                  %s1296 = sphi %s1254, %s1254
                $region77: #{sam_vision_encoder_forward.8} parent=66 // loop_header_branch
                  %1293 = sbr.rel (%p1291) target = $region81
                $region78: #{sam_vision_encoder_forward.8} parent=66 // loop_body
                  %v1297 = vld [vmem:[%s1295] sm:$0xf]
                  %1298 = vst [vmem:[%s1296] sm:$0xf] %v1297
                  %v1299 = vld [vmem:[%s1295 + $0x4] sm:$0xf]
                  %1300 = vst [vmem:[%s1296 + $0x4] sm:$0xf] %v1299
                  %v1301 = vld [vmem:[%s1295 + $0x8] sm:$0xf]
                  %1302 = vst [vmem:[%s1296 + $0x20] sm:$0xf] %v1301
                  %v1303 = vld [vmem:[%s1295 + $0xc] sm:$0xf]
                  %1304 = vst [vmem:[%s1296 + $0x24] sm:$0xf] %v1303
                $region79: #{sam_vision_encoder_forward.8} parent=66 // loop_footer
                  %s1294 = sadd.s32 1, %s1290
                $region80: #{sam_vision_encoder_forward.8} parent=66 // loop_footer_branch
                  %1289 = sbr.rel target = $region76
                $region81: #{sam_vision_encoder_forward.8} parent=66 // loop_exit
                  _
              $region67: #{sam_vision_encoder_forward.8} parent=51 // pred_fallthru
                _
            $region52: #{sam_vision_encoder_forward.8} parent=47 // pred_fallthru
              _
            // Predicated region
            $region53: #{sam_vision_encoder_forward.8} parent=47 // pred_check
              _
            $region54: #{sam_vision_encoder_forward.8} parent=47 // pred_check_branch
              %1260 = sbr.rel (0) target = $region56
            $region55: #{sam_vision_encoder_forward.8} parent=47 // pred_region
              loop: start=0, step=1, limit=1
              $region57: #{sam_vision_encoder_forward.8} parent=55 // loop_pre_header
                _
              $region58: #{sam_vision_encoder_forward.8} parent=55 // loop_header
                %s1263 = sphi 0, %s1267
                %p1264 = scmp.ge.s32.totalorder %s1263, 1
                %s1268 = sphi %s1238, %s1238
                %s1269 = sphi %s1254, %s1254
              $region59: #{sam_vision_encoder_forward.8} parent=55 // loop_header_branch
                %1266 = sbr.rel (%p1264) target = $region63
              $region60: #{sam_vision_encoder_forward.8} parent=55 // loop_body
                %v1270 = vld [vmem:[%s1268] sm:$0xf]
                %1271 = vst [vmem:[%s1269] sm:$0xf] %v1270
                %v1272 = vld [vmem:[%s1268 + $0x4] sm:$0xf]
                %1273 = vst [vmem:[%s1269 + $0x4] sm:$0xf] %v1272
                %v1274 = vld [vmem:[%s1268 + $0x8] sm:$0xf]
                %1275 = vst [vmem:[%s1269 + $0x20] sm:$0xf] %v1274
                %v1276 = vld [vmem:[%s1268 + $0xc] sm:$0xf]
                %1277 = vst [vmem:[%s1269 + $0x24] sm:$0xf] %v1276
              $region61: #{sam_vision_encoder_forward.8} parent=55 // loop_footer
                %s1267 = sadd.s32 1, %s1263
              $region62: #{sam_vision_encoder_forward.8} parent=55 // loop_footer_branch
                %1262 = sbr.rel target = $region58
              $region63: #{sam_vision_encoder_forward.8} parent=55 // loop_exit
                _
            $region56: #{sam_vision_encoder_forward.8} parent=47 // pred_fallthru
              _
          $region48: #{sam_vision_encoder_forward.8} parent=43 // pred_fallthru
            _
          %1305 = vnop
        $region44: #{sam_vision_encoder_forward.8} parent=39 // pred_fallthru
          _
        // Predicated region
        $region82: #{sam_vision_encoder_forward.8} parent=39 // pred_check
          %p1306 = pneg %p191
        $region83: #{sam_vision_encoder_forward.8} parent=39 // pred_check_branch
          %1308 = sbr.rel (%p1306) target = $region85
        $region84: #{sam_vision_encoder_forward.8} parent=39 // pred_region
          %s1309 = smul.u32 2, %s24
          %s1310 = smul.addr %s23, 16
          %s1311 = sadd.s32 %s1309, %s1310
          %s1312 = smul.addr %s1311, 4
          %s1313 = scalar_lea.vmem %s6, %s1312
          // Predicated region
          $region86: #{sam_vision_encoder_forward.8} parent=84 // pred_check
            _
          $region87: #{sam_vision_encoder_forward.8} parent=84 // pred_check_branch
            %1315 = sbr.rel (0) target = $region89
          $region88: #{sam_vision_encoder_forward.8} parent=84 // pred_region
            // Predicated region
            $region90: #{sam_vision_encoder_forward.8} parent=88 // pred_check
              _
            $region91: #{sam_vision_encoder_forward.8} parent=88 // pred_check_branch
              %1317 = sbr.rel target = $region93
            $region92: #{sam_vision_encoder_forward.8} parent=88 // pred_region
              // Predicated region
              $region105: #{sam_vision_encoder_forward.8} parent=92 // pred_check
                _
              $region106: #{sam_vision_encoder_forward.8} parent=92 // pred_check_branch
                %1338 = sbr.rel (0) target = $region108
              $region107: #{sam_vision_encoder_forward.8} parent=92 // pred_region
                loop: start=0, step=1, limit=1
                $region109: #{sam_vision_encoder_forward.8} parent=107 // loop_pre_header
                  _
                $region110: #{sam_vision_encoder_forward.8} parent=107 // loop_header
                  %s1340 = sphi 0, %s1344
                  %p1341 = scmp.ge.s32.totalorder %s1340, 1
                  %s1345 = sphi %s1242, %s1242
                  %s1346 = sphi %s1313, %s1313
                $region111: #{sam_vision_encoder_forward.8} parent=107 // loop_header_branch
                  %1343 = sbr.rel (%p1341) target = $region115
                $region112: #{sam_vision_encoder_forward.8} parent=107 // loop_body
                  _
                $region113: #{sam_vision_encoder_forward.8} parent=107 // loop_footer
                  %s1344 = sadd.s32 1, %s1340
                $region114: #{sam_vision_encoder_forward.8} parent=107 // loop_footer_branch
                  %1339 = sbr.rel target = $region110
                $region115: #{sam_vision_encoder_forward.8} parent=107 // loop_exit
                  _
                loop: start=0, step=1, limit=1
                $region116: #{sam_vision_encoder_forward.8} parent=107 // loop_pre_header
                  _
                $region117: #{sam_vision_encoder_forward.8} parent=107 // loop_header
                  %s1349 = sphi 0, %s1353
                  %p1350 = scmp.ge.s32.totalorder %s1349, 1
                  %s1354 = sphi %s1242, %s1242
                  %s1355 = sphi %s1313, %s1313
                $region118: #{sam_vision_encoder_forward.8} parent=107 // loop_header_branch
                  %1352 = sbr.rel (%p1350) target = $region122
                $region119: #{sam_vision_encoder_forward.8} parent=107 // loop_body
                  %v1356 = vld [vmem:[%s1354] sm:$0xf]
                  %1357 = vst [vmem:[%s1355] sm:$0xf] %v1356
                  %v1358 = vld [vmem:[%s1354 + $0x4] sm:$0xf]
                  %1359 = vst [vmem:[%s1355 + $0x4] sm:$0xf] %v1358
                  %v1360 = vld [vmem:[%s1354 + $0x8] sm:$0xf]
                  %1361 = vst [vmem:[%s1355 + $0x20] sm:$0xf] %v1360
                  %v1362 = vld [vmem:[%s1354 + $0xc] sm:$0xf]
                  %1363 = vst [vmem:[%s1355 + $0x24] sm:$0xf] %v1362
                $region120: #{sam_vision_encoder_forward.8} parent=107 // loop_footer
                  %s1353 = sadd.s32 1, %s1349
                $region121: #{sam_vision_encoder_forward.8} parent=107 // loop_footer_branch
                  %1348 = sbr.rel target = $region117
                $region122: #{sam_vision_encoder_forward.8} parent=107 // loop_exit
                  _
              $region108: #{sam_vision_encoder_forward.8} parent=92 // pred_fallthru
                _
            $region93: #{sam_vision_encoder_forward.8} parent=88 // pred_fallthru
              _
            // Predicated region
            $region94: #{sam_vision_encoder_forward.8} parent=88 // pred_check
              _
            $region95: #{sam_vision_encoder_forward.8} parent=88 // pred_check_branch
              %1319 = sbr.rel (0) target = $region97
            $region96: #{sam_vision_encoder_forward.8} parent=88 // pred_region
              loop: start=0, step=1, limit=1
              $region98: #{sam_vision_encoder_forward.8} parent=96 // loop_pre_header
                _
              $region99: #{sam_vision_encoder_forward.8} parent=96 // loop_header
                %s1322 = sphi 0, %s1326
                %p1323 = scmp.ge.s32.totalorder %s1322, 1
                %s1327 = sphi %s1242, %s1242
                %s1328 = sphi %s1313, %s1313
              $region100: #{sam_vision_encoder_forward.8} parent=96 // loop_header_branch
                %1325 = sbr.rel (%p1323) target = $region104
              $region101: #{sam_vision_encoder_forward.8} parent=96 // loop_body
                %v1329 = vld [vmem:[%s1327] sm:$0xf]
                %1330 = vst [vmem:[%s1328] sm:$0xf] %v1329
                %v1331 = vld [vmem:[%s1327 + $0x4] sm:$0xf]
                %1332 = vst [vmem:[%s1328 + $0x4] sm:$0xf] %v1331
                %v1333 = vld [vmem:[%s1327 + $0x8] sm:$0xf]
                %1334 = vst [vmem:[%s1328 + $0x20] sm:$0xf] %v1333
                %v1335 = vld [vmem:[%s1327 + $0xc] sm:$0xf]
                %1336 = vst [vmem:[%s1328 + $0x24] sm:$0xf] %v1335
              $region102: #{sam_vision_encoder_forward.8} parent=96 // loop_footer
                %s1326 = sadd.s32 1, %s1322
              $region103: #{sam_vision_encoder_forward.8} parent=96 // loop_footer_branch
                %1321 = sbr.rel target = $region99
              $region104: #{sam_vision_encoder_forward.8} parent=96 // loop_exit
                _
            $region97: #{sam_vision_encoder_forward.8} parent=88 // pred_fallthru
              _
          $region89: #{sam_vision_encoder_forward.8} parent=84 // pred_fallthru
            _
          %1364 = vnop
        $region85: #{sam_vision_encoder_forward.8} parent=39 // pred_fallthru
          _
        // Predicated region
        $region123: #{sam_vision_encoder_forward.8} parent=39 // pred_check
          %p1365 = pneg %p219
        $region124: #{sam_vision_encoder_forward.8} parent=39 // pred_check_branch
          %1367 = sbr.rel (%p1365) target = $region126
        $region125: #{sam_vision_encoder_forward.8} parent=39 // pred_region
          %s1368 = smul.u32 2, %s24
          %s1369 = smul.addr %s23, 16
          %s1370 = sadd.s32 %s1368, %s1369
          %s1371 = smul.addr %s1370, 4
          %s1372 = scalar_lea.vmem %s7, %s1371
          // Predicated region
          $region127: #{sam_vision_encoder_forward.8} parent=125 // pred_check
            _
          $region128: #{sam_vision_encoder_forward.8} parent=125 // pred_check_branch
            %1374 = sbr.rel (0) target = $region130
          $region129: #{sam_vision_encoder_forward.8} parent=125 // pred_region
            // Predicated region
            $region131: #{sam_vision_encoder_forward.8} parent=129 // pred_check
              _
            $region132: #{sam_vision_encoder_forward.8} parent=129 // pred_check_branch
              %1376 = sbr.rel target = $region134
            $region133: #{sam_vision_encoder_forward.8} parent=129 // pred_region
              // Predicated region
              $region146: #{sam_vision_encoder_forward.8} parent=133 // pred_check
                _
              $region147: #{sam_vision_encoder_forward.8} parent=133 // pred_check_branch
                %1397 = sbr.rel (0) target = $region149
              $region148: #{sam_vision_encoder_forward.8} parent=133 // pred_region
                loop: start=0, step=1, limit=1
                $region150: #{sam_vision_encoder_forward.8} parent=148 // loop_pre_header
                  _
                $region151: #{sam_vision_encoder_forward.8} parent=148 // loop_header
                  %s1399 = sphi 0, %s1403
                  %p1400 = scmp.ge.s32.totalorder %s1399, 1
                  %s1404 = sphi %s1246, %s1246
                  %s1405 = sphi %s1372, %s1372
                $region152: #{sam_vision_encoder_forward.8} parent=148 // loop_header_branch
                  %1402 = sbr.rel (%p1400) target = $region156
                $region153: #{sam_vision_encoder_forward.8} parent=148 // loop_body
                  _
                $region154: #{sam_vision_encoder_forward.8} parent=148 // loop_footer
                  %s1403 = sadd.s32 1, %s1399
                $region155: #{sam_vision_encoder_forward.8} parent=148 // loop_footer_branch
                  %1398 = sbr.rel target = $region151
                $region156: #{sam_vision_encoder_forward.8} parent=148 // loop_exit
                  _
                loop: start=0, step=1, limit=1
                $region157: #{sam_vision_encoder_forward.8} parent=148 // loop_pre_header
                  _
                $region158: #{sam_vision_encoder_forward.8} parent=148 // loop_header
                  %s1408 = sphi 0, %s1412
                  %p1409 = scmp.ge.s32.totalorder %s1408, 1
                  %s1413 = sphi %s1246, %s1246
                  %s1414 = sphi %s1372, %s1372
                $region159: #{sam_vision_encoder_forward.8} parent=148 // loop_header_branch
                  %1411 = sbr.rel (%p1409) target = $region163
                $region160: #{sam_vision_encoder_forward.8} parent=148 // loop_body
                  %v1415 = vld [vmem:[%s1413] sm:$0xf]
                  %1416 = vst [vmem:[%s1414] sm:$0xf] %v1415
                  %v1417 = vld [vmem:[%s1413 + $0x4] sm:$0xf]
                  %1418 = vst [vmem:[%s1414 + $0x4] sm:$0xf] %v1417
                  %v1419 = vld [vmem:[%s1413 + $0x8] sm:$0xf]
                  %1420 = vst [vmem:[%s1414 + $0x20] sm:$0xf] %v1419
                  %v1421 = vld [vmem:[%s1413 + $0xc] sm:$0xf]
                  %1422 = vst [vmem:[%s1414 + $0x24] sm:$0xf] %v1421
                $region161: #{sam_vision_encoder_forward.8} parent=148 // loop_footer
                  %s1412 = sadd.s32 1, %s1408
                $region162: #{sam_vision_encoder_forward.8} parent=148 // loop_footer_branch
                  %1407 = sbr.rel target = $region158
                $region163: #{sam_vision_encoder_forward.8} parent=148 // loop_exit
                  _
              $region149: #{sam_vision_encoder_forward.8} parent=133 // pred_fallthru
                _
            $region134: #{sam_vision_encoder_forward.8} parent=129 // pred_fallthru
              _
            // Predicated region
            $region135: #{sam_vision_encoder_forward.8} parent=129 // pred_check
              _
            $region136: #{sam_vision_encoder_forward.8} parent=129 // pred_check_branch
              %1378 = sbr.rel (0) target = $region138
            $region137: #{sam_vision_encoder_forward.8} parent=129 // pred_region
              loop: start=0, step=1, limit=1
              $region139: #{sam_vision_encoder_forward.8} parent=137 // loop_pre_header
                _
              $region140: #{sam_vision_encoder_forward.8} parent=137 // loop_header
                %s1381 = sphi 0, %s1385
                %p1382 = scmp.ge.s32.totalorder %s1381, 1
                %s1386 = sphi %s1246, %s1246
                %s1387 = sphi %s1372, %s1372
              $region141: #{sam_vision_encoder_forward.8} parent=137 // loop_header_branch
                %1384 = sbr.rel (%p1382) target = $region145
              $region142: #{sam_vision_encoder_forward.8} parent=137 // loop_body
                %v1388 = vld [vmem:[%s1386] sm:$0xf]
                %1389 = vst [vmem:[%s1387] sm:$0xf] %v1388
                %v1390 = vld [vmem:[%s1386 + $0x4] sm:$0xf]
                %1391 = vst [vmem:[%s1387 + $0x4] sm:$0xf] %v1390
                %v1392 = vld [vmem:[%s1386 + $0x8] sm:$0xf]
                %1393 = vst [vmem:[%s1387 + $0x20] sm:$0xf] %v1392
                %v1394 = vld [vmem:[%s1386 + $0xc] sm:$0xf]
                %1395 = vst [vmem:[%s1387 + $0x24] sm:$0xf] %v1394
              $region143: #{sam_vision_encoder_forward.8} parent=137 // loop_footer
                %s1385 = sadd.s32 1, %s1381
              $region144: #{sam_vision_encoder_forward.8} parent=137 // loop_footer_branch
                %1380 = sbr.rel target = $region140
              $region145: #{sam_vision_encoder_forward.8} parent=137 // loop_exit
                _
            $region138: #{sam_vision_encoder_forward.8} parent=129 // pred_fallthru
              _
          $region130: #{sam_vision_encoder_forward.8} parent=125 // pred_fallthru
            _
          %1423 = vnop
        $region126: #{sam_vision_encoder_forward.8} parent=39 // pred_fallthru
          _
      $region40: #{sam_vision_encoder_forward.8} parent=5 // pred_fallthru
        _
      %p1424 = scmp.le.s32.totalorder 2, %s14
      // Predicated region
      $region164: #{sam_vision_encoder_forward.8} parent=5 // pred_check
        %p1425 = pneg %p1424
      $region165: #{sam_vision_encoder_forward.8} parent=5 // pred_check_branch
        %1427 = sbr.rel (%p1425) target = $region167
      $region166: #{sam_vision_encoder_forward.8} parent=5 // pred_region
        %s1428 = ssub.s32 %s14, 2
        // Predicated region
        $region168: #{sam_vision_encoder_forward.8} parent=166 // pred_check
          %p1429 = pneg %p169
        $region169: #{sam_vision_encoder_forward.8} parent=166 // pred_check_branch
          %1431 = sbr.rel (%p1429) target = $region171
        $region170: #{sam_vision_encoder_forward.8} parent=166 // pred_region
          %s1432 = sand.u32 %s154, 1
          %s1433 = sand.u32 %s154, 1
          %s1434 = smul.addr %s1433, 16
          %s1435 = scalar_lea.vmem [#allocation2], %s1434
        $region171: #{sam_vision_encoder_forward.8} parent=166 // pred_fallthru
          _
        // Predicated region
        $region172: #{sam_vision_encoder_forward.8} parent=166 // pred_check
          %p1436 = pneg %p197
        $region173: #{sam_vision_encoder_forward.8} parent=166 // pred_check_branch
          %1438 = sbr.rel (%p1436) target = $region175
        $region174: #{sam_vision_encoder_forward.8} parent=166 // pred_region
          %s1439 = sand.u32 %s182, 1
          %s1440 = sand.u32 %s182, 1
          %s1441 = smul.addr %s1440, 16
          %s1442 = scalar_lea.vmem [#allocation3], %s1441
        $region175: #{sam_vision_encoder_forward.8} parent=166 // pred_fallthru
          _
        // Predicated region
        $region176: #{sam_vision_encoder_forward.8} parent=166 // pred_check
          %p1443 = pneg %p225
        $region177: #{sam_vision_encoder_forward.8} parent=166 // pred_check_branch
          %1445 = sbr.rel (%p1443) target = $region179
        $region178: #{sam_vision_encoder_forward.8} parent=166 // pred_region
          %s1446 = sand.u32 %s210, 1
          %s1447 = sand.u32 %s210, 1
          %s1448 = smul.addr %s1447, 16
          %s1449 = scalar_lea.vmem [#allocation4], %s1448
        $region179: #{sam_vision_encoder_forward.8} parent=166 // pred_fallthru
          _
      $region167: #{sam_vision_encoder_forward.8} parent=5 // pred_fallthru
        _
    $region6: #{sam_vision_encoder_forward.8} parent=1 // loop_footer
      %s18 = sadd.s32 1, %s14
    $region7: #{sam_vision_encoder_forward.8} parent=1 // loop_footer_branch
      %13 = sbr.rel target = $region3
    $region8: #{sam_vision_encoder_forward.8} parent=1 // loop_exit
      _

// kernel: sam_vision_encoder_forward.13
$region0: #{sam_vision_encoder_forward.13}
  #allocation0 [shape = 'u32[]', space=smem, size = 0x4, offset = 0x4, fixed_abs, tag = 'smem constant byte address 0x4 - core index']
  #allocation1 [shape = 'u32[144,128]{1,0:T(1,128)}', space=vmem, size = 0x12000, scoped, tag = 'internal scratch']
  %s0 = inlined_call_operand.vmem [shape: f32[2,64,32], index: 0, kind: input, shape index: {}]
  %s1 = inlined_call_operand.vmem [shape: bf16[2,64,32], index: 1, kind: input, shape index: {}]
  %s2 = inlined_call_operand.vmem [shape: bf16[32,32], index: 2, kind: input, shape index: {}]
  %s3 = inlined_call_operand.vmem [shape: f32[1,32], index: 3, kind: input, shape index: {}]
  %s4 = inlined_call_operand.vmem [shape: f32[1,32], index: 4, kind: input, shape index: {}]
  %s5 = inlined_call_operand.vmem [shape: f32[1,32], index: 5, kind: input, shape index: {}]
  %s6 = inlined_call_operand.vmem [shape: bf16[32,128], index: 6, kind: input, shape index: {}]
  %s7 = inlined_call_operand.vmem [shape: f32[1,128], index: 7, kind: input, shape index: {}]
  %s8 = inlined_call_operand.vmem [shape: bf16[128,32], index: 8, kind: input, shape index: {}]
  %s9 = inlined_call_operand.vmem [shape: f32[1,32], index: 9, kind: input, shape index: {}]
  %s10 = inlined_call_operand.hbm [shape: f32[2,64,32], index: 10, kind: output, shape index: {}]
  %s11 = sld [smem:[#allocation0]]
  $region73: #{sam_vision_encoder_forward.13} parent=0
    _
  %s13 = ssub.s32 1, %s11
  %s14 = scalar_select 0, %s13, %s11
  $region1: #{sam_vision_encoder_forward.13} parent=0
    #allocation2 [shape = 'u8[16384]{0}', space=vmem, size = 0x4000, scoped, tag = 'output window, operand 0']
    #allocation3 [shape = 's32[2]{0}', space=sflag, size = 0x8, scoped, tag = 'scoped memory for sam_vision_encoder_forward.13']
    %15 = vsyncpa [#allocation3], 0
    %s16 = scalar_lea.sflag [#allocation3], 1
    %17 = vsyncpa %s16, 0
    loop: start=0, step=1, limit=10
    $region2: #{sam_vision_encoder_forward.13} parent=1 // loop_pre_header
      _
    $region3: #{sam_vision_encoder_forward.13} parent=1 // loop_header
      %s19 = sphi 0, %s23
      %p20 = scmp.ge.s32.totalorder %s19, 10
      %s26 = sphi 0, %s38
      %s27 = sphi 0, %s34
      %s28 = sphi 0, %s26
      %s29 = sphi 0, %s27
      %s30 = sphi 0, %s28
      %s31 = sphi 0, %s29
      %s43 = sphi 0, %s45
      %s46 = sphi 0, %s43
      %s47 = sphi 0, %s46
      %s63 = sphi 0, %s47
      %s71 = sphi 0, %s73
      %s74 = sphi 0, %s71
      %s75 = sphi 0, %s74
      %s91 = sphi 0, %s75
      %s95 = sphi 0, %s95
      %s97 = sphi 0, %s95
      %s98 = sphi 0, %s97
      %s112 = sphi 0, %s98
      %s116 = sphi 0, %s116
      %s118 = sphi 0, %s116
      %s119 = sphi 0, %s118
      %s133 = sphi 0, %s119
      %s137 = sphi 0, %s137
      %s139 = sphi 0, %s137
      %s140 = sphi 0, %s139
      %s154 = sphi 0, %s140
      %s158 = sphi 0, %s158
      %s160 = sphi 0, %s158
      %s161 = sphi 0, %s160
      %s175 = sphi 0, %s161
      %s179 = sphi 0, %s179
      %s181 = sphi 0, %s179
      %s182 = sphi 0, %s181
      %s196 = sphi 0, %s182
      %s200 = sphi 0, %s200
      %s202 = sphi 0, %s200
      %s203 = sphi 0, %s202
      %s217 = sphi 0, %s203
      %s221 = sphi 0, %s221
      %s223 = sphi 0, %s221
      %s224 = sphi 0, %s223
      %s238 = sphi 0, %s224
      %s242 = sphi 0, %s242
      %s244 = sphi 0, %s242
      %s245 = sphi 0, %s244
      %s259 = sphi 0, %s245
      %s267 = sphi 0, %s269
      %s270 = sphi 0, %s267
      %s271 = sphi 0, %s270
      %s287 = sphi 0, %s271
    $region4: #{sam_vision_encoder_forward.13} parent=1 // loop_header_branch
      %22 = sbr.rel (%p20) target = $region8
    $region5: #{sam_vision_encoder_forward.13} parent=1 // loop_body
      %s24 = ssub.s32 %s19, 1
      %s25 = ssub.s32 %s19, 2
      %s32 = sadd.s32 1, %s27
      %p33 = scmp.ge.s32.totalorder %s32, 4
      %s34 = scalar_select %p33, 0, %s32
      %s35 = sadd.s32 1, %s26
      %s36 = scalar_select %p33, %s35, %s26
      %p37 = scmp.ge.s32.totalorder %s36, 2
      %s38 = scalar_select %p37, 0, %s36
      %s39 = ssub.s32 %s26, %s38
      %s40 = ssub.s32 %s27, %s34
      %s41 = sor.u32 %s39, %s40
      %p42 = scmp.eq.s32.totalorder %s41, 0
      %s44 = sadd.s32 %s43, 1
      %s45 = scalar_select %p42, %s43, %s44
      %p48 = pneg %p42
      %p49 = scmp.eq.s32.totalorder %s19, 7
      %p50 = por %p48, %p49
      %p51 = scmp.ne.s32.totalorder %s43, %s46
      %p52 = scmp.eq.s32.totalorder %s19, 0
      %p53 = por %p51, %p52
      %p54 = scmp.ne.s32.totalorder %s43, %s46
      %p55 = scmp.eq.s32.totalorder %s24, 7
      %p56 = por %p54, %p55
      %p57 = scmp.ne.s32.totalorder %s46, %s47
      %p58 = scmp.eq.s32.totalorder %s24, 0
      %p59 = por %p57, %p58
      %p60 = scmp.ne.s32.totalorder %s46, %s47
      %p61 = scmp.eq.s32.totalorder %s25, 7
      %p62 = por %p60, %p61
      %p64 = scmp.ne.s32.totalorder %s47, %s63
      %p65 = scmp.eq.s32.totalorder %s25, 0
      %p66 = por %p64, %p65
      %s67 = ssub.s32 %s26, %s38
      %s68 = ssub.s32 %s27, %s34
      %s69 = sor.u32 %s67, %s68
      %p70 = scmp.eq.s32.totalorder %s69, 0
      %s72 = sadd.s32 %s71, 1
      %s73 = scalar_select %p70, %s71, %s72
      %p76 = pneg %p70
      %p77 = scmp.eq.s32.totalorder %s19, 7
      %p78 = por %p76, %p77
      %p79 = scmp.ne.s32.totalorder %s71, %s74
      %p80 = scmp.eq.s32.totalorder %s19, 0
      %p81 = por %p79, %p80
      %p82 = scmp.ne.s32.totalorder %s71, %s74
      %p83 = scmp.eq.s32.totalorder %s24, 7
      %p84 = por %p82, %p83
      %p85 = scmp.ne.s32.totalorder %s74, %s75
      %p86 = scmp.eq.s32.totalorder %s24, 0
      %p87 = por %p85, %p86
      %p88 = scmp.ne.s32.totalorder %s74, %s75
      %p89 = scmp.eq.s32.totalorder %s25, 7
      %p90 = por %p88, %p89
      %p92 = scmp.ne.s32.totalorder %s75, %s91
      %p93 = scmp.eq.s32.totalorder %s25, 0
      %p94 = por %p92, %p93
      %s96 = sadd.s32 %s95, 1
      %p99 = scmp.eq.s32.totalorder %s19, 7
      %p100 = scmp.ne.s32.totalorder %s95, %s97
      %p101 = scmp.eq.s32.totalorder %s19, 0
      %p102 = por %p100, %p101
      %p103 = scmp.ne.s32.totalorder %s95, %s97
      %p104 = scmp.eq.s32.totalorder %s24, 7
      %p105 = por %p103, %p104
      %p106 = scmp.ne.s32.totalorder %s97, %s98
      %p107 = scmp.eq.s32.totalorder %s24, 0
      %p108 = por %p106, %p107
      %p109 = scmp.ne.s32.totalorder %s97, %s98
      %p110 = scmp.eq.s32.totalorder %s25, 7
      %p111 = por %p109, %p110
      %p113 = scmp.ne.s32.totalorder %s98, %s112
      %p114 = scmp.eq.s32.totalorder %s25, 0
      %p115 = por %p113, %p114
      %s117 = sadd.s32 %s116, 1
      %p120 = scmp.eq.s32.totalorder %s19, 7
      %p121 = scmp.ne.s32.totalorder %s116, %s118
      %p122 = scmp.eq.s32.totalorder %s19, 0
      %p123 = por %p121, %p122
      %p124 = scmp.ne.s32.totalorder %s116, %s118
      %p125 = scmp.eq.s32.totalorder %s24, 7
      %p126 = por %p124, %p125
      %p127 = scmp.ne.s32.totalorder %s118, %s119
      %p128 = scmp.eq.s32.totalorder %s24, 0
      %p129 = por %p127, %p128
      %p130 = scmp.ne.s32.totalorder %s118, %s119
      %p131 = scmp.eq.s32.totalorder %s25, 7
      %p132 = por %p130, %p131
      %p134 = scmp.ne.s32.totalorder %s119, %s133
      %p135 = scmp.eq.s32.totalorder %s25, 0
      %p136 = por %p134, %p135
      %s138 = sadd.s32 %s137, 1
      %p141 = scmp.eq.s32.totalorder %s19, 7
      %p142 = scmp.ne.s32.totalorder %s137, %s139
      %p143 = scmp.eq.s32.totalorder %s19, 0
      %p144 = por %p142, %p143
      %p145 = scmp.ne.s32.totalorder %s137, %s139
      %p146 = scmp.eq.s32.totalorder %s24, 7
      %p147 = por %p145, %p146
      %p148 = scmp.ne.s32.totalorder %s139, %s140
      %p149 = scmp.eq.s32.totalorder %s24, 0
      %p150 = por %p148, %p149
      %p151 = scmp.ne.s32.totalorder %s139, %s140
      %p152 = scmp.eq.s32.totalorder %s25, 7
      %p153 = por %p151, %p152
      %p155 = scmp.ne.s32.totalorder %s140, %s154
      %p156 = scmp.eq.s32.totalorder %s25, 0
      %p157 = por %p155, %p156
      %s159 = sadd.s32 %s158, 1
      %p162 = scmp.eq.s32.totalorder %s19, 7
      %p163 = scmp.ne.s32.totalorder %s158, %s160
      %p164 = scmp.eq.s32.totalorder %s19, 0
      %p165 = por %p163, %p164
      %p166 = scmp.ne.s32.totalorder %s158, %s160
      %p167 = scmp.eq.s32.totalorder %s24, 7
      %p168 = por %p166, %p167
      %p169 = scmp.ne.s32.totalorder %s160, %s161
      %p170 = scmp.eq.s32.totalorder %s24, 0
      %p171 = por %p169, %p170
      %p172 = scmp.ne.s32.totalorder %s160, %s161
      %p173 = scmp.eq.s32.totalorder %s25, 7
      %p174 = por %p172, %p173
      %p176 = scmp.ne.s32.totalorder %s161, %s175
      %p177 = scmp.eq.s32.totalorder %s25, 0
      %p178 = por %p176, %p177
      %s180 = sadd.s32 %s179, 1
      %p183 = scmp.eq.s32.totalorder %s19, 7
      %p184 = scmp.ne.s32.totalorder %s179, %s181
      %p185 = scmp.eq.s32.totalorder %s19, 0
      %p186 = por %p184, %p185
      %p187 = scmp.ne.s32.totalorder %s179, %s181
      %p188 = scmp.eq.s32.totalorder %s24, 7
      %p189 = por %p187, %p188
      %p190 = scmp.ne.s32.totalorder %s181, %s182
      %p191 = scmp.eq.s32.totalorder %s24, 0
      %p192 = por %p190, %p191
      %p193 = scmp.ne.s32.totalorder %s181, %s182
      %p194 = scmp.eq.s32.totalorder %s25, 7
      %p195 = por %p193, %p194
      %p197 = scmp.ne.s32.totalorder %s182, %s196
      %p198 = scmp.eq.s32.totalorder %s25, 0
      %p199 = por %p197, %p198
      %s201 = sadd.s32 %s200, 1
      %p204 = scmp.eq.s32.totalorder %s19, 7
      %p205 = scmp.ne.s32.totalorder %s200, %s202
      %p206 = scmp.eq.s32.totalorder %s19, 0
      %p207 = por %p205, %p206
      %p208 = scmp.ne.s32.totalorder %s200, %s202
      %p209 = scmp.eq.s32.totalorder %s24, 7
      %p210 = por %p208, %p209
      %p211 = scmp.ne.s32.totalorder %s202, %s203
      %p212 = scmp.eq.s32.totalorder %s24, 0
      %p213 = por %p211, %p212
      %p214 = scmp.ne.s32.totalorder %s202, %s203
      %p215 = scmp.eq.s32.totalorder %s25, 7
      %p216 = por %p214, %p215
      %p218 = scmp.ne.s32.totalorder %s203, %s217
      %p219 = scmp.eq.s32.totalorder %s25, 0
      %p220 = por %p218, %p219
      %s222 = sadd.s32 %s221, 1
      %p225 = scmp.eq.s32.totalorder %s19, 7
      %p226 = scmp.ne.s32.totalorder %s221, %s223
      %p227 = scmp.eq.s32.totalorder %s19, 0
      %p228 = por %p226, %p227
      %p229 = scmp.ne.s32.totalorder %s221, %s223
      %p230 = scmp.eq.s32.totalorder %s24, 7
      %p231 = por %p229, %p230
      %p232 = scmp.ne.s32.totalorder %s223, %s224
      %p233 = scmp.eq.s32.totalorder %s24, 0
      %p234 = por %p232, %p233
      %p235 = scmp.ne.s32.totalorder %s223, %s224
      %p236 = scmp.eq.s32.totalorder %s25, 7
      %p237 = por %p235, %p236
      %p239 = scmp.ne.s32.totalorder %s224, %s238
      %p240 = scmp.eq.s32.totalorder %s25, 0
      %p241 = por %p239, %p240
      %s243 = sadd.s32 %s242, 1
      %p246 = scmp.eq.s32.totalorder %s19, 7
      %p247 = scmp.ne.s32.totalorder %s242, %s244
      %p248 = scmp.eq.s32.totalorder %s19, 0
      %p249 = por %p247, %p248
      %p250 = scmp.ne.s32.totalorder %s242, %s244
      %p251 = scmp.eq.s32.totalorder %s24, 7
      %p252 = por %p250, %p251
      %p253 = scmp.ne.s32.totalorder %s244, %s245
      %p254 = scmp.eq.s32.totalorder %s24, 0
      %p255 = por %p253, %p254
      %p256 = scmp.ne.s32.totalorder %s244, %s245
      %p257 = scmp.eq.s32.totalorder %s25, 7
      %p258 = por %p256, %p257
      %p260 = scmp.ne.s32.totalorder %s245, %s259
      %p261 = scmp.eq.s32.totalorder %s25, 0
      %p262 = por %p260, %p261
      %s263 = ssub.s32 %s26, %s38
      %s264 = ssub.s32 %s27, %s34
      %s265 = sor.u32 %s263, %s264
      %p266 = scmp.eq.s32.totalorder %s265, 0
      %s268 = sadd.s32 %s267, 1
      %s269 = scalar_select %p266, %s267, %s268
      %p272 = pneg %p266
      %p273 = scmp.eq.s32.totalorder %s19, 7
      %p274 = por %p272, %p273
      %p275 = scmp.ne.s32.totalorder %s267, %s270
      %p276 = scmp.eq.s32.totalorder %s19, 0
      %p277 = por %p275, %p276
      %p278 = scmp.ne.s32.totalorder %s267, %s270
      %p279 = scmp.eq.s32.totalorder %s24, 7
      %p280 = por %p278, %p279
      %p281 = scmp.ne.s32.totalorder %s270, %s271
      %p282 = scmp.eq.s32.totalorder %s24, 0
      %p283 = por %p281, %p282
      %p284 = scmp.ne.s32.totalorder %s270, %s271
      %p285 = scmp.eq.s32.totalorder %s25, 7
      %p286 = por %p284, %p285
      %p288 = scmp.ne.s32.totalorder %s271, %s287
      %p289 = scmp.eq.s32.totalorder %s25, 0
      %p290 = por %p288, %p289
      %p291 = scmp.le.s32.totalorder 1, %s19
      %p292 = scmp.lt.s32.totalorder %s19, 9
      %p293 = pnand %p291, %p292
      %p294 = pneg %p293
      // Predicated region
      $region9: #{sam_vision_encoder_forward.13} parent=5 // pred_check
        _
      $region10: #{sam_vision_encoder_forward.13} parent=5 // pred_check_branch
        %296 = sbr.rel (%p293) target = $region12
      $region11: #{sam_vision_encoder_forward.13} parent=5 // pred_region
        %s297 = ssub.s32 %s19, 1
        // Predicated region
        $region13: #{sam_vision_encoder_forward.13} parent=11 // pred_check
          %p298 = pneg %p108
        $region14: #{sam_vision_encoder_forward.13} parent=11 // pred_check_branch
          %300 = sbr.rel (%p298) target = $region16
        $region15: #{sam_vision_encoder_forward.13} parent=11 // pred_region
          _
        $region16: #{sam_vision_encoder_forward.13} parent=11 // pred_fallthru
          _
        // Predicated region
        $region17: #{sam_vision_encoder_forward.13} parent=11 // pred_check
          %p301 = pneg %p129
        $region18: #{sam_vision_encoder_forward.13} parent=11 // pred_check_branch
          %303 = sbr.rel (%p301) target = $region20
        $region19: #{sam_vision_encoder_forward.13} parent=11 // pred_region
          _
        $region20: #{sam_vision_encoder_forward.13} parent=11 // pred_fallthru
          _
        // Predicated region
        $region21: #{sam_vision_encoder_forward.13} parent=11 // pred_check
          %p304 = pneg %p150
        $region22: #{sam_vision_encoder_forward.13} parent=11 // pred_check_branch
          %306 = sbr.rel (%p304) target = $region24
        $region23: #{sam_vision_encoder_forward.13} parent=11 // pred_region
          _
        $region24: #{sam_vision_encoder_forward.13} parent=11 // pred_fallthru
          _
        // Predicated region
        $region25: #{sam_vision_encoder_forward.13} parent=11 // pred_check
          %p307 = pneg %p171
        $region26: #{sam_vision_encoder_forward.13} parent=11 // pred_check_branch
          %309 = sbr.rel (%p307) target = $region28
        $region27: #{sam_vision_encoder_forward.13} parent=11 // pred_region
          _
        $region28: #{sam_vision_encoder_forward.13} parent=11 // pred_fallthru
          _
        // Predicated region
        $region29: #{sam_vision_encoder_forward.13} parent=11 // pred_check
          %p310 = pneg %p192
        $region30: #{sam_vision_encoder_forward.13} parent=11 // pred_check_branch
          %312 = sbr.rel (%p310) target = $region32
        $region31: #{sam_vision_encoder_forward.13} parent=11 // pred_region
          _
        $region32: #{sam_vision_encoder_forward.13} parent=11 // pred_fallthru
          _
        // Predicated region
        $region33: #{sam_vision_encoder_forward.13} parent=11 // pred_check
          %p313 = pneg %p213
        $region34: #{sam_vision_encoder_forward.13} parent=11 // pred_check_branch
          %315 = sbr.rel (%p313) target = $region36
        $region35: #{sam_vision_encoder_forward.13} parent=11 // pred_region
          _
        $region36: #{sam_vision_encoder_forward.13} parent=11 // pred_fallthru
          _
        // Predicated region
        $region37: #{sam_vision_encoder_forward.13} parent=11 // pred_check
          %p316 = pneg %p234
        $region38: #{sam_vision_encoder_forward.13} parent=11 // pred_check_branch
          %318 = sbr.rel (%p316) target = $region40
        $region39: #{sam_vision_encoder_forward.13} parent=11 // pred_region
          _
        $region40: #{sam_vision_encoder_forward.13} parent=11 // pred_fallthru
          _
        // Predicated region
        $region41: #{sam_vision_encoder_forward.13} parent=11 // pred_check
          %p319 = pneg %p255
        $region42: #{sam_vision_encoder_forward.13} parent=11 // pred_check_branch
          %321 = sbr.rel (%p319) target = $region44
        $region43: #{sam_vision_encoder_forward.13} parent=11 // pred_region
          _
        $region44: #{sam_vision_encoder_forward.13} parent=11 // pred_fallthru
          _
      $region12: #{sam_vision_encoder_forward.13} parent=5 // pred_fallthru
        _
      %p322 = scmp.lt.s32.totalorder %s19, 8
      // Predicated region
      $region45: #{sam_vision_encoder_forward.13} parent=5 // pred_check
        %p323 = pneg %p322
      $region46: #{sam_vision_encoder_forward.13} parent=5 // pred_check_branch
        %325 = sbr.rel (%p323) target = $region48
      $region47: #{sam_vision_encoder_forward.13} parent=5 // pred_region
        // Predicated region
        $region49: #{sam_vision_encoder_forward.13} parent=47 // pred_check
          %p326 = pneg %p53
        $region50: #{sam_vision_encoder_forward.13} parent=47 // pred_check_branch
          %328 = sbr.rel (%p326) target = $region52
        $region51: #{sam_vision_encoder_forward.13} parent=47 // pred_region
          %s329 = smul.u32 2, %s27
          %p330 = scmp.lt.s32.totalorder %s26, 1
          %s331 = scalar_select %p330, %s26, 1
          %p332 = scmp.lt.s32.totalorder %s329, 7
          %s333 = scalar_select %p332, %s329, 7
          %s334 = smul.addr %s331, 8
          %s335 = sadd.s32 %s333, %s334
          %s336 = smul.addr %s335, 8
          %s337 = scalar_lea.vmem %s0, %s336
          %s338 = smul.u32 2, %s27
        $region52: #{sam_vision_encoder_forward.13} parent=47 // pred_fallthru
          _
        // Predicated region
        $region53: #{sam_vision_encoder_forward.13} parent=47 // pred_check
          %p339 = pneg %p81
        $region54: #{sam_vision_encoder_forward.13} parent=47 // pred_check_branch
          %341 = sbr.rel (%p339) target = $region56
        $region55: #{sam_vision_encoder_forward.13} parent=47 // pred_region
          %s342 = smul.u32 2, %s27
          %p343 = scmp.lt.s32.totalorder %s26, 1
          %s344 = scalar_select %p343, %s26, 1
          %p345 = scmp.lt.s32.totalorder %s342, 7
          %s346 = scalar_select %p345, %s342, 7
          %s347 = smul.addr %s344, 8
          %s348 = sadd.s32 %s346, %s347
          %s349 = smul.addr %s348, 4
          %s350 = scalar_lea.vmem %s1, %s349
          %s351 = smul.u32 2, %s27
        $region56: #{sam_vision_encoder_forward.13} parent=47 // pred_fallthru
          _
      $region48: #{sam_vision_encoder_forward.13} parent=5 // pred_fallthru
        _
      %p352 = scmp.le.s32.totalorder 1, %s19
      %p353 = scmp.lt.s32.totalorder %s19, 9
      %p354 = pnand %p352, %p353
      %p355 = pneg %p354
      // Predicated region
      $region57: #{sam_vision_encoder_forward.13} parent=5 // pred_check
        _
      $region58: #{sam_vision_encoder_forward.13} parent=5 // pred_check_branch
        %357 = sbr.rel (%p354) target = $region60
      $region59: #{sam_vision_encoder_forward.13} parent=5 // pred_region
        %s358 = ssub.s32 %s19, 1
        %s359 = smul.u32 2, %s29
        %p360 = scmp.lt.s32.totalorder %s28, 1
        %s361 = scalar_select %p360, %s28, 1
        %p362 = scmp.lt.s32.totalorder %s359, 7
        %s363 = scalar_select %p362, %s359, 7
        %s364 = smul.addr %s361, 8
        %s365 = sadd.s32 %s363, %s364
        %s366 = smul.addr %s365, 8
        %s367 = scalar_lea.vmem %s0, %s366
        %p368 = pneg %p59
        %p369 = pneg %p56
        %s370 = smul.u32 2, %s29
        %p371 = scmp.lt.s32.totalorder %s28, 1
        %s372 = scalar_select %p371, %s28, 1
        %p373 = scmp.lt.s32.totalorder %s370, 7
        %s374 = scalar_select %p373, %s370, 7
        %s375 = smul.addr %s372, 8
        %s376 = sadd.s32 %s374, %s375
        %s377 = smul.addr %s376, 4
        %s378 = scalar_lea.vmem %s1, %s377
        %p379 = pneg %p87
        %p380 = pneg %p84
        %p381 = pneg %p108
        %p382 = pneg %p105
        %p383 = pneg %p129
        %p384 = pneg %p126
        %p385 = pneg %p150
        %p386 = pneg %p147
        %p387 = pneg %p171
        %p388 = pneg %p168
        %p389 = pneg %p192
        %p390 = pneg %p189
        %p391 = pneg %p213
        %p392 = pneg %p210
        %p393 = pneg %p234
        %p394 = pneg %p231
        %p395 = pneg %p255
        %p396 = pneg %p252
        %p397 = pneg %p283
        %p398 = pneg %p280
        %s399 = sand.u32 %s270, 1
        %s400 = scalar_lea.sflag [#allocation3], %s399
        %s401 = sand.u32 %s270, 1
        %s402 = smul.addr %s401, 16
        %s403 = scalar_lea.vmem [#allocation2], %s402
        %s404 = smul.u32 2, %s29
        %p405 = scmp.lt.s32.totalorder %s28, 1
        %s406 = scalar_select %p405, %s28, 1
        %p407 = scmp.lt.s32.totalorder %s404, 7
        %s408 = scalar_select %p407, %s404, 7
        %s409 = smul.addr %s406, 8
        %s410 = sadd.s32 %s408, %s409
        %s411 = smul.addr %s410, 8
        %s412 = scalar_lea.vmem %s0, %s411
        %s413 = smul.u32 2, %s29
        %s414 = smul.u32 2, %s29
        %p415 = scmp.lt.s32.totalorder %s28, 1
        %s416 = scalar_select %p415, %s28, 1
        %p417 = scmp.lt.s32.totalorder %s414, 7
        %s418 = scalar_select %p417, %s414, 7
        %s419 = smul.addr %s416, 8
        %s420 = sadd.s32 %s418, %s419
        %s421 = smul.addr %s420, 4
        %s422 = scalar_lea.vmem %s1, %s421
        %s423 = smul.u32 2, %s29
        %s424 = smul.u32 2, %s29
        %v426 = vld [vmem:[%s412] sm:$0xff]
        %v427 = vld [vmem:[%s412 + $0x8] sm:$0xff]
        %v428 = vld [vmem:[%s422] sm:$0xf]
        %v429 = vld [vmem:[%s422 + $0x4] sm:$0xf]
        %v430 = vld [vmem:[%s2] sm:$0xf]
        %v431 = vld [vmem:[%s2 + $0x4] sm:$0xf]
        %v432 = vld [vmem:[%s2 + $0x8] sm:$0xf]
        %v433 = vld [vmem:[%s2 + $0xc] sm:$0xf]
        %v436 = vunpack.c.l.b16 %v428
        %v437 = vunpack.c.l.b16 %v429
        %v438 = vpack.c.b16 %v437, %v436
        %v443 = vunpack.c.l.b16 %v430
        %v444 = vunpack.c.l.b16 %v431
        %v445 = vunpack.c.l.b16 %v432
        %v446 = vunpack.c.l.b16 %v433
        %v447 = vpack.c.b16 %v444, %v443
        %v448 = vpack.c.b16 %v446, %v445
        %vm451 = vcmask 261120
        %v453 = vsel %vm451, %v438, 0
        %455 = vmatprep.subr.bf16.mxu0 0
        %456 = vmatpush1.bf16.msra.mxu0 %v447
        %457 = vmatprep.subr.bf16.mxu0 0
        %458 = vmatpush1.bf16.msra.mxu0 %v448
        %459 = vmatprep.subr.bf16.mxu0 0
        %460 = vmatpush1.bf16.msra.mxu0 0
        %461 = vmatprep.subr.bf16.mxu0 0
        %462 = vmatpush1.bf16.msra.mxu0 0
        %463 = vmatprep.subr.bf16.mxu0 0
        %464 = vmatpush1.bf16.msra.mxu0 0
        %465 = vmatprep.subr.bf16.mxu0 0
        %466 = vmatpush1.bf16.msra.mxu0 0
        %467 = vmatprep.subr.bf16.mxu0 0
        %468 = vmatpush1.bf16.msra.mxu0 0
        %469 = vmatprep.subr.bf16.mxu0 0
        %470 = vmatpush1.bf16.msra.mxu0 0
        %471 = vmatprep.subr.bf16.mxu0 0
        %472 = vmatpush1.bf16.msra.mxu0 0
        %473 = vmatprep.subr.bf16.mxu0 0
        %474 = vmatpush1.bf16.msra.mxu0 0
        %475 = vmatprep.subr.bf16.mxu0 0
        %476 = vmatpush1.bf16.msra.mxu0 0
        %477 = vmatprep.subr.bf16.mxu0 0
        %478 = vmatpush1.bf16.msra.mxu0 0
        %479 = vmatprep.subr.bf16.mxu0 0
        %480 = vmatpush1.bf16.msra.mxu0 0
        %481 = vmatprep.subr.bf16.mxu0 0
        %482 = vmatpush1.bf16.msra.mxu0 0
        %483 = vmatprep.subr.bf16.mxu0 0
        %484 = vmatpush1.bf16.msra.mxu0 0
        %485 = vmatprep.subr.bf16.mxu0 0
        %486 = vmatpush1.bf16.msra.mxu0 0
        %487 = vmatprep.mubr.bf16.mxu0 0
        %488 = vmatmul.mubr.bf16.gmra.mrb[0].mxu0 %v453
        %v489 = vpop.f32.mrb[0].mxu0
        %v490 = vadd.f32 0.0, %v489
        %v491 = vpop.f32.mrb[0].mxu0
        %v492 = vpop.f32.mrb[0].mxu0
        %v493 = vadd.f32 0.0, %v492
        %v494 = vpop.f32.mrb[0].mxu0
        %495 = vdwg.mxu0
        %v496 = vadd.f32 %v426, %v490
        %v497 = vadd.f32 %v427, %v493
        %v498 = vld [vmem:[%s3] sm:$0x1]
        %v500 = vlaneseq
        %v501 = vshrl.u32 %v500, 7
        %v502 = vsub.s32 0, %v501
        %v503 = vrot.slane %v498, %v502
        %v505 = vadd.f32 %v496, %v503
        %v506 = vadd.f32 %v497, %v503
        %v507 = vld [vmem:[%s4] sm:$0x1]
        %v508 = vld [vmem:[%s5] sm:$0x1]
        %v509 = vsel %vm451, %v505, 0.0
        %510 = vadd.xlane.f32.xlu0 %v509
        %v511 = vpop.xlane.xlu0 %510
        %v512 = vsel %vm451, %v506, 0.0
        %513 = vadd.xlane.f32.xlu0 %v512
        %v514 = vpop.xlane.xlu0 %513
        %v515 = vrcp.pop 32.0
        %v516 = vmul.f32 %v511, %v515
        %v517 = vmul.f32 %v514, %v515
        %v518 = vmul.f32 %v505, %v505
        %v519 = vmul.f32 %v506, %v506
        %v520 = vsel %vm451, %v518, 0.0
        %521 = vadd.xlane.f32.xlu0 %v520
        %v522 = vpop.xlane.xlu0 %521
        %v523 = vsel %vm451, %v519, 0.0
        %524 = vadd.xlane.f32.xlu0 %v523
        %v525 = vpop.xlane.xlu0 %524
        %v526 = vmul.f32 %v522, %v515
        %v527 = vmul.f32 %v525, %v515
        %v528 = vmul.f32 %v516, %v516
        %v529 = vmul.f32 %v517, %v517
        %v530 = vsub.f32 %v526, %v528
        %v531 = vsub.f32 %v527, %v529
        %v532 = vmax.f32 %v530, 0.0
        %v533 = vmax.f32 %v531, 0.0
        %v534 = vsub.f32 %v505, %v516
        %v535 = vsub.f32 %v506, %v517
        %v536 = vadd.f32 %v532, 1e-06
        %v537 = vadd.f32 %v533, 1e-06
        %v538 = vrsqrt.pop %v536
        %v539 = vrsqrt.pop %v537
        %v540 = vmul.f32 %v534, %v538
        %v541 = vmul.f32 %v535, %v539
        %v543 = vlaneseq
        %v544 = vshrl.u32 %v543, 7
        %v545 = vsub.s32 0, %v544
        %v546 = vrot.slane %v507, %v545
        %v548 = vmul.f32 %v540, %v546
        %v549 = vmul.f32 %v541, %v546
        %v551 = vlaneseq
        %v552 = vshrl.u32 %v551, 7
        %v553 = vsub.s32 0, %v552
        %v554 = vrot.slane %v508, %v553
        %v556 = vadd.f32 %v548, %v554
        %v557 = vadd.f32 %v549, %v554
        %v558 = vpack.c.bf16 %v557, %v556
        %v559 = vld [vmem:[%s6] sm:$0xf]
        %v560 = vld [vmem:[%s6 + $0x4] sm:$0xf]
        %v561 = vld [vmem:[%s6 + $0x8] sm:$0xf]
        %v562 = vld [vmem:[%s6 + $0xc] sm:$0xf]
        %v563 = vld [vmem:[%s7] sm:$0x1]
        %v565 = vlaneseq
        %v566 = vshrl.u32 %v565, 7
        %v567 = vsub.s32 0, %v566
        %v568 = vrot.slane %v563, %v567
        %v574 = vunpack.c.l.b16 %v559
        %v575 = vunpack.c.l.b16 %v560
        %v576 = vunpack.c.l.b16 %v561
        %v577 = vunpack.c.l.b16 %v562
        %v578 = vpack.c.b16 %v575, %v574
        %v579 = vpack.c.b16 %v577, %v576
        %v583 = vsel %vm451, %v558, 0
        %585 = vmatprep.subr.bf16.mxu0 0
        %586 = vmatpush1.bf16.msra.mxu0 %v578
        %587 = vmatprep.subr.bf16.mxu0 0
        %588 = vmatpush1.bf16.msra.mxu0 %v579
        %589 = vmatprep.subr.bf16.mxu0 0
        %590 = vmatpush1.bf16.msra.mxu0 0
        %591 = vmatprep.subr.bf16.mxu0 0
        %592 = vmatpush1.bf16.msra.mxu0 0
        %593 = vmatprep.subr.bf16.mxu0 0
        %594 = vmatpush1.bf16.msra.mxu0 0
        %595 = vmatprep.subr.bf16.mxu0 0
        %596 = vmatpush1.bf16.msra.mxu0 0
        %597 = vmatprep.subr.bf16.mxu0 0
        %598 = vmatpush1.bf16.msra.mxu0 0
        %599 = vmatprep.subr.bf16.mxu0 0
        %600 = vmatpush1.bf16.msra.mxu0 0
        %601 = vmatprep.subr.bf16.mxu0 0
        %602 = vmatpush1.bf16.msra.mxu0 0
        %603 = vmatprep.subr.bf16.mxu0 0
        %604 = vmatpush1.bf16.msra.mxu0 0
        %605 = vmatprep.subr.bf16.mxu0 0
        %606 = vmatpush1.bf16.msra.mxu0 0
        %607 = vmatprep.subr.bf16.mxu0 0
        %608 = vmatpush1.bf16.msra.mxu0 0
        %609 = vmatprep.subr.bf16.mxu0 0
        %610 = vmatpush1.bf16.msra.mxu0 0
        %611 = vmatprep.subr.bf16.mxu0 0
        %612 = vmatpush1.bf16.msra.mxu0 0
        %613 = vmatprep.subr.bf16.mxu0 0
        %614 = vmatpush1.bf16.msra.mxu0 0
        %615 = vmatprep.subr.bf16.mxu0 0
        %616 = vmatpush1.bf16.msra.mxu0 0
        %617 = vmatprep.mubr.bf16.mxu0 0
        %618 = vmatmul.mubr.bf16.gmra.mrb[0].mxu0 %v583
        %v619 = vpop.f32.mrb[0].mxu0
        %v620 = vadd.f32 %v568, %v619
        %v621 = vpop.f32.mrb[0].mxu0
        %v622 = vpop.f32.mrb[0].mxu0
        %v623 = vadd.f32 %v568, %v622
        %v624 = vpop.f32.mrb[0].mxu0
        %625 = vdwg.mxu0
        %v626 = vmul.f32 %v620, 0.5
        %v627 = vmul.f32 %v623, 0.5
        %v628 = vmul.f32 %v620, 0.70710677
        %v629 = vmul.f32 %v623, 0.70710677
        %v630 = verf.f32.pop %v628
        %v631 = verf.f32.pop %v629
        %v632 = vadd.f32 %v630, 1.0
        %v633 = vadd.f32 %v631, 1.0
        %v634 = vmul.f32 %v626, %v632
        %v635 = vmul.f32 %v627, %v633
        %v636 = vpack.c.bf16 %v635, %v634
        %v637 = vld [vmem:[%s8] sm:$0xf]
        %v638 = vld [vmem:[%s8 + $0x4] sm:$0xf]
        %v639 = vld [vmem:[%s8 + $0x8] sm:$0xf]
        %v640 = vld [vmem:[%s8 + $0xc] sm:$0xf]
        %v641 = vld [vmem:[%s8 + $0x10] sm:$0xf]
        %v642 = vld [vmem:[%s8 + $0x14] sm:$0xf]
        %v643 = vld [vmem:[%s8 + $0x18] sm:$0xf]
        %v644 = vld [vmem:[%s8 + $0x1c] sm:$0xf]
        %v645 = vld [vmem:[%s8 + $0x20] sm:$0xf]
        %v646 = vld [vmem:[%s8 + $0x24] sm:$0xf]
        %v647 = vld [vmem:[%s8 + $0x28] sm:$0xf]
        %v648 = vld [vmem:[%s8 + $0x2c] sm:$0xf]
        %v649 = vld [vmem:[%s8 + $0x30] sm:$0xf]
        %v650 = vld [vmem:[%s8 + $0x34] sm:$0xf]
        %v651 = vld [vmem:[%s8 + $0x38] sm:$0xf]
        %v652 = vld [vmem:[%s8 + $0x3c] sm:$0xf]
        %v653 = vld [vmem:[%s9] sm:$0x1]
        %v655 = vlaneseq
        %v656 = vshrl.u32 %v655, 7
        %v657 = vsub.s32 0, %v656
        %v658 = vrot.slane %v653, %v657
        %v676 = vunpack.c.l.b16 %v637
        %v677 = vunpack.c.l.b16 %v638
        %v678 = vunpack.c.l.b16 %v639
        %v679 = vunpack.c.l.b16 %v640
        %v680 = vunpack.c.l.b16 %v641
        %v681 = vunpack.c.l.b16 %v642
        %v682 = vunpack.c.l.b16 %v643
        %v683 = vunpack.c.l.b16 %v644
        %v684 = vunpack.c.l.b16 %v645
        %v685 = vunpack.c.l.b16 %v646
        %v686 = vunpack.c.l.b16 %v647
        %v687 = vunpack.c.l.b16 %v648
        %v688 = vunpack.c.l.b16 %v649
        %v689 = vunpack.c.l.b16 %v650
        %v690 = vunpack.c.l.b16 %v651
        %v691 = vunpack.c.l.b16 %v652
        %v692 = vpack.c.b16 %v677, %v676
        %v693 = vpack.c.b16 %v679, %v678
        %v694 = vpack.c.b16 %v681, %v680
        %v695 = vpack.c.b16 %v683, %v682
        %v696 = vpack.c.b16 %v685, %v684
        %v697 = vpack.c.b16 %v687, %v686
        %v698 = vpack.c.b16 %v689, %v688
        %v699 = vpack.c.b16 %v691, %v690
        %708 = vmatprep.subr.bf16.mxu0 0
        %709 = vmatpush1.bf16.msra.mxu0 %v692
        %710 = vmatprep.subr.bf16.mxu0 0
        %711 = vmatpush1.bf16.msra.mxu0 %v693
        %712 = vmatprep.subr.bf16.mxu0 0
        %713 = vmatpush1.bf16.msra.mxu0 %v694
        %714 = vmatprep.subr.bf16.mxu0 0
        %715 = vmatpush1.bf16.msra.mxu0 %v695
        %716 = vmatprep.subr.bf16.mxu0 0
        %717 = vmatpush1.bf16.msra.mxu0 %v696
        %718 = vmatprep.subr.bf16.mxu0 0
        %719 = vmatpush1.bf16.msra.mxu0 %v697
        %720 = vmatprep.subr.bf16.mxu0 0
        %721 = vmatpush1.bf16.msra.mxu0 %v698
        %722 = vmatprep.subr.bf16.mxu0 0
        %723 = vmatpush1.bf16.msra.mxu0 %v699
        %724 = vmatprep.subr.bf16.mxu0 0
        %725 = vmatpush1.bf16.msra.mxu0 0
        %726 = vmatprep.subr.bf16.mxu0 0
        %727 = vmatpush1.bf16.msra.mxu0 0
        %728 = vmatprep.subr.bf16.mxu0 0
        %729 = vmatpush1.bf16.msra.mxu0 0
        %730 = vmatprep.subr.bf16.mxu0 0
        %731 = vmatpush1.bf16.msra.mxu0 0
        %732 = vmatprep.subr.bf16.mxu0 0
        %733 = vmatpush1.bf16.msra.mxu0 0
        %734 = vmatprep.subr.bf16.mxu0 0
        %735 = vmatpush1.bf16.msra.mxu0 0
        %736 = vmatprep.subr.bf16.mxu0 0
        %737 = vmatpush1.bf16.msra.mxu0 0
        %738 = vmatprep.subr.bf16.mxu0 0
        %739 = vmatpush1.bf16.msra.mxu0 0
        %740 = vmatprep.mubr.bf16.mxu0 0
        %741 = vmatmul.mubr.bf16.gmra.mrb[0].mxu0 %v636
        %v742 = vpop.f32.mrb[0].mxu0
        %v743 = vadd.f32 %v658, %v742
        %v744 = vpop.f32.mrb[0].mxu0
        %v745 = vpop.f32.mrb[0].mxu0
        %v746 = vadd.f32 %v658, %v745
        %v747 = vpop.f32.mrb[0].mxu0
        %748 = vdwg.mxu0
        %v749 = vadd.f32 %v505, %v743
        %v750 = vadd.f32 %v506, %v746
        %751 = vst.msk [vmem:[%s403] sm:$0xff] %vm451, %v749
        %752 = vst.msk [vmem:[%s403 + $0x8] sm:$0xff] %vm451, %v750
        %s753 = sand.u32 %s270, 1
        %s754 = scalar_lea.sflag [#allocation3], %s753
        %s755 = sand.u32 %s270, 1
        %s756 = smul.addr %s755, 16
        %s757 = scalar_lea.vmem [#allocation2], %s756
        // Predicated region
        $region61: #{sam_vision_encoder_forward.13} parent=59 // pred_check
          %p758 = pneg %p280
        $region62: #{sam_vision_encoder_forward.13} parent=59 // pred_check_branch
          %760 = sbr.rel (%p758) target = $region64
        $region63: #{sam_vision_encoder_forward.13} parent=59 // pred_region
          %s761 = smul.u32 2, %s29
          %s763 = ssub.s32 256, 256
          %764 = vsyncadd %s754, %s763
          %s765 = smul.addr %s28, 8
          %s766 = sadd.s32 %s761, %s765
          %s767 = smul.addr %s766, 128
          %s768 = scalar_lea.hbm %s10, %s767
          %s769 = sshll.u32 %s757, 4
          %s770 = int_to_ptr.vmem [resolvable:$true] %s769
          %775 = dma.vmem_to_hbm [thread:$0]  %s770, 256, %s768, %s754, 128, 128, 8
        $region64: #{sam_vision_encoder_forward.13} parent=59 // pred_fallthru
          _
      $region60: #{sam_vision_encoder_forward.13} parent=5 // pred_fallthru
        _
      %p776 = scmp.le.s32.totalorder 2, %s19
      // Predicated region
      $region65: #{sam_vision_encoder_forward.13} parent=5 // pred_check
        %p777 = pneg %p776
      $region66: #{sam_vision_encoder_forward.13} parent=5 // pred_check_branch
        %779 = sbr.rel (%p777) target = $region68
      $region67: #{sam_vision_encoder_forward.13} parent=5 // pred_region
        %s780 = ssub.s32 %s19, 2
        // Predicated region
        $region69: #{sam_vision_encoder_forward.13} parent=67 // pred_check
          %p781 = pneg %p286
        $region70: #{sam_vision_encoder_forward.13} parent=67 // pred_check_branch
          %783 = sbr.rel (%p781) target = $region72
        $region71: #{sam_vision_encoder_forward.13} parent=67 // pred_region
          %s784 = sand.u32 %s271, 1
          %s785 = scalar_lea.sflag [#allocation3], %s784
          %s786 = sand.u32 %s271, 1
          %s787 = smul.addr %s786, 16
          %s788 = scalar_lea.vmem [#allocation2], %s787
          %789 = dma.done %s785, 256
        $region72: #{sam_vision_encoder_forward.13} parent=67 // pred_fallthru
          _
      $region68: #{sam_vision_encoder_forward.13} parent=5 // pred_fallthru
        _
    $region6: #{sam_vision_encoder_forward.13} parent=1 // loop_footer
      %s23 = sadd.s32 1, %s19
    $region7: #{sam_vision_encoder_forward.13} parent=1 // loop_footer_branch
      %18 = sbr.rel target = $region3
    $region8: #{sam_vision_encoder_forward.13} parent=1 // loop_exit
      _
    %790 = vsyncpa [#allocation3], 1
    %s791 = scalar_lea.sflag [#allocation3], 1
    %792 = vsyncpa %s791, 1

</llo_original>
